<compile_context>
chip_gen: v6e
topology: v6e:2x2x1
jax: 0.10.0
libtpu: 0.0.40
codegen_flags: <defaults>
</compile_context>

<pallas_src>
import numpy as np
import jax
import jax.numpy as jnp
from jax.experimental import pallas as pl
from jax.experimental.pallas import tpu as pltpu

EPS = 1e-5

# Kernel-tap index per (phase, padded patch offset); -1 = no contribution.
# Derived from: output row oy = 2*iy + ky - 1, oy = 2*m + py, padded row = iy + 1.
_K_OF = ((3, 1, -1),   # py (or px) == 0  : patch offsets 0,1,2 -> taps 3,1,none
         (-1, 2, 0))   # py (or px) == 1  : patch offsets 0,1,2 -> taps none,2,0


def _round_up(x, m):
    return (x + m - 1) // m * m


def _physical_vmem_bytes():
    try:
        cap = getattr(pltpu.get_tpu_info(), "vmem_capacity_bytes", None)
        if cap:
            return int(cap)
    except Exception:
        pass
    return 64 * 2**20   # conservative: smallest per-core figure (v7x)


def _vmem_limit_bytes(block_bytes, scratch_bytes=0):
    # Double-buffered pipeline blocks + in-kernel temporaries + headroom, clamped to
    # ~3/4 of this generation's physical VMEM (v7x: ~48 MiB, v5e/v6e: ~96 MiB).
    need = 2 * int(block_bytes) + int(scratch_bytes)
    cap = (3 * _physical_vmem_bytes()) // 4
    return int(min(cap, max(32 * 2**20, 4 * need)))


def _choose_row_block(hw, p4, budget_bytes=8 << 20):
    # bf16 input block + f32 output block, double-buffered.
    max_rows = max(8, budget_bytes // (p4 * (2 + 4) * 2))
    if hw <= max_rows:
        return hw
    b = (int(min(max_rows, hw)) // 8) * 8
    while b >= 8:
        if hw % b == 0:
            return b
        b -= 8
    return hw


def upblock_conv_kernel(x_ref, w_ref, raw_ref, sums_ref, xp_scr):
    """Pass 1: whole-sample phase-folded transposed conv + per-sample BN partial sums.

    x_ref:    (1, H, W, Cin)   bf16 NHWC input (one sample per grid step)
    w_ref:    (9*Cin, P4)      bf16 combined phase/tap weight, P4 = round_up(4*Cout, 128)
    raw_ref:  (1, H*W, P4)     bf16 phase-folded conv output; lanes = (phase, Cout, pad)
    sums_ref: (1, 2, P4)       f32 per-sample [sum, sum_sq] over the H*W positions
    xp_scr:   (H+2, W+2, Cin)  bf16 zero-halo scratch
    """
    _, H, W, Cin = x_ref.shape

    # Zero only the 1-pixel halo; the interior is fully rewritten below.
    zrow = jnp.zeros((1, W + 2, Cin), xp_scr.dtype)
    zcol = jnp.zeros((H + 2, 1, Cin), xp_scr.dtype)
    xp_scr[0:1, :, :] = zrow
    xp_scr[H + 1:H + 2, :, :] = zrow
    xp_scr[:, 0:1, :] = zcol
    xp_scr[:, W + 1:W + 2, :] = zcol
    xp_scr[1:H + 1, 1:W + 1, :] = x_ref[0]

    # Fold the 9 distinct shifted patches onto the contraction axis: one MXU matmul
    # covers all 4 output phases and all taps for this sample.
    lhs = jnp.concatenate(
        [xp_scr[rs:rs + H, cs:cs + W, :].reshape(H * W, Cin)
         for rs in range(3) for cs in range(3)],
        axis=1)                                                   # (H*W, 9*Cin) bf16

    acc = jnp.dot(lhs, w_ref[...],
                  preferred_element_type=jnp.float32)             # (H*W, P4) f32

    # BN partial sums from the f32 accumulator (before the bf16 downcast); direct row
    # writes (no concat through the store slot).
    sums_ref[0, 0:1, :] = acc.sum(axis=0, keepdims=True)
    sums_ref[0, 1:2, :] = (acc * acc).sum(axis=0, keepdims=True)

    # bf16 intermediate: halves the dominant HBM traffic of the two-pass scheme.
    raw_ref[0] = acc.astype(raw_ref.dtype)


def upblock_bn_relu_kernel(raw_ref, scale_ref, shift_ref, out_ref):
    """Pass 2: relu(raw * scale + shift), elementwise over a (row-block, P4) tile.

    raw_ref:   (1, bR, P4) bf16
    scale_ref: (1, P4)     f32  per-channel BN scale, tiled x4 over the phase lanes
    shift_ref: (1, P4)     f32
    out_ref:   (1, bR, P4) f32
    """
    y = raw_ref[0].astype(jnp.float32)
    out_ref[0] = jnp.maximum(y * scale_ref[...] + shift_ref[...], 0.0)
    # TODO(synk): when UpBlocks are stacked, emit bf16 here to halve output writeback.


def upblock_forward(x_nchw, w, gamma, beta, eps=EPS):
    """x_nchw: (N, Cin, H, W); w: (Cin, Cout, 4, 4) [PyTorch ConvTranspose2d layout];
       gamma/beta: (Cout,).  Returns (N, Cout, 2H, 2W) float32."""
    N, Cin, H, W = x_nchw.shape
    Cout = w.shape[1]
    C4 = 4 * Cout
    P4 = _round_up(C4, 128)        # phases folded onto the lane axis, then padded
    HW = H * W

    # --- layout plumbing: NCHW -> NHWC, bf16 MXU operand ---
    x = jnp.transpose(x_nchw, (0, 2, 3, 1)).astype(jnp.bfloat16)

    # --- combined phase/tap weight: K index = (patch_row, patch_col, Cin),
    #     lane index = (phase, Cout) ---
    w_hwio = jnp.transpose(w, (2, 3, 0, 1))                       # (kH, kW, Cin, Cout)
    zero_blk = jnp.zeros((Cin, Cout), w.dtype)
    rows = []
    for rs in range(3):
        for cs in range(3):
            cols = []
            for py in range(2):
                ky = _K_OF[py][rs]
                for px in range(2):
                    kx = _K_OF[px][cs]
                    cols.append(zero_blk if (ky < 0 or kx < 0) else w_hwio[ky, kx])
            rows.append(jnp.concatenate(cols, axis=1))            # (Cin, 4*Cout)
    w9 = jnp.concatenate(rows, axis=0)                            # (9*Cin, 4*Cout)
    w9 = jnp.pad(w9, ((0, 0), (0, P4 - C4))).astype(jnp.bfloat16)

    # ---------------- pass 1: phase-folded deconv + per-sample BN sums ----------------
    p1_blocks = (HW * Cin * 2 + 9 * Cin * P4 * 2 + HW * P4 * 2 + 2 * P4 * 4)
    p1_scratch = (H + 2) * (W + 2) * Cin * 2 + HW * (9 * Cin * 2 + P4 * 4)
    raw, sums = pl.pallas_call(
        upblock_conv_kernel,
        out_shape=(jax.ShapeDtypeStruct((N, HW, P4), jnp.bfloat16),
                   jax.ShapeDtypeStruct((N, 2, P4), jnp.float32)),
        grid=(N,),
        in_specs=[
            pl.BlockSpec((1, H, W, Cin), lambda n: (n, 0, 0, 0)),
            pl.BlockSpec((9 * Cin, P4), lambda n: (0, 0)),
        ],
        out_specs=(
            pl.BlockSpec((1, HW, P4), lambda n: (n, 0, 0)),
            pl.BlockSpec((1, 2, P4), lambda n: (n, 0, 0)),
        ),
        scratch_shapes=[pltpu.VMEM((H + 2, W + 2, Cin), jnp.bfloat16)],
        compiler_params=pltpu.CompilerParams(
            dimension_semantics=("parallel",),
            vmem_limit_bytes=_vmem_limit_bytes(p1_blocks, p1_scratch)),
        cost_estimate=pl.CostEstimate(
            flops=2 * N * HW * (9 * Cin) * P4,
            transcendentals=0,
            bytes_accessed=int(x.size) * 2 + 9 * Cin * P4 * 2
                           + N * HW * P4 * 2 + N * 2 * P4 * 4),
    )(x, w9)

    # Tiny host-side BN stat combine (keeps the batch grid axis parallel).
    # TODO(synk): E[x^2]-mean^2 in f32 can cancel for very large N*H*W or large means;
    #             switch to a centered (per-sample mean) accumulation if that regime matters.
    cnt = 4.0 * N * H * W
    tot = sums.sum(axis=0)[:, :C4].reshape(2, 4, Cout).sum(axis=1)    # (2, Cout)
    mean = tot[0] / cnt
    var = jnp.maximum(tot[1] / cnt - mean * mean, 0.0)
    scale = gamma.astype(jnp.float32) * jax.lax.rsqrt(var + eps)      # (Cout,)
    shift = beta.astype(jnp.float32) - mean * scale
    scale4 = jnp.pad(jnp.tile(scale, 4), (0, P4 - C4)).reshape(1, P4)
    shift4 = jnp.pad(jnp.tile(shift, 4), (0, P4 - C4)).reshape(1, P4)

    # ---------------- pass 2: BN affine + ReLU (elementwise, spatially tiled) ----------
    bR = _choose_row_block(HW, P4)
    nR = HW // bR
    p2_blocks = bR * P4 * (2 + 4) + 2 * P4 * 4
    out_p2 = pl.pallas_call(
        upblock_bn_relu_kernel,
        out_shape=jax.ShapeDtypeStruct((N, HW, P4), jnp.float32),
        grid=(N, nR),
        in_specs=[
            pl.BlockSpec((1, bR, P4), lambda n, r: (n, r, 0)),
            pl.BlockSpec((1, P4), lambda n, r: (0, 0)),
            pl.BlockSpec((1, P4), lambda n, r: (0, 0)),
        ],
        out_specs=pl.BlockSpec((1, bR, P4), lambda n, r: (n, r, 0)),
        compiler_params=pltpu.CompilerParams(
            dimension_semantics=("parallel", "parallel"),
            vmem_limit_bytes=_vmem_limit_bytes(p2_blocks)),
        cost_estimate=pl.CostEstimate(
            flops=3 * N * HW * P4,
            transcendentals=0,
            bytes_accessed=N * HW * P4 * (2 + 4) + 2 * P4 * 4),
    )(raw, scale4, shift4)

    # Phase de-interleave + NCHW in ONE fused slice+transpose:
    # lanes (py, px, c) at position (m, mx)  ->  output[n, c, 2m+py, 2mx+px].
    y = out_p2[..., :C4].reshape(N, H, W, 2, 2, Cout)
    y = jnp.transpose(y, (0, 5, 1, 3, 2, 4))                      # (N, Cout, H, 2, W, 2)
    return y.reshape(N, Cout, 2 * H, 2 * W)


def reference_numpy(x, w, gamma, beta, eps=EPS):
    """Direct float64 reference: ConvTranspose2d(k=4,s=2,p=1) + training-mode BN + ReLU."""
    x = np.asarray(x, np.float64)
    w = np.asarray(w, np.float64)
    N, Cin, H, W = x.shape
    Cout = w.shape[1]
    Ho, Wo = 2 * H, 2 * W
    y = np.zeros((N, Cout, Ho, Wo), np.float64)
    for iy in range(H):
        for ix in range(W):
            for ky in range(4):
                oy = 2 * iy + ky - 1
                if not (0 <= oy < Ho):
                    continue
                for kx in range(4):
                    ox = 2 * ix + kx - 1
                    if not (0 <= ox < Wo):
                        continue
                    y[:, :, oy, ox] += np.einsum('nc,cd->nd', x[:, :, iy, ix], w[:, :, ky, kx])
    mean = y.mean(axis=(0, 2, 3))
    var = y.var(axis=(0, 2, 3))  # biased, as PyTorch BN uses for normalization
    yn = (y - mean[None, :, None, None]) / np.sqrt(var[None, :, None, None] + eps)
    yn = yn * np.asarray(gamma, np.float64)[None, :, None, None] \
         + np.asarray(beta, np.float64)[None, :, None, None]
    return np.maximum(yn, 0.0)


if __name__ == "__main__":
    N, Cin, Cout, H, W = 2, 4, 8, 16, 16

    key = jax.random.PRNGKey(0)
    kx, kw, kg, kb = jax.random.split(key, 4)
    x = jax.random.normal(kx, (N, Cin, H, W), jnp.float32)
    # ConvTranspose2d weight shape in PyTorch: (in_ch, out_ch, kH, kW); DCGAN-style init.
    w = 0.05 * jax.random.normal(kw, (Cin, Cout, 4, 4), jnp.float32)
    gamma = 1.0 + 0.1 * jax.random.normal(kg, (Cout,), jnp.float32)
    beta = 0.1 * jax.random.normal(kb, (Cout,), jnp.float32)

    upblock = jax.jit(upblock_forward)
    y = jax.block_until_ready(upblock(x, w, gamma, beta))

    y_ref = reference_numpy(np.array(x), np.array(w), np.array(gamma), np.array(beta))
    # Tolerance accounts for bf16 MXU operands + bf16 intermediate (f32 accumulation & stats).
    np.testing.assert_allclose(np.array(y), y_ref, atol=4e-2, rtol=4e-2)
    assert y.shape == (N, Cout, 2 * H, 2 * W)

    print("KERNEL_OK")
</pallas_src>

<mosaic_0001>
module attributes {stable_mosaic.version = 11 : i64} {
  func.func @upblock_conv_kernel(%arg0: i32, %arg1: memref<1x16x16x4xbf16, #tpu.memory_space<vmem>>, %arg2: memref<36x128xbf16, #tpu.memory_space<vmem>>, %arg3: memref<1x256x128xbf16, #tpu.memory_space<vmem>>, %arg4: memref<1x2x128xf32, #tpu.memory_space<vmem>>, %arg5: memref<18x18x4xbf16, #tpu.memory_space<vmem>>) attributes {dimension_semantics = [#tpu.dimension_semantics<parallel>], iteration_bounds = array<i64: 2>, scalar_prefetch = 0 : i64, scratch_operands = 1 : i64, tpu.core_type = #tpu.core_type<tc>, window_params = [{transform_indices = @transform_0, window_bounds = array<i64: 1, 16, 16, 4>}, {pipeline_mode = #tpu.pipeline_mode<synchronous>, transform_indices = @transform_1, window_bounds = array<i64: 36, 128>}, {transform_indices = @transform_2, window_bounds = array<i64: 1, 256, 128>}, {transform_indices = @transform_3, window_bounds = array<i64: 1, 2, 128>}]} {
    %cst = arith.constant 0.000000e+00 : bf16
    %0 = vector.broadcast %cst : bf16 to vector<1x18x4xbf16>
    %cst_0 = arith.constant 0.000000e+00 : bf16
    %1 = vector.broadcast %cst_0 : bf16 to vector<18x1x4xbf16>
    %c0 = arith.constant 0 : index
    %c0_1 = arith.constant 0 : index
    %c0_2 = arith.constant 0 : index
    %2 = vector.load %arg5[%c0, %c0_1, %c0_2] : memref<18x18x4xbf16, #tpu.memory_space<vmem>>, vector<1x18x4xbf16>
    tpu.vector_store %arg5[%c0, %c0_1, %c0_2], %0 {strides = array<i32>} : memref<18x18x4xbf16, #tpu.memory_space<vmem>>, vector<1x18x4xbf16>,
    %c17 = arith.constant 17 : index
    %c0_3 = arith.constant 0 : index
    %c0_4 = arith.constant 0 : index
    %3 = vector.load %arg5[%c17, %c0_3, %c0_4] : memref<18x18x4xbf16, #tpu.memory_space<vmem>>, vector<1x18x4xbf16>
    tpu.vector_store %arg5[%c17, %c0_3, %c0_4], %0 {strides = array<i32>} : memref<18x18x4xbf16, #tpu.memory_space<vmem>>, vector<1x18x4xbf16>,
    %c0_5 = arith.constant 0 : index
    %c0_6 = arith.constant 0 : index
    %c0_7 = arith.constant 0 : index
    %4 = vector.load %arg5[%c0_5, %c0_6, %c0_7] : memref<18x18x4xbf16, #tpu.memory_space<vmem>>, vector<18x1x4xbf16>
    tpu.vector_store %arg5[%c0_5, %c0_6, %c0_7], %1 {strides = array<i32>} : memref<18x18x4xbf16, #tpu.memory_space<vmem>>, vector<18x1x4xbf16>,
    %c0_8 = arith.constant 0 : index
    %c17_9 = arith.constant 17 : index
    %c0_10 = arith.constant 0 : index
    %5 = vector.load %arg5[%c0_8, %c17_9, %c0_10] : memref<18x18x4xbf16, #tpu.memory_space<vmem>>, vector<18x1x4xbf16>
    tpu.vector_store %arg5[%c0_8, %c17_9, %c0_10], %1 {strides = array<i32>} : memref<18x18x4xbf16, #tpu.memory_space<vmem>>, vector<18x1x4xbf16>,
    %c0_11 = arith.constant 0 : index
    %c0_12 = arith.constant 0 : index
    %c0_13 = arith.constant 0 : index
    %c0_14 = arith.constant 0 : index
    %6 = vector.load %arg1[%c0_11, %c0_12, %c0_13, %c0_14] : memref<1x16x16x4xbf16, #tpu.memory_space<vmem>>, vector<1x16x16x4xbf16>
    %7 = vector.shape_cast %6 : vector<1x16x16x4xbf16> to vector<16x16x4xbf16>
    %c1 = arith.constant 1 : index
    %c1_15 = arith.constant 1 : index
    %c0_16 = arith.constant 0 : index
    %8 = vector.load %arg5[%c1, %c1_15, %c0_16] : memref<18x18x4xbf16, #tpu.memory_space<vmem>>, vector<16x16x4xbf16>
    tpu.vector_store %arg5[%c1, %c1_15, %c0_16], %7 {strides = array<i32>} : memref<18x18x4xbf16, #tpu.memory_space<vmem>>, vector<16x16x4xbf16>,
    %c0_17 = arith.constant 0 : index
    %c0_18 = arith.constant 0 : index
    %c0_19 = arith.constant 0 : index
    %9 = vector.load %arg5[%c0_17, %c0_18, %c0_19] : memref<18x18x4xbf16, #tpu.memory_space<vmem>>, vector<16x16x4xbf16>
    %10 = vector.shape_cast %9 : vector<16x16x4xbf16> to vector<256x4xbf16>
    %c0_20 = arith.constant 0 : index
    %c1_21 = arith.constant 1 : index
    %c0_22 = arith.constant 0 : index
    %11 = vector.load %arg5[%c0_20, %c1_21, %c0_22] : memref<18x18x4xbf16, #tpu.memory_space<vmem>>, vector<16x16x4xbf16>
    %12 = vector.shape_cast %11 : vector<16x16x4xbf16> to vector<256x4xbf16>
    %c0_23 = arith.constant 0 : index
    %c2 = arith.constant 2 : index
    %c0_24 = arith.constant 0 : index
    %13 = vector.load %arg5[%c0_23, %c2, %c0_24] : memref<18x18x4xbf16, #tpu.memory_space<vmem>>, vector<16x16x4xbf16>
    %14 = vector.shape_cast %13 : vector<16x16x4xbf16> to vector<256x4xbf16>
    %c1_25 = arith.constant 1 : index
    %c0_26 = arith.constant 0 : index
    %c0_27 = arith.constant 0 : index
    %15 = vector.load %arg5[%c1_25, %c0_26, %c0_27] : memref<18x18x4xbf16, #tpu.memory_space<vmem>>, vector<16x16x4xbf16>
    %16 = vector.shape_cast %15 : vector<16x16x4xbf16> to vector<256x4xbf16>
    %c1_28 = arith.constant 1 : index
    %c1_29 = arith.constant 1 : index
    %c0_30 = arith.constant 0 : index
    %17 = vector.load %arg5[%c1_28, %c1_29, %c0_30] : memref<18x18x4xbf16, #tpu.memory_space<vmem>>, vector<16x16x4xbf16>
    %18 = vector.shape_cast %17 : vector<16x16x4xbf16> to vector<256x4xbf16>
    %c1_31 = arith.constant 1 : index
    %c2_32 = arith.constant 2 : index
    %c0_33 = arith.constant 0 : index
    %19 = vector.load %arg5[%c1_31, %c2_32, %c0_33] : memref<18x18x4xbf16, #tpu.memory_space<vmem>>, vector<16x16x4xbf16>
    %20 = vector.shape_cast %19 : vector<16x16x4xbf16> to vector<256x4xbf16>
    %c2_34 = arith.constant 2 : index
    %c0_35 = arith.constant 0 : index
    %c0_36 = arith.constant 0 : index
    %21 = vector.load %arg5[%c2_34, %c0_35, %c0_36] : memref<18x18x4xbf16, #tpu.memory_space<vmem>>, vector<16x16x4xbf16>
    %22 = vector.shape_cast %21 : vector<16x16x4xbf16> to vector<256x4xbf16>
    %c2_37 = arith.constant 2 : index
    %c1_38 = arith.constant 1 : index
    %c0_39 = arith.constant 0 : index
    %23 = vector.load %arg5[%c2_37, %c1_38, %c0_39] : memref<18x18x4xbf16, #tpu.memory_space<vmem>>, vector<16x16x4xbf16>
    %24 = vector.shape_cast %23 : vector<16x16x4xbf16> to vector<256x4xbf16>
    %c2_40 = arith.constant 2 : index
    %c2_41 = arith.constant 2 : index
    %c0_42 = arith.constant 0 : index
    %25 = vector.load %arg5[%c2_40, %c2_41, %c0_42] : memref<18x18x4xbf16, #tpu.memory_space<vmem>>, vector<16x16x4xbf16>
    %26 = vector.shape_cast %25 : vector<16x16x4xbf16> to vector<256x4xbf16>
    %27 = tpu.concatenate %10, %12, %14, %16, %18, %20, %22, %24, %26 in 1 : vector<256x4xbf16>, vector<256x4xbf16>, vector<256x4xbf16>, vector<256x4xbf16>, vector<256x4xbf16>, vector<256x4xbf16>, vector<256x4xbf16>, vector<256x4xbf16>, vector<256x4xbf16> -> vector<256x36xbf16>
    %c0_43 = arith.constant 0 : index
    %c0_44 = arith.constant 0 : index
    %28 = vector.load %arg2[%c0_43, %c0_44] : memref<36x128xbf16, #tpu.memory_space<vmem>>, vector<36x128xbf16>
    %cst_45 = arith.constant dense<0.000000e+00> : vector<256x128xf32>
    %29 = tpu.matmul %27, %28, %cst_45 {dimension_numbers = #tpu.dot_dimension_numbers<[1], [0], [0], [1], [0, 0, 1, 1], [], []>} : vector<256x36xbf16>, vector<36x128xbf16>, vector<256x128xf32> -> vector<256x128xf32>
    %cst_46 = arith.constant dense<0.000000e+00> : vector<128xf32>
    %30 = vector.multi_reduction <add>, %29, %cst_46 [0] : vector<256x128xf32> to vector<128xf32>
    %31 = vector.shape_cast %30 : vector<128xf32> to vector<1x128xf32>
    %c0_47 = arith.constant 0 : index
    %c0_48 = arith.constant 0 : index
    %c0_49 = arith.constant 0 : index
    %32 = vector.load %arg4[%c0_47, %c0_48, %c0_49] : memref<1x2x128xf32, #tpu.memory_space<vmem>>, vector<1x1x128xf32>
    %33 = vector.shape_cast %32 : vector<1x1x128xf32> to vector<1x128xf32>
    %34 = vector.shape_cast %31 : vector<1x128xf32> to vector<1x1x128xf32>
    tpu.vector_store %arg4[%c0_47, %c0_48, %c0_49], %34 {strides = array<i32>} : memref<1x2x128xf32, #tpu.memory_space<vmem>>, vector<1x1x128xf32>,
    %35 = arith.mulf %29, %29 : vector<256x128xf32>
    %cst_50 = arith.constant dense<0.000000e+00> : vector<128xf32>
    %36 = vector.multi_reduction <add>, %35, %cst_50 [0] : vector<256x128xf32> to vector<128xf32>
    %37 = vector.shape_cast %36 : vector<128xf32> to vector<1x128xf32>
    %c0_51 = arith.constant 0 : index
    %c1_52 = arith.constant 1 : index
    %c0_53 = arith.constant 0 : index
    %38 = vector.load %arg4[%c0_51, %c1_52, %c0_53] : memref<1x2x128xf32, #tpu.memory_space<vmem>>, vector<1x1x128xf32>
    %39 = vector.shape_cast %38 : vector<1x1x128xf32> to vector<1x128xf32>
    %40 = vector.shape_cast %37 : vector<1x128xf32> to vector<1x1x128xf32>
    tpu.vector_store %arg4[%c0_51, %c1_52, %c0_53], %40 {strides = array<i32>} : memref<1x2x128xf32, #tpu.memory_space<vmem>>, vector<1x1x128xf32>,
    %41 = arith.truncf %29 : vector<256x128xf32> to vector<256x128xbf16>
    %c0_54 = arith.constant 0 : index
    %c0_55 = arith.constant 0 : index
    %c0_56 = arith.constant 0 : index
    %42 = vector.load %arg3[%c0_54, %c0_55, %c0_56] : memref<1x256x128xbf16, #tpu.memory_space<vmem>>, vector<1x256x128xbf16>
    %43 = vector.shape_cast %42 : vector<1x256x128xbf16> to vector<256x128xbf16>
    %44 = vector.shape_cast %41 : vector<256x128xbf16> to vector<1x256x128xbf16>
    tpu.vector_store %arg3[%c0_54, %c0_55, %c0_56], %44 {strides = array<i32>} : memref<1x256x128xbf16, #tpu.memory_space<vmem>>, vector<1x256x128xbf16>,
    return
  }
  func.func @transform_0(%arg0: i32) -> (i32, i32, i32, i32) {
    %c0_i32 = arith.constant 0 : i32
    %c0_i32_0 = arith.constant 0 : i32
    %c0_i32_1 = arith.constant 0 : i32
    %c0_i32_2 = arith.constant 0 : i32
    return %arg0, %c0_i32, %c0_i32_0, %c0_i32_1 : i32, i32, i32, i32
  }
  func.func @transform_1(%arg0: i32) -> (i32, i32) {
    %c0_i32 = arith.constant 0 : i32
    %c0_i32_0 = arith.constant 0 : i32
    %c0_i32_1 = arith.constant 0 : i32
    return %c0_i32, %c0_i32_0 : i32, i32
  }
  func.func @transform_2(%arg0: i32) -> (i32, i32, i32) {
    %c0_i32 = arith.constant 0 : i32
    %c0_i32_0 = arith.constant 0 : i32
    %c0_i32_1 = arith.constant 0 : i32
    return %arg0, %c0_i32, %c0_i32_0 : i32, i32, i32
  }
  func.func @transform_3(%arg0: i32) -> (i32, i32, i32) {
    %c0_i32 = arith.constant 0 : i32
    %c0_i32_0 = arith.constant 0 : i32
    %c0_i32_1 = arith.constant 0 : i32
    return %arg0, %c0_i32, %c0_i32_0 : i32, i32, i32
  }
}

module attributes {stable_mosaic.version = 11 : i64} {
  func.func @upblock_bn_relu_kernel(%arg0: i32, %arg1: i32, %arg2: memref<1x256x128xbf16, #tpu.memory_space<vmem>>, %arg3: memref<1x128xf32, #tpu.memory_space<vmem>>, %arg4: memref<1x128xf32, #tpu.memory_space<vmem>>, %arg5: memref<1x256x128xf32, #tpu.memory_space<vmem>>) attributes {dimension_semantics = [#tpu.dimension_semantics<parallel>, #tpu.dimension_semantics<parallel>], iteration_bounds = array<i64: 2, 1>, scalar_prefetch = 0 : i64, scratch_operands = 0 : i64, tpu.core_type = #tpu.core_type<tc>, window_params = [{transform_indices = @transform_0, window_bounds = array<i64: 1, 256, 128>}, {pipeline_mode = #tpu.pipeline_mode<synchronous>, transform_indices = @transform_1, window_bounds = array<i64: 1, 128>}, {pipeline_mode = #tpu.pipeline_mode<synchronous>, transform_indices = @transform_2, window_bounds = array<i64: 1, 128>}, {transform_indices = @transform_3, window_bounds = array<i64: 1, 256, 128>}]} {
    %c0 = arith.constant 0 : index
    %c0_0 = arith.constant 0 : index
    %c0_1 = arith.constant 0 : index
    %0 = vector.load %arg2[%c0, %c0_0, %c0_1] : memref<1x256x128xbf16, #tpu.memory_space<vmem>>, vector<1x256x128xbf16>
    %1 = vector.shape_cast %0 : vector<1x256x128xbf16> to vector<256x128xbf16>
    %2 = arith.extf %1 : vector<256x128xbf16> to vector<256x128xf32>
    %c0_2 = arith.constant 0 : index
    %c0_3 = arith.constant 0 : index
    %3 = vector.load %arg3[%c0_2, %c0_3] : memref<1x128xf32, #tpu.memory_space<vmem>>, vector<1x128xf32>
    %4 = vector.broadcast %3 : vector<1x128xf32> to vector<256x128xf32>
    %5 = arith.mulf %2, %4 : vector<256x128xf32>
    %c0_4 = arith.constant 0 : index
    %c0_5 = arith.constant 0 : index
    %6 = vector.load %arg4[%c0_4, %c0_5] : memref<1x128xf32, #tpu.memory_space<vmem>>, vector<1x128xf32>
    %7 = vector.broadcast %6 : vector<1x128xf32> to vector<256x128xf32>
    %8 = arith.addf %5, %7 : vector<256x128xf32>
    %cst = arith.constant 0.000000e+00 : f32
    %9 = vector.broadcast %cst : f32 to vector<256x128xf32>
    %10 = arith.maximumf %8, %9 : vector<256x128xf32>
    %c0_6 = arith.constant 0 : index
    %c0_7 = arith.constant 0 : index
    %c0_8 = arith.constant 0 : index
    %11 = vector.load %arg5[%c0_6, %c0_7, %c0_8] : memref<1x256x128xf32, #tpu.memory_space<vmem>>, vector<1x256x128xf32>
    %12 = vector.shape_cast %11 : vector<1x256x128xf32> to vector<256x128xf32>
    %13 = vector.shape_cast %10 : vector<256x128xf32> to vector<1x256x128xf32>
    tpu.vector_store %arg5[%c0_6, %c0_7, %c0_8], %13 {strides = array<i32>} : memref<1x256x128xf32, #tpu.memory_space<vmem>>, vector<1x256x128xf32>,
    return
  }
  func.func @transform_0(%arg0: i32, %arg1: i32) -> (i32, i32, i32) {
    %c0_i32 = arith.constant 0 : i32
    %c0_i32_0 = arith.constant 0 : i32
    return %arg0, %arg1, %c0_i32 : i32, i32, i32
  }
  func.func @transform_1(%arg0: i32, %arg1: i32) -> (i32, i32) {
    %c0_i32 = arith.constant 0 : i32
    %c0_i32_0 = arith.constant 0 : i32
    %c0_i32_1 = arith.constant 0 : i32
    return %c0_i32, %c0_i32_0 : i32, i32
  }
  func.func @transform_2(%arg0: i32, %arg1: i32) -> (i32, i32) {
    %c0_i32 = arith.constant 0 : i32
    %c0_i32_0 = arith.constant 0 : i32
    %c0_i32_1 = arith.constant 0 : i32
    return %c0_i32, %c0_i32_0 : i32, i32
  }
  func.func @transform_3(%arg0: i32, %arg1: i32) -> (i32, i32, i32) {
    %c0_i32 = arith.constant 0 : i32
    %c0_i32_0 = arith.constant 0 : i32
    return %arg0, %arg1, %c0_i32 : i32, i32, i32
  }
}

</mosaic_0001>

<llo_original>
// kernel: tile.18
$region0: #{tile.18}
  #allocation0 [shape = 's32[1]{0}', space=sflag, size = 0x4, scoped, tag = 'scoped memory for tile.18']
  %s0 = inlined_call_operand.vmem [shape: f32[8], index: 0, kind: input, shape index: {}]
  %s1 = inlined_call_operand.vmem [shape: f32[4,8], index: 1, kind: output, shape index: {}]
  // Predicated region
  $region2: #{tile.18} parent=0 // pred_check
    _
  $region3: #{tile.18} parent=0 // pred_check_branch
    %3 = sbr.rel (0) target = $region5
  $region4: #{tile.18} parent=0 // pred_region
    _
  $region5: #{tile.18} parent=0 // pred_fallthru
    _
  %v4 = vld [vmem:[%s0] ss:$0 sm:$0xff]
  %5 = vst [vmem:[%s1] sm:$0xf] %v4

// kernel: tile.19
$region0: #{tile.19}
  %s0 = inlined_call_operand.vmem [shape: f32[4,8], index: 0, kind: input, shape index: {}]
  %s1 = inlined_call_operand.vmem [shape: f32[32], index: 1, kind: output, shape index: {}]
  $region1: #{tile.19} parent=0
    #allocation0 [shape = 'u8[4096]{0}', space=vmem, size = 0x1000, scoped, tag = 'scoped mem for output reshape']
    #allocation1 [shape = 'u8[4096]{0}', space=vmem, size = 0x1000, scoped, tag = 'scoped mem for input reshape']
    %s3 = sshll.u32 1, 4
    %s4 = ssub.s32 %s3, 1
    %v5 = vld [vmem:[%s0] sm:%s4]
    %6 = vst [vmem:[#allocation1] sm:%s4] %v5
    %v7 = vld [vmem:[#allocation1] sm:$0x1]
    %vm8 = vcmask 64512
    %9 = vst.msk [vmem:[#allocation0] sm:$0x1] %vm8, %v7
    %s10 = scalar_lea.vmem [#allocation1], 3
    %v11 = vld [vmem:[%s10] sm:$0x1]
    %12 = vrot.lane.b32.xlu0 %v11, 24
    %v13 = vpop.permute.xlu0 %12
    %vm14 = vcmask 261312
    %15 = vst.msk [vmem:[#allocation0] sm:$0x1] %vm14, %v13
    %s16 = scalar_lea.vmem [#allocation1], 2
    %v17 = vld [vmem:[%s16] sm:$0x1]
    %18 = vrot.lane.b32.xlu0 %v17, 16
    %v19 = vpop.permute.xlu0 %18
    %vm20 = vcmask 195712
    %21 = vst.msk [vmem:[#allocation0] sm:$0x1] %vm20, %v19
    %s22 = scalar_lea.vmem [#allocation1], 1
    %v23 = vld [vmem:[%s22] sm:$0x1]
    %24 = vrot.lane.b32.xlu0 %v23, 8
    %v25 = vpop.permute.xlu0 %24
    %vm26 = vcmask 130112
    %27 = vst.msk [vmem:[#allocation0] sm:$0x1] %vm26, %v25
    %s29 = sshll.u32 1, 1
    %s30 = ssub.s32 %s29, 1
    %v32 = vld [vmem:[#allocation0] sm:%s30]
    %s33 = sshll.u32 1, 1
    %s34 = ssub.s32 %s33, 1
    %35 = vst [vmem:[%s1] sm:%s34] %v32

// kernel: upblock_forward.3
$region0: #{upblock_forward.3}
  #allocation0 [shape = 'u32[]', space=smem, size = 0x4, offset = 0x4, fixed_abs, tag = 'smem constant byte address 0x4 - core index']
  #allocation1 [shape = 'u32[144,128]{1,0:T(1,128)}', space=vmem, size = 0x12000, scoped, tag = 'internal scratch']
  %s0 = inlined_call_operand.vmem [shape: bf16[2,256,128], index: 0, kind: input, shape index: {}]
  %s1 = inlined_call_operand.vmem [shape: f32[1,128], index: 1, kind: input, shape index: {}]
  %s2 = inlined_call_operand.vmem [shape: f32[1,128], index: 2, kind: input, shape index: {}]
  %s3 = inlined_call_operand.vmem [shape: f32[2,256,128], index: 3, kind: output, shape index: {}]
  %s4 = sld [smem:[#allocation0]]
  $region45: #{upblock_forward.3} parent=0
    _
  %s6 = ssub.s32 1, %s4
  %s7 = scalar_select 0, %s6, %s4
  loop: start=0, step=1, limit=4
  $region2: #{upblock_forward.3} parent=0 // loop_pre_header
    _
  $region3: #{upblock_forward.3} parent=0 // loop_header
    %s9 = sphi 0, %s13
    %p10 = scmp.ge.s32.totalorder %s9, 4
    %s16 = sphi 0, %s28
    %s17 = sphi 0, %s24
    %s18 = sphi 0, %s16
    %s19 = sphi 0, %s17
    %s20 = sphi 0, %s18
    %s21 = sphi 0, %s19
    %s33 = sphi 0, %s35
    %s36 = sphi 0, %s33
    %s37 = sphi 0, %s36
    %s53 = sphi 0, %s37
    %s57 = sphi 0, %s57
    %s59 = sphi 0, %s57
    %s60 = sphi 0, %s59
    %s74 = sphi 0, %s60
    %s78 = sphi 0, %s78
    %s80 = sphi 0, %s78
    %s81 = sphi 0, %s80
    %s95 = sphi 0, %s81
    %s103 = sphi 0, %s105
    %s106 = sphi 0, %s103
    %s107 = sphi 0, %s106
    %s123 = sphi 0, %s107
  $region4: #{upblock_forward.3} parent=0 // loop_header_branch
    %12 = sbr.rel (%p10) target = $region8
  $region5: #{upblock_forward.3} parent=0 // loop_body
    %s14 = ssub.s32 %s9, 1
    %s15 = ssub.s32 %s9, 2
    %s22 = sadd.s32 1, %s17
    %p23 = scmp.ge.s32.totalorder %s22, 1
    %s24 = scalar_select %p23, 0, %s22
    %s25 = sadd.s32 1, %s16
    %s26 = scalar_select %p23, %s25, %s16
    %p27 = scmp.ge.s32.totalorder %s26, 2
    %s28 = scalar_select %p27, 0, %s26
    %s29 = ssub.s32 %s16, %s28
    %s30 = ssub.s32 %s17, %s24
    %s31 = sor.u32 %s29, %s30
    %p32 = scmp.eq.s32.totalorder %s31, 0
    %s34 = sadd.s32 %s33, 1
    %s35 = scalar_select %p32, %s33, %s34
    %p38 = pneg %p32
    %p39 = scmp.eq.s32.totalorder %s9, 1
    %p40 = por %p38, %p39
    %p41 = scmp.ne.s32.totalorder %s33, %s36
    %p42 = scmp.eq.s32.totalorder %s9, 0
    %p43 = por %p41, %p42
    %p44 = scmp.ne.s32.totalorder %s33, %s36
    %p45 = scmp.eq.s32.totalorder %s14, 1
    %p46 = por %p44, %p45
    %p47 = scmp.ne.s32.totalorder %s36, %s37
    %p48 = scmp.eq.s32.totalorder %s14, 0
    %p49 = por %p47, %p48
    %p50 = scmp.ne.s32.totalorder %s36, %s37
    %p51 = scmp.eq.s32.totalorder %s15, 1
    %p52 = por %p50, %p51
    %p54 = scmp.ne.s32.totalorder %s37, %s53
    %p55 = scmp.eq.s32.totalorder %s15, 0
    %p56 = por %p54, %p55
    %s58 = sadd.s32 %s57, 1
    %p61 = scmp.eq.s32.totalorder %s9, 1
    %p62 = scmp.ne.s32.totalorder %s57, %s59
    %p63 = scmp.eq.s32.totalorder %s9, 0
    %p64 = por %p62, %p63
    %p65 = scmp.ne.s32.totalorder %s57, %s59
    %p66 = scmp.eq.s32.totalorder %s14, 1
    %p67 = por %p65, %p66
    %p68 = scmp.ne.s32.totalorder %s59, %s60
    %p69 = scmp.eq.s32.totalorder %s14, 0
    %p70 = por %p68, %p69
    %p71 = scmp.ne.s32.totalorder %s59, %s60
    %p72 = scmp.eq.s32.totalorder %s15, 1
    %p73 = por %p71, %p72
    %p75 = scmp.ne.s32.totalorder %s60, %s74
    %p76 = scmp.eq.s32.totalorder %s15, 0
    %p77 = por %p75, %p76
    %s79 = sadd.s32 %s78, 1
    %p82 = scmp.eq.s32.totalorder %s9, 1
    %p83 = scmp.ne.s32.totalorder %s78, %s80
    %p84 = scmp.eq.s32.totalorder %s9, 0
    %p85 = por %p83, %p84
    %p86 = scmp.ne.s32.totalorder %s78, %s80
    %p87 = scmp.eq.s32.totalorder %s14, 1
    %p88 = por %p86, %p87
    %p89 = scmp.ne.s32.totalorder %s80, %s81
    %p90 = scmp.eq.s32.totalorder %s14, 0
    %p91 = por %p89, %p90
    %p92 = scmp.ne.s32.totalorder %s80, %s81
    %p93 = scmp.eq.s32.totalorder %s15, 1
    %p94 = por %p92, %p93
    %p96 = scmp.ne.s32.totalorder %s81, %s95
    %p97 = scmp.eq.s32.totalorder %s15, 0
    %p98 = por %p96, %p97
    %s99 = ssub.s32 %s16, %s28
    %s100 = ssub.s32 %s17, %s24
    %s101 = sor.u32 %s99, %s100
    %p102 = scmp.eq.s32.totalorder %s101, 0
    %s104 = sadd.s32 %s103, 1
    %s105 = scalar_select %p102, %s103, %s104
    %p108 = pneg %p102
    %p109 = scmp.eq.s32.totalorder %s9, 1
    %p110 = por %p108, %p109
    %p111 = scmp.ne.s32.totalorder %s103, %s106
    %p112 = scmp.eq.s32.totalorder %s9, 0
    %p113 = por %p111, %p112
    %p114 = scmp.ne.s32.totalorder %s103, %s106
    %p115 = scmp.eq.s32.totalorder %s14, 1
    %p116 = por %p114, %p115
    %p117 = scmp.ne.s32.totalorder %s106, %s107
    %p118 = scmp.eq.s32.totalorder %s14, 0
    %p119 = por %p117, %p118
    %p120 = scmp.ne.s32.totalorder %s106, %s107
    %p121 = scmp.eq.s32.totalorder %s15, 1
    %p122 = por %p120, %p121
    %p124 = scmp.ne.s32.totalorder %s107, %s123
    %p125 = scmp.eq.s32.totalorder %s15, 0
    %p126 = por %p124, %p125
    %p127 = scmp.le.s32.totalorder 1, %s9
    %p128 = scmp.lt.s32.totalorder %s9, 3
    %p129 = pnand %p127, %p128
    %p130 = pneg %p129
    // Predicated region
    $region9: #{upblock_forward.3} parent=5 // pred_check
      _
    $region10: #{upblock_forward.3} parent=5 // pred_check_branch
      %132 = sbr.rel (%p129) target = $region12
    $region11: #{upblock_forward.3} parent=5 // pred_region
      %s133 = ssub.s32 %s9, 1
      // Predicated region
      $region13: #{upblock_forward.3} parent=11 // pred_check
        %p134 = pneg %p70
      $region14: #{upblock_forward.3} parent=11 // pred_check_branch
        %136 = sbr.rel (%p134) target = $region16
      $region15: #{upblock_forward.3} parent=11 // pred_region
        _
      $region16: #{upblock_forward.3} parent=11 // pred_fallthru
        _
      // Predicated region
      $region17: #{upblock_forward.3} parent=11 // pred_check
        %p137 = pneg %p91
      $region18: #{upblock_forward.3} parent=11 // pred_check_branch
        %139 = sbr.rel (%p137) target = $region20
      $region19: #{upblock_forward.3} parent=11 // pred_region
        _
      $region20: #{upblock_forward.3} parent=11 // pred_fallthru
        _
    $region12: #{upblock_forward.3} parent=5 // pred_fallthru
      _
    %p140 = scmp.lt.s32.totalorder %s9, 2
    // Predicated region
    $region21: #{upblock_forward.3} parent=5 // pred_check
      %p141 = pneg %p140
    $region22: #{upblock_forward.3} parent=5 // pred_check_branch
      %143 = sbr.rel (%p141) target = $region24
    $region23: #{upblock_forward.3} parent=5 // pred_region
      // Predicated region
      $region25: #{upblock_forward.3} parent=23 // pred_check
        %p144 = pneg %p43
      $region26: #{upblock_forward.3} parent=23 // pred_check_branch
        %146 = sbr.rel (%p144) target = $region28
      $region27: #{upblock_forward.3} parent=23 // pred_region
        %s147 = smul.u32 32, %s17
        %p148 = scmp.lt.s32.totalorder %s16, 1
        %s149 = scalar_select %p148, %s16, 1
        %p150 = scmp.lt.s32.totalorder %s147, 31
        %s151 = scalar_select %p150, %s147, 31
        %s152 = smul.addr %s149, 32
        %s153 = sadd.s32 %s151, %s152
        %s154 = smul.addr %s153, 4
        %s155 = scalar_lea.vmem %s0, %s154
        %s156 = smul.u32 32, %s17
      $region28: #{upblock_forward.3} parent=23 // pred_fallthru
        _
    $region24: #{upblock_forward.3} parent=5 // pred_fallthru
      _
    %p157 = scmp.le.s32.totalorder 1, %s9
    %p158 = scmp.lt.s32.totalorder %s9, 3
    %p159 = pnand %p157, %p158
    %p160 = pneg %p159
    // Predicated region
    $region29: #{upblock_forward.3} parent=5 // pred_check
      _
    $region30: #{upblock_forward.3} parent=5 // pred_check_branch
      %162 = sbr.rel (%p159) target = $region32
    $region31: #{upblock_forward.3} parent=5 // pred_region
      %s163 = ssub.s32 %s9, 1
      %s164 = smul.u32 32, %s19
      %p165 = scmp.lt.s32.totalorder %s18, 1
      %s166 = scalar_select %p165, %s18, 1
      %p167 = scmp.lt.s32.totalorder %s164, 31
      %s168 = scalar_select %p167, %s164, 31
      %s169 = smul.addr %s166, 32
      %s170 = sadd.s32 %s168, %s169
      %s171 = smul.addr %s170, 4
      %s172 = scalar_lea.vmem %s0, %s171
      %p173 = pneg %p49
      %p174 = pneg %p46
      %p175 = pneg %p70
      %p176 = pneg %p67
      %p177 = pneg %p91
      %p178 = pneg %p88
      %p179 = pneg %p119
      %p180 = pneg %p116
      %s181 = smul.u32 32, %s19
      %p182 = scmp.lt.s32.totalorder %s18, 1
      %s183 = scalar_select %p182, %s18, 1
      %p184 = scmp.lt.s32.totalorder %s181, 31
      %s185 = scalar_select %p184, %s181, 31
      %s186 = smul.addr %s183, 32
      %s187 = sadd.s32 %s185, %s186
      %s188 = smul.addr %s187, 8
      %s189 = scalar_lea.vmem %s3, %s188
      %s190 = smul.u32 32, %s19
      %p191 = scmp.lt.s32.totalorder %s18, 1
      %s192 = scalar_select %p191, %s18, 1
      %p193 = scmp.lt.s32.totalorder %s190, 31
      %s194 = scalar_select %p193, %s190, 31
      %s195 = smul.addr %s192, 32
      %s196 = sadd.s32 %s194, %s195
      %s197 = smul.addr %s196, 4
      %s198 = scalar_lea.vmem %s0, %s197
      %s199 = smul.u32 32, %s19
      %s200 = smul.u32 32, %s19
      %p201 = scmp.lt.s32.totalorder %s18, 1
      %s202 = scalar_select %p201, %s18, 1
      %p203 = scmp.lt.s32.totalorder %s200, 31
      %s204 = scalar_select %p203, %s200, 31
      %s205 = smul.addr %s202, 32
      %s206 = sadd.s32 %s204, %s205
      %s207 = smul.addr %s206, 8
      %s208 = scalar_lea.vmem %s3, %s207
      %s209 = smul.u32 32, %s19
      %v210 = vld [vmem:[%s198] sm:$0xf]
      %v211 = vld [vmem:[%s198 + $0x4] sm:$0xf]
      %v212 = vld [vmem:[%s198 + $0x8] sm:$0xf]
      %v213 = vld [vmem:[%s198 + $0xc] sm:$0xf]
      %v214 = vld [vmem:[%s198 + $0x10] sm:$0xf]
      %v215 = vld [vmem:[%s198 + $0x14] sm:$0xf]
      %v216 = vld [vmem:[%s198 + $0x18] sm:$0xf]
      %v217 = vld [vmem:[%s198 + $0x1c] sm:$0xf]
      %v218 = vld [vmem:[%s198 + $0x20] sm:$0xf]
      %v219 = vld [vmem:[%s198 + $0x24] sm:$0xf]
      %v220 = vld [vmem:[%s198 + $0x28] sm:$0xf]
      %v221 = vld [vmem:[%s198 + $0x2c] sm:$0xf]
      %v222 = vld [vmem:[%s198 + $0x30] sm:$0xf]
      %v223 = vld [vmem:[%s198 + $0x34] sm:$0xf]
      %v224 = vld [vmem:[%s198 + $0x38] sm:$0xf]
      %v225 = vld [vmem:[%s198 + $0x3c] sm:$0xf]
      %v226 = vld [vmem:[%s198 + $0x40] sm:$0xf]
      %v227 = vld [vmem:[%s198 + $0x44] sm:$0xf]
      %v228 = vld [vmem:[%s198 + $0x48] sm:$0xf]
      %v229 = vld [vmem:[%s198 + $0x4c] sm:$0xf]
      %v230 = vld [vmem:[%s198 + $0x50] sm:$0xf]
      %v231 = vld [vmem:[%s198 + $0x54] sm:$0xf]
      %v232 = vld [vmem:[%s198 + $0x58] sm:$0xf]
      %v233 = vld [vmem:[%s198 + $0x5c] sm:$0xf]
      %v234 = vld [vmem:[%s198 + $0x60] sm:$0xf]
      %v235 = vld [vmem:[%s198 + $0x64] sm:$0xf]
      %v236 = vld [vmem:[%s198 + $0x68] sm:$0xf]
      %v237 = vld [vmem:[%s198 + $0x6c] sm:$0xf]
      %v238 = vld [vmem:[%s198 + $0x70] sm:$0xf]
      %v239 = vld [vmem:[%s198 + $0x74] sm:$0xf]
      %v240 = vld [vmem:[%s198 + $0x78] sm:$0xf]
      %v241 = vld [vmem:[%s198 + $0x7c] sm:$0xf]
      %v242 = vunpack.c.l.bf16 %v210
      %v243 = vunpack.c.l.bf16 %v211
      %v244 = vunpack.c.l.bf16 %v212
      %v245 = vunpack.c.l.bf16 %v213
      %v246 = vunpack.c.l.bf16 %v214
      %v247 = vunpack.c.l.bf16 %v215
      %v248 = vunpack.c.l.bf16 %v216
      %v249 = vunpack.c.l.bf16 %v217
      %v250 = vunpack.c.l.bf16 %v218
      %v251 = vunpack.c.l.bf16 %v219
      %v252 = vunpack.c.l.bf16 %v220
      %v253 = vunpack.c.l.bf16 %v221
      %v254 = vunpack.c.l.bf16 %v222
      %v255 = vunpack.c.l.bf16 %v223
      %v256 = vunpack.c.l.bf16 %v224
      %v257 = vunpack.c.l.bf16 %v225
      %v258 = vunpack.c.l.bf16 %v226
      %v259 = vunpack.c.l.bf16 %v227
      %v260 = vunpack.c.l.bf16 %v228
      %v261 = vunpack.c.l.bf16 %v229
      %v262 = vunpack.c.l.bf16 %v230
      %v263 = vunpack.c.l.bf16 %v231
      %v264 = vunpack.c.l.bf16 %v232
      %v265 = vunpack.c.l.bf16 %v233
      %v266 = vunpack.c.l.bf16 %v234
      %v267 = vunpack.c.l.bf16 %v235
      %v268 = vunpack.c.l.bf16 %v236
      %v269 = vunpack.c.l.bf16 %v237
      %v270 = vunpack.c.l.bf16 %v238
      %v271 = vunpack.c.l.bf16 %v239
      %v272 = vunpack.c.l.bf16 %v240
      %v273 = vunpack.c.l.bf16 %v241
      %v274 = vld [vmem:[%s1] sm:$0x1]
      %v276 = vlaneseq
      %v277 = vshrl.u32 %v276, 7
      %v278 = vsub.s32 0, %v277
      %v279 = vrot.slane %v274, %v278
      %v281 = vmul.f32 %v242, %v279
      %v282 = vmul.f32 %v243, %v279
      %v283 = vmul.f32 %v244, %v279
      %v284 = vmul.f32 %v245, %v279
      %v285 = vmul.f32 %v246, %v279
      %v286 = vmul.f32 %v247, %v279
      %v287 = vmul.f32 %v248, %v279
      %v288 = vmul.f32 %v249, %v279
      %v289 = vmul.f32 %v250, %v279
      %v290 = vmul.f32 %v251, %v279
      %v291 = vmul.f32 %v252, %v279
      %v292 = vmul.f32 %v253, %v279
      %v293 = vmul.f32 %v254, %v279
      %v294 = vmul.f32 %v255, %v279
      %v295 = vmul.f32 %v256, %v279
      %v296 = vmul.f32 %v257, %v279
      %v297 = vmul.f32 %v258, %v279
      %v298 = vmul.f32 %v259, %v279
      %v299 = vmul.f32 %v260, %v279
      %v300 = vmul.f32 %v261, %v279
      %v301 = vmul.f32 %v262, %v279
      %v302 = vmul.f32 %v263, %v279
      %v303 = vmul.f32 %v264, %v279
      %v304 = vmul.f32 %v265, %v279
      %v305 = vmul.f32 %v266, %v279
      %v306 = vmul.f32 %v267, %v279
      %v307 = vmul.f32 %v268, %v279
      %v308 = vmul.f32 %v269, %v279
      %v309 = vmul.f32 %v270, %v279
      %v310 = vmul.f32 %v271, %v279
      %v311 = vmul.f32 %v272, %v279
      %v312 = vmul.f32 %v273, %v279
      %v313 = vld [vmem:[%s2] sm:$0x1]
      %v315 = vlaneseq
      %v316 = vshrl.u32 %v315, 7
      %v317 = vsub.s32 0, %v316
      %v318 = vrot.slane %v313, %v317
      %v320 = vadd.f32 %v281, %v318
      %v321 = vadd.f32 %v282, %v318
      %v322 = vadd.f32 %v283, %v318
      %v323 = vadd.f32 %v284, %v318
      %v324 = vadd.f32 %v285, %v318
      %v325 = vadd.f32 %v286, %v318
      %v326 = vadd.f32 %v287, %v318
      %v327 = vadd.f32 %v288, %v318
      %v328 = vadd.f32 %v289, %v318
      %v329 = vadd.f32 %v290, %v318
      %v330 = vadd.f32 %v291, %v318
      %v331 = vadd.f32 %v292, %v318
      %v332 = vadd.f32 %v293, %v318
      %v333 = vadd.f32 %v294, %v318
      %v334 = vadd.f32 %v295, %v318
      %v335 = vadd.f32 %v296, %v318
      %v336 = vadd.f32 %v297, %v318
      %v337 = vadd.f32 %v298, %v318
      %v338 = vadd.f32 %v299, %v318
      %v339 = vadd.f32 %v300, %v318
      %v340 = vadd.f32 %v301, %v318
      %v341 = vadd.f32 %v302, %v318
      %v342 = vadd.f32 %v303, %v318
      %v343 = vadd.f32 %v304, %v318
      %v344 = vadd.f32 %v305, %v318
      %v345 = vadd.f32 %v306, %v318
      %v346 = vadd.f32 %v307, %v318
      %v347 = vadd.f32 %v308, %v318
      %v348 = vadd.f32 %v309, %v318
      %v349 = vadd.f32 %v310, %v318
      %v350 = vadd.f32 %v311, %v318
      %v351 = vadd.f32 %v312, %v318
      %v352 = vmax.f32 %v320, 0.0
      %v353 = vmax.f32 %v321, 0.0
      %v354 = vmax.f32 %v322, 0.0
      %v355 = vmax.f32 %v323, 0.0
      %v356 = vmax.f32 %v324, 0.0
      %v357 = vmax.f32 %v325, 0.0
      %v358 = vmax.f32 %v326, 0.0
      %v359 = vmax.f32 %v327, 0.0
      %v360 = vmax.f32 %v328, 0.0
      %v361 = vmax.f32 %v329, 0.0
      %v362 = vmax.f32 %v330, 0.0
      %v363 = vmax.f32 %v331, 0.0
      %v364 = vmax.f32 %v332, 0.0
      %v365 = vmax.f32 %v333, 0.0
      %v366 = vmax.f32 %v334, 0.0
      %v367 = vmax.f32 %v335, 0.0
      %v368 = vmax.f32 %v336, 0.0
      %v369 = vmax.f32 %v337, 0.0
      %v370 = vmax.f32 %v338, 0.0
      %v371 = vmax.f32 %v339, 0.0
      %v372 = vmax.f32 %v340, 0.0
      %v373 = vmax.f32 %v341, 0.0
      %v374 = vmax.f32 %v342, 0.0
      %v375 = vmax.f32 %v343, 0.0
      %v376 = vmax.f32 %v344, 0.0
      %v377 = vmax.f32 %v345, 0.0
      %v378 = vmax.f32 %v346, 0.0
      %v379 = vmax.f32 %v347, 0.0
      %v380 = vmax.f32 %v348, 0.0
      %v381 = vmax.f32 %v349, 0.0
      %v382 = vmax.f32 %v350, 0.0
      %v383 = vmax.f32 %v351, 0.0
      %384 = vst [vmem:[%s208] sm:$0xff] %v352
      %385 = vst [vmem:[%s208 + $0x8] sm:$0xff] %v353
      %386 = vst [vmem:[%s208 + $0x10] sm:$0xff] %v354
      %387 = vst [vmem:[%s208 + $0x18] sm:$0xff] %v355
      %388 = vst [vmem:[%s208 + $0x20] sm:$0xff] %v356
      %389 = vst [vmem:[%s208 + $0x28] sm:$0xff] %v357
      %390 = vst [vmem:[%s208 + $0x30] sm:$0xff] %v358
      %391 = vst [vmem:[%s208 + $0x38] sm:$0xff] %v359
      %392 = vst [vmem:[%s208 + $0x40] sm:$0xff] %v360
      %393 = vst [vmem:[%s208 + $0x48] sm:$0xff] %v361
      %394 = vst [vmem:[%s208 + $0x50] sm:$0xff] %v362
      %395 = vst [vmem:[%s208 + $0x58] sm:$0xff] %v363
      %396 = vst [vmem:[%s208 + $0x60] sm:$0xff] %v364
      %397 = vst [vmem:[%s208 + $0x68] sm:$0xff] %v365
      %398 = vst [vmem:[%s208 + $0x70] sm:$0xff] %v366
      %399 = vst [vmem:[%s208 + $0x78] sm:$0xff] %v367
      %400 = vst [vmem:[%s208 + $0x80] sm:$0xff] %v368
      %401 = vst [vmem:[%s208 + $0x88] sm:$0xff] %v369
      %402 = vst [vmem:[%s208 + $0x90] sm:$0xff] %v370
      %403 = vst [vmem:[%s208 + $0x98] sm:$0xff] %v371
      %404 = vst [vmem:[%s208 + $0xa0] sm:$0xff] %v372
      %405 = vst [vmem:[%s208 + $0xa8] sm:$0xff] %v373
      %406 = vst [vmem:[%s208 + $0xb0] sm:$0xff] %v374
      %407 = vst [vmem:[%s208 + $0xb8] sm:$0xff] %v375
      %408 = vst [vmem:[%s208 + $0xc0] sm:$0xff] %v376
      %409 = vst [vmem:[%s208 + $0xc8] sm:$0xff] %v377
      %410 = vst [vmem:[%s208 + $0xd0] sm:$0xff] %v378
      %411 = vst [vmem:[%s208 + $0xd8] sm:$0xff] %v379
      %412 = vst [vmem:[%s208 + $0xe0] sm:$0xff] %v380
      %413 = vst [vmem:[%s208 + $0xe8] sm:$0xff] %v381
      %414 = vst [vmem:[%s208 + $0xf0] sm:$0xff] %v382
      %415 = vst [vmem:[%s208 + $0xf8] sm:$0xff] %v383
      %s416 = smul.u32 32, %s19
      %p417 = scmp.lt.s32.totalorder %s18, 1
      %s418 = scalar_select %p417, %s18, 1
      %p419 = scmp.lt.s32.totalorder %s416, 31
      %s420 = scalar_select %p419, %s416, 31
      %s421 = smul.addr %s418, 32
      %s422 = sadd.s32 %s420, %s421
      %s423 = smul.addr %s422, 8
      %s424 = scalar_lea.vmem %s3, %s423
      // Predicated region
      $region33: #{upblock_forward.3} parent=31 // pred_check
        %p425 = pneg %p116
      $region34: #{upblock_forward.3} parent=31 // pred_check_branch
        %427 = sbr.rel (%p425) target = $region36
      $region35: #{upblock_forward.3} parent=31 // pred_region
        %s428 = smul.u32 32, %s19
      $region36: #{upblock_forward.3} parent=31 // pred_fallthru
        _
    $region32: #{upblock_forward.3} parent=5 // pred_fallthru
      _
    %p429 = scmp.le.s32.totalorder 2, %s9
    // Predicated region
    $region37: #{upblock_forward.3} parent=5 // pred_check
      %p430 = pneg %p429
    $region38: #{upblock_forward.3} parent=5 // pred_check_branch
      %432 = sbr.rel (%p430) target = $region40
    $region39: #{upblock_forward.3} parent=5 // pred_region
      %s433 = ssub.s32 %s9, 2
      // Predicated region
      $region41: #{upblock_forward.3} parent=39 // pred_check
        %p434 = pneg %p122
      $region42: #{upblock_forward.3} parent=39 // pred_check_branch
        %436 = sbr.rel (%p434) target = $region44
      $region43: #{upblock_forward.3} parent=39 // pred_region
        %s437 = smul.u32 32, %s21
        %p438 = scmp.lt.s32.totalorder %s20, 1
        %s439 = scalar_select %p438, %s20, 1
        %p440 = scmp.lt.s32.totalorder %s437, 31
        %s441 = scalar_select %p440, %s437, 31
        %s442 = smul.addr %s439, 32
        %s443 = sadd.s32 %s441, %s442
        %s444 = smul.addr %s443, 8
        %s445 = scalar_lea.vmem %s3, %s444
      $region44: #{upblock_forward.3} parent=39 // pred_fallthru
        _
    $region40: #{upblock_forward.3} parent=5 // pred_fallthru
      _
  $region6: #{upblock_forward.3} parent=0 // loop_footer
    %s13 = sadd.s32 1, %s9
  $region7: #{upblock_forward.3} parent=0 // loop_footer_branch
    %8 = sbr.rel target = $region3
  $region8: #{upblock_forward.3} parent=0 // loop_exit
    _

// kernel: upblock_forward.2
$region0: #{upblock_forward.2}
  #allocation0 [shape = 'u32[]', space=smem, size = 0x4, offset = 0x4, fixed_abs, tag = 'smem constant byte address 0x4 - core index']
  #allocation1 [shape = 'u32[144,128]{1,0:T(1,128)}', space=vmem, size = 0x12000, scoped, tag = 'internal scratch']
  #allocation2 [shape = 'bf16[18,18,4]{2,1,0:T(8,128)(2,1)}', space=vmem, size = 0x1b000, scoped, tag = 'scratch operand']
  %s0 = inlined_call_operand.vmem [shape: bf16[2,16,16,4], index: 0, kind: input, shape index: {}]
  %s1 = inlined_call_operand.vmem [shape: bf16[36,128], index: 1, kind: input, shape index: {}]
  %s2 = inlined_call_operand.vmem [shape: bf16[2,256,128], index: 2, kind: output, shape index: {0}]
  %s3 = inlined_call_operand.vmem [shape: f32[2,2,128], index: 3, kind: output, shape index: {1}]
  %4 = xla_tuple %s2, %s3
  %s5 = sld [smem:[#allocation0]]
  $region49: #{upblock_forward.2} parent=0
    _
  %s7 = ssub.s32 1, %s5
  %s8 = scalar_select 0, %s7, %s5
  loop: start=0, step=1, limit=4
  $region2: #{upblock_forward.2} parent=0 // loop_pre_header
    _
  $region3: #{upblock_forward.2} parent=0 // loop_header
    %s10 = sphi 0, %s14
    %p11 = scmp.ge.s32.totalorder %s10, 4
    %s20 = sphi 0, %s22
    %s23 = sphi 0, %s20
    %s24 = sphi 0, %s23
    %s40 = sphi 0, %s24
    %s44 = sphi 0, %s44
    %s46 = sphi 0, %s44
    %s47 = sphi 0, %s46
    %s61 = sphi 0, %s47
    %s67 = sphi 0, %s69
    %s70 = sphi 0, %s67
    %s71 = sphi 0, %s70
    %s87 = sphi 0, %s71
    %s93 = sphi 0, %s95
    %s96 = sphi 0, %s93
    %s97 = sphi 0, %s96
    %s113 = sphi 0, %s97
  $region4: #{upblock_forward.2} parent=0 // loop_header_branch
    %13 = sbr.rel (%p11) target = $region8
  $region5: #{upblock_forward.2} parent=0 // loop_body
    %s15 = ssub.s32 %s10, 1
    %s16 = ssub.s32 %s10, 2
    %s17 = sadd.s32 %s10, 1
    %s18 = ssub.s32 %s10, %s17
    %p19 = scmp.eq.s32.totalorder %s18, 0
    %s21 = sadd.s32 %s20, 1
    %s22 = scalar_select %p19, %s20, %s21
    %p25 = pneg %p19
    %p26 = scmp.eq.s32.totalorder %s10, 1
    %p27 = por %p25, %p26
    %p28 = scmp.ne.s32.totalorder %s20, %s23
    %p29 = scmp.eq.s32.totalorder %s10, 0
    %p30 = por %p28, %p29
    %p31 = scmp.ne.s32.totalorder %s20, %s23
    %p32 = scmp.eq.s32.totalorder %s15, 1
    %p33 = por %p31, %p32
    %p34 = scmp.ne.s32.totalorder %s23, %s24
    %p35 = scmp.eq.s32.totalorder %s15, 0
    %p36 = por %p34, %p35
    %p37 = scmp.ne.s32.totalorder %s23, %s24
    %p38 = scmp.eq.s32.totalorder %s16, 1
    %p39 = por %p37, %p38
    %p41 = scmp.ne.s32.totalorder %s24, %s40
    %p42 = scmp.eq.s32.totalorder %s16, 0
    %p43 = por %p41, %p42
    %s45 = sadd.s32 %s44, 1
    %p48 = scmp.eq.s32.totalorder %s10, 1
    %p49 = scmp.ne.s32.totalorder %s44, %s46
    %p50 = scmp.eq.s32.totalorder %s10, 0
    %p51 = por %p49, %p50
    %p52 = scmp.ne.s32.totalorder %s44, %s46
    %p53 = scmp.eq.s32.totalorder %s15, 1
    %p54 = por %p52, %p53
    %p55 = scmp.ne.s32.totalorder %s46, %s47
    %p56 = scmp.eq.s32.totalorder %s15, 0
    %p57 = por %p55, %p56
    %p58 = scmp.ne.s32.totalorder %s46, %s47
    %p59 = scmp.eq.s32.totalorder %s16, 1
    %p60 = por %p58, %p59
    %p62 = scmp.ne.s32.totalorder %s47, %s61
    %p63 = scmp.eq.s32.totalorder %s16, 0
    %p64 = por %p62, %p63
    %s65 = ssub.s32 %s10, %s17
    %p66 = scmp.eq.s32.totalorder %s65, 0
    %s68 = sadd.s32 %s67, 1
    %s69 = scalar_select %p66, %s67, %s68
    %p72 = pneg %p66
    %p73 = scmp.eq.s32.totalorder %s10, 1
    %p74 = por %p72, %p73
    %p75 = scmp.ne.s32.totalorder %s67, %s70
    %p76 = scmp.eq.s32.totalorder %s10, 0
    %p77 = por %p75, %p76
    %p78 = scmp.ne.s32.totalorder %s67, %s70
    %p79 = scmp.eq.s32.totalorder %s15, 1
    %p80 = por %p78, %p79
    %p81 = scmp.ne.s32.totalorder %s70, %s71
    %p82 = scmp.eq.s32.totalorder %s15, 0
    %p83 = por %p81, %p82
    %p84 = scmp.ne.s32.totalorder %s70, %s71
    %p85 = scmp.eq.s32.totalorder %s16, 1
    %p86 = por %p84, %p85
    %p88 = scmp.ne.s32.totalorder %s71, %s87
    %p89 = scmp.eq.s32.totalorder %s16, 0
    %p90 = por %p88, %p89
    %s91 = ssub.s32 %s10, %s17
    %p92 = scmp.eq.s32.totalorder %s91, 0
    %s94 = sadd.s32 %s93, 1
    %s95 = scalar_select %p92, %s93, %s94
    %p98 = pneg %p92
    %p99 = scmp.eq.s32.totalorder %s10, 1
    %p100 = por %p98, %p99
    %p101 = scmp.ne.s32.totalorder %s93, %s96
    %p102 = scmp.eq.s32.totalorder %s10, 0
    %p103 = por %p101, %p102
    %p104 = scmp.ne.s32.totalorder %s93, %s96
    %p105 = scmp.eq.s32.totalorder %s15, 1
    %p106 = por %p104, %p105
    %p107 = scmp.ne.s32.totalorder %s96, %s97
    %p108 = scmp.eq.s32.totalorder %s15, 0
    %p109 = por %p107, %p108
    %p110 = scmp.ne.s32.totalorder %s96, %s97
    %p111 = scmp.eq.s32.totalorder %s16, 1
    %p112 = por %p110, %p111
    %p114 = scmp.ne.s32.totalorder %s97, %s113
    %p115 = scmp.eq.s32.totalorder %s16, 0
    %p116 = por %p114, %p115
    %p117 = scmp.le.s32.totalorder 1, %s10
    %p118 = scmp.lt.s32.totalorder %s10, 3
    %p119 = pnand %p117, %p118
    %p120 = pneg %p119
    // Predicated region
    $region9: #{upblock_forward.2} parent=5 // pred_check
      _
    $region10: #{upblock_forward.2} parent=5 // pred_check_branch
      %122 = sbr.rel (%p119) target = $region12
    $region11: #{upblock_forward.2} parent=5 // pred_region
      %s123 = ssub.s32 %s10, 1
      // Predicated region
      $region13: #{upblock_forward.2} parent=11 // pred_check
        %p124 = pneg %p57
      $region14: #{upblock_forward.2} parent=11 // pred_check_branch
        %126 = sbr.rel (%p124) target = $region16
      $region15: #{upblock_forward.2} parent=11 // pred_region
        _
      $region16: #{upblock_forward.2} parent=11 // pred_fallthru
        _
    $region12: #{upblock_forward.2} parent=5 // pred_fallthru
      _
    %p127 = scmp.lt.s32.totalorder %s10, 2
    // Predicated region
    $region17: #{upblock_forward.2} parent=5 // pred_check
      %p128 = pneg %p127
    $region18: #{upblock_forward.2} parent=5 // pred_check_branch
      %130 = sbr.rel (%p128) target = $region20
    $region19: #{upblock_forward.2} parent=5 // pred_region
      // Predicated region
      $region21: #{upblock_forward.2} parent=19 // pred_check
        %p131 = pneg %p30
      $region22: #{upblock_forward.2} parent=19 // pred_check_branch
        %133 = sbr.rel (%p131) target = $region24
      $region23: #{upblock_forward.2} parent=19 // pred_region
        %p134 = scmp.lt.s32.totalorder %s10, 1
        %s135 = scalar_select %p134, %s10, 1
        %s136 = smul.addr %s135, 32
        %s137 = smul.addr %s136, 4
        %s138 = scalar_lea.vmem %s0, %s137
      $region24: #{upblock_forward.2} parent=19 // pred_fallthru
        _
    $region20: #{upblock_forward.2} parent=5 // pred_fallthru
      _
    %p139 = scmp.le.s32.totalorder 1, %s10
    %p140 = scmp.lt.s32.totalorder %s10, 3
    %p141 = pnand %p139, %p140
    %p142 = pneg %p141
    // Predicated region
    $region25: #{upblock_forward.2} parent=5 // pred_check
      _
    $region26: #{upblock_forward.2} parent=5 // pred_check_branch
      %144 = sbr.rel (%p141) target = $region28
    $region27: #{upblock_forward.2} parent=5 // pred_region
      %s145 = ssub.s32 %s10, 1
      %p146 = scmp.lt.s32.totalorder %s15, 1
      %s147 = scalar_select %p146, %s15, 1
      %s148 = smul.addr %s147, 32
      %s149 = smul.addr %s148, 4
      %s150 = scalar_lea.vmem %s0, %s149
      %p151 = pneg %p36
      %p152 = pneg %p33
      %p153 = pneg %p57
      %p154 = pneg %p54
      %p155 = pneg %p83
      %p156 = pneg %p80
      %p157 = scmp.lt.s32.totalorder %s15, 1
      %s158 = scalar_select %p157, %s15, 1
      %s159 = smul.addr %s158, 32
      %s160 = smul.addr %s159, 4
      %s161 = scalar_lea.vmem %s2, %s160
      %p162 = pneg %p109
      %p163 = pneg %p106
      %p164 = scmp.lt.s32.totalorder %s15, 1
      %s165 = scalar_select %p164, %s15, 1
      %s166 = smul.addr %s165, 2
      %s167 = scalar_lea.vmem %s3, %s166
      %p168 = scmp.lt.s32.totalorder %s15, 1
      %s169 = scalar_select %p168, %s15, 1
      %s170 = smul.addr %s169, 32
      %s171 = smul.addr %s170, 4
      %s172 = scalar_lea.vmem %s0, %s171
      %p173 = scmp.lt.s32.totalorder %s15, 1
      %s174 = scalar_select %p173, %s15, 1
      %s175 = smul.addr %s174, 32
      %s176 = smul.addr %s175, 4
      %s177 = scalar_lea.vmem %s2, %s176
      %p178 = scmp.lt.s32.totalorder %s15, 1
      %s179 = scalar_select %p178, %s15, 1
      %s180 = smul.addr %s179, 2
      %s181 = scalar_lea.vmem %s3, %s180
      %vm183 = vcmask 27648
      %184 = vst.msk [vmem:[#allocation2] sm:$0xf] %vm183, 0
      %185 = vst.msk [vmem:[#allocation2 + $0x4] sm:$0xf] %vm183, 0
      %vm186 = vcmask 24576
      %187 = vst.msk [vmem:[#allocation2 + $0x8] sm:$0x1] %vm186, 0
      %s188 = scalar_lea.vmem [#allocation2], 204
      %189 = vst.msk [vmem:[%s188] sm:$0xf] %vm183, 0
      %190 = vst.msk [vmem:[%s188 + $0x4] sm:$0xf] %vm183, 0
      %191 = vst.msk [vmem:[%s188 + $0x8] sm:$0x1] %vm186, 0
      %vm192 = vcmask 24576
      %vm193 = vsmask.f32 256
      %vm194 = vmand %vm192, %vm193
      %v195 = vld [vmem:[#allocation2] sm:$0x1]
      %v196 = vsel %vm194, 0, %v195
      %197 = vst [vmem:[#allocation2] sm:$0x1] %v196
      %v198 = vld [vmem:[#allocation2 + $0xc] sm:$0x1]
      %v199 = vsel %vm194, 0, %v198
      %200 = vst [vmem:[#allocation2 + $0xc] sm:$0x1] %v199
      %v201 = vld [vmem:[#allocation2 + $0x18] sm:$0x1]
      %v202 = vsel %vm194, 0, %v201
      %203 = vst [vmem:[#allocation2 + $0x18] sm:$0x1] %v202
      %v204 = vld [vmem:[#allocation2 + $0x24] sm:$0x1]
      %v205 = vsel %vm194, 0, %v204
      %206 = vst [vmem:[#allocation2 + $0x24] sm:$0x1] %v205
      %v207 = vld [vmem:[#allocation2 + $0x30] sm:$0x1]
      %v208 = vsel %vm194, 0, %v207
      %209 = vst [vmem:[#allocation2 + $0x30] sm:$0x1] %v208
      %v210 = vld [vmem:[#allocation2 + $0x3c] sm:$0x1]
      %v211 = vsel %vm194, 0, %v210
      %212 = vst [vmem:[#allocation2 + $0x3c] sm:$0x1] %v211
      %v213 = vld [vmem:[#allocation2 + $0x48] sm:$0x1]
      %v214 = vsel %vm194, 0, %v213
      %215 = vst [vmem:[#allocation2 + $0x48] sm:$0x1] %v214
      %v216 = vld [vmem:[#allocation2 + $0x54] sm:$0x1]
      %v217 = vsel %vm194, 0, %v216
      %218 = vst [vmem:[#allocation2 + $0x54] sm:$0x1] %v217
      %v219 = vld [vmem:[#allocation2 + $0x60] sm:$0x1]
      %v220 = vsel %vm194, 0, %v219
      %221 = vst [vmem:[#allocation2 + $0x60] sm:$0x1] %v220
      %v222 = vld [vmem:[#allocation2 + $0x6c] sm:$0x1]
      %v223 = vsel %vm194, 0, %v222
      %224 = vst [vmem:[#allocation2 + $0x6c] sm:$0x1] %v223
      %v225 = vld [vmem:[#allocation2 + $0x78] sm:$0x1]
      %v226 = vsel %vm194, 0, %v225
      %227 = vst [vmem:[#allocation2 + $0x78] sm:$0x1] %v226
      %v228 = vld [vmem:[#allocation2 + $0x84] sm:$0x1]
      %v229 = vsel %vm194, 0, %v228
      %230 = vst [vmem:[#allocation2 + $0x84] sm:$0x1] %v229
      %v231 = vld [vmem:[#allocation2 + $0x90] sm:$0x1]
      %v232 = vsel %vm194, 0, %v231
      %233 = vst [vmem:[#allocation2 + $0x90] sm:$0x1] %v232
      %v234 = vld [vmem:[#allocation2 + $0x9c] sm:$0x1]
      %v235 = vsel %vm194, 0, %v234
      %236 = vst [vmem:[#allocation2 + $0x9c] sm:$0x1] %v235
      %v237 = vld [vmem:[#allocation2 + $0xa8] sm:$0x1]
      %v238 = vsel %vm194, 0, %v237
      %239 = vst [vmem:[#allocation2 + $0xa8] sm:$0x1] %v238
      %v240 = vld [vmem:[#allocation2 + $0xb4] sm:$0x1]
      %v241 = vsel %vm194, 0, %v240
      %242 = vst [vmem:[#allocation2 + $0xb4] sm:$0x1] %v241
      %v243 = vld [vmem:[#allocation2 + $0xc0] sm:$0x1]
      %v244 = vsel %vm194, 0, %v243
      %245 = vst [vmem:[#allocation2 + $0xc0] sm:$0x1] %v244
      %v246 = vld [vmem:[#allocation2 + $0xcc] sm:$0x1]
      %v247 = vsel %vm194, 0, %v246
      %248 = vst [vmem:[#allocation2 + $0xcc] sm:$0x1] %v247
      %vm249 = vsmask.f32 7938
      %vm250 = vmand %vm192, %vm249
      %v251 = vld [vmem:[#allocation2 + $0x8] sm:$0x1]
      %v252 = vsel %vm250, 0, %v251
      %253 = vst [vmem:[#allocation2 + $0x8] sm:$0x1] %v252
      %v254 = vld [vmem:[#allocation2 + $0x14] sm:$0x1]
      %v255 = vsel %vm250, 0, %v254
      %256 = vst [vmem:[#allocation2 + $0x14] sm:$0x1] %v255
      %v257 = vld [vmem:[#allocation2 + $0x20] sm:$0x1]
      %v258 = vsel %vm250, 0, %v257
      %259 = vst [vmem:[#allocation2 + $0x20] sm:$0x1] %v258
      %v260 = vld [vmem:[#allocation2 + $0x2c] sm:$0x1]
      %v261 = vsel %vm250, 0, %v260
      %262 = vst [vmem:[#allocation2 + $0x2c] sm:$0x1] %v261
      %v263 = vld [vmem:[#allocation2 + $0x38] sm:$0x1]
      %v264 = vsel %vm250, 0, %v263
      %265 = vst [vmem:[#allocation2 + $0x38] sm:$0x1] %v264
      %v266 = vld [vmem:[#allocation2 + $0x44] sm:$0x1]
      %v267 = vsel %vm250, 0, %v266
      %268 = vst [vmem:[#allocation2 + $0x44] sm:$0x1] %v267
      %v269 = vld [vmem:[#allocation2 + $0x50] sm:$0x1]
      %v270 = vsel %vm250, 0, %v269
      %271 = vst [vmem:[#allocation2 + $0x50] sm:$0x1] %v270
      %v272 = vld [vmem:[#allocation2 + $0x5c] sm:$0x1]
      %v273 = vsel %vm250, 0, %v272
      %274 = vst [vmem:[#allocation2 + $0x5c] sm:$0x1] %v273
      %v275 = vld [vmem:[#allocation2 + $0x68] sm:$0x1]
      %v276 = vsel %vm250, 0, %v275
      %277 = vst [vmem:[#allocation2 + $0x68] sm:$0x1] %v276
      %v278 = vld [vmem:[#allocation2 + $0x74] sm:$0x1]
      %v279 = vsel %vm250, 0, %v278
      %280 = vst [vmem:[#allocation2 + $0x74] sm:$0x1] %v279
      %v281 = vld [vmem:[#allocation2 + $0x80] sm:$0x1]
      %v282 = vsel %vm250, 0, %v281
      %283 = vst [vmem:[#allocation2 + $0x80] sm:$0x1] %v282
      %v284 = vld [vmem:[#allocation2 + $0x8c] sm:$0x1]
      %v285 = vsel %vm250, 0, %v284
      %286 = vst [vmem:[#allocation2 + $0x8c] sm:$0x1] %v285
      %v287 = vld [vmem:[#allocation2 + $0x98] sm:$0x1]
      %v288 = vsel %vm250, 0, %v287
      %289 = vst [vmem:[#allocation2 + $0x98] sm:$0x1] %v288
      %v290 = vld [vmem:[#allocation2 + $0xa4] sm:$0x1]
      %v291 = vsel %vm250, 0, %v290
      %292 = vst [vmem:[#allocation2 + $0xa4] sm:$0x1] %v291
      %v293 = vld [vmem:[#allocation2 + $0xb0] sm:$0x1]
      %v294 = vsel %vm250, 0, %v293
      %295 = vst [vmem:[#allocation2 + $0xb0] sm:$0x1] %v294
      %v296 = vld [vmem:[#allocation2 + $0xbc] sm:$0x1]
      %v297 = vsel %vm250, 0, %v296
      %298 = vst [vmem:[#allocation2 + $0xbc] sm:$0x1] %v297
      %v299 = vld [vmem:[#allocation2 + $0xc8] sm:$0x1]
      %v300 = vsel %vm250, 0, %v299
      %301 = vst [vmem:[#allocation2 + $0xc8] sm:$0x1] %v300
      %v302 = vld [vmem:[#allocation2 + $0xd4] sm:$0x1]
      %v303 = vsel %vm250, 0, %v302
      %304 = vst [vmem:[#allocation2 + $0xd4] sm:$0x1] %v303
      %v305 = vld [vmem:[%s172] sm:$0xf]
      %v306 = vld [vmem:[%s172 + $0x4] sm:$0xf]
      %v307 = vld [vmem:[%s172 + $0x8] sm:$0xf]
      %v308 = vld [vmem:[%s172 + $0xc] sm:$0xf]
      %v309 = vld [vmem:[%s172 + $0x10] sm:$0xf]
      %v310 = vld [vmem:[%s172 + $0x14] sm:$0xf]
      %v311 = vld [vmem:[%s172 + $0x18] sm:$0xf]
      %v312 = vld [vmem:[%s172 + $0x1c] sm:$0xf]
      %v313 = vld [vmem:[%s172 + $0x20] sm:$0xf]
      %v314 = vld [vmem:[%s172 + $0x24] sm:$0xf]
      %v315 = vld [vmem:[%s172 + $0x28] sm:$0xf]
      %v316 = vld [vmem:[%s172 + $0x2c] sm:$0xf]
      %v317 = vld [vmem:[%s172 + $0x30] sm:$0xf]
      %v318 = vld [vmem:[%s172 + $0x34] sm:$0xf]
      %v319 = vld [vmem:[%s172 + $0x38] sm:$0xf]
      %v320 = vld [vmem:[%s172 + $0x3c] sm:$0xf]
      %v321 = vld [vmem:[%s172 + $0x40] sm:$0xf]
      %v322 = vld [vmem:[%s172 + $0x44] sm:$0xf]
      %v323 = vld [vmem:[%s172 + $0x48] sm:$0xf]
      %v324 = vld [vmem:[%s172 + $0x4c] sm:$0xf]
      %v325 = vld [vmem:[%s172 + $0x50] sm:$0xf]
      %v326 = vld [vmem:[%s172 + $0x54] sm:$0xf]
      %v327 = vld [vmem:[%s172 + $0x58] sm:$0xf]
      %v328 = vld [vmem:[%s172 + $0x5c] sm:$0xf]
      %v329 = vld [vmem:[%s172 + $0x60] sm:$0xf]
      %v330 = vld [vmem:[%s172 + $0x64] sm:$0xf]
      %v331 = vld [vmem:[%s172 + $0x68] sm:$0xf]
      %v332 = vld [vmem:[%s172 + $0x6c] sm:$0xf]
      %v333 = vld [vmem:[%s172 + $0x70] sm:$0xf]
      %v334 = vld [vmem:[%s172 + $0x74] sm:$0xf]
      %v335 = vld [vmem:[%s172 + $0x78] sm:$0xf]
      %v336 = vld [vmem:[%s172 + $0x7c] sm:$0xf]
      %vm337 = vsmask.f32 4368
      %vm338 = vmor %vm193, %vm337
      %v340 = vshrl.u32 %v305, 16
      %v342 = vrot.slane %v340, 7
      %v343 = vshll.u32 %v305, 16
      %v345 = vor.u32 %v342, %v343
      %v346 = vrot.slane %v342, 4
      %v348 = vshrl.u32 %v306, 16
      %v350 = vrot.slane %v348, 7
      %v351 = vshll.u32 %v306, 16
      %v353 = vor.u32 %v350, %v351
      %v354 = vsel %vm338, %v346, %v353
      %v355 = vrot.slane %v350, 4
      %v357 = vshrl.u32 %v307, 16
      %v359 = vrot.slane %v357, 7
      %v360 = vshll.u32 %v307, 16
      %v362 = vor.u32 %v359, %v360
      %v363 = vrot.slane %v359, 4
      %v365 = vshrl.u32 %v308, 16
      %v367 = vrot.slane %v365, 7
      %v368 = vshll.u32 %v308, 16
      %v370 = vor.u32 %v367, %v368
      %v371 = vsel %vm338, %v363, %v370
      %v372 = vrot.slane %v367, 4
      %v374 = vshrl.u32 %v309, 16
      %v376 = vrot.slane %v374, 7
      %v377 = vshll.u32 %v309, 16
      %v379 = vor.u32 %v376, %v377
      %v380 = vrot.slane %v376, 4
      %v382 = vshrl.u32 %v310, 16
      %v384 = vrot.slane %v382, 7
      %v385 = vshll.u32 %v310, 16
      %v387 = vor.u32 %v384, %v385
      %v388 = vsel %vm338, %v380, %v387
      %v389 = vrot.slane %v384, 4
      %v391 = vshrl.u32 %v311, 16
      %v393 = vrot.slane %v391, 7
      %v394 = vshll.u32 %v311, 16
      %v396 = vor.u32 %v393, %v394
      %v397 = vrot.slane %v393, 4
      %v399 = vshrl.u32 %v312, 16
      %v401 = vrot.slane %v399, 7
      %v402 = vshll.u32 %v312, 16
      %v404 = vor.u32 %v401, %v402
      %v405 = vsel %vm338, %v397, %v404
      %v406 = vrot.slane %v401, 4
      %v408 = vshrl.u32 %v313, 16
      %v410 = vrot.slane %v408, 7
      %v411 = vshll.u32 %v313, 16
      %v413 = vor.u32 %v410, %v411
      %v414 = vrot.slane %v410, 4
      %v416 = vshrl.u32 %v314, 16
      %v418 = vrot.slane %v416, 7
      %v419 = vshll.u32 %v314, 16
      %v421 = vor.u32 %v418, %v419
      %v422 = vsel %vm338, %v414, %v421
      %v423 = vrot.slane %v418, 4
      %v425 = vshrl.u32 %v315, 16
      %v427 = vrot.slane %v425, 7
      %v428 = vshll.u32 %v315, 16
      %v430 = vor.u32 %v427, %v428
      %v431 = vrot.slane %v427, 4
      %v433 = vshrl.u32 %v316, 16
      %v435 = vrot.slane %v433, 7
      %v436 = vshll.u32 %v316, 16
      %v438 = vor.u32 %v435, %v436
      %v439 = vsel %vm338, %v431, %v438
      %v440 = vrot.slane %v435, 4
      %v442 = vshrl.u32 %v317, 16
      %v444 = vrot.slane %v442, 7
      %v445 = vshll.u32 %v317, 16
      %v447 = vor.u32 %v444, %v445
      %v448 = vrot.slane %v444, 4
      %v450 = vshrl.u32 %v318, 16
      %v452 = vrot.slane %v450, 7
      %v453 = vshll.u32 %v318, 16
      %v455 = vor.u32 %v452, %v453
      %v456 = vsel %vm338, %v448, %v455
      %v457 = vrot.slane %v452, 4
      %v459 = vshrl.u32 %v319, 16
      %v461 = vrot.slane %v459, 7
      %v462 = vshll.u32 %v319, 16
      %v464 = vor.u32 %v461, %v462
      %v465 = vrot.slane %v461, 4
      %v467 = vshrl.u32 %v320, 16
      %v469 = vrot.slane %v467, 7
      %v470 = vshll.u32 %v320, 16
      %v472 = vor.u32 %v469, %v470
      %v473 = vsel %vm338, %v465, %v472
      %v474 = vrot.slane %v469, 4
      %v476 = vshrl.u32 %v321, 16
      %v478 = vrot.slane %v476, 7
      %v479 = vshll.u32 %v321, 16
      %v481 = vor.u32 %v478, %v479
      %v482 = vrot.slane %v478, 4
      %v484 = vshrl.u32 %v322, 16
      %v486 = vrot.slane %v484, 7
      %v487 = vshll.u32 %v322, 16
      %v489 = vor.u32 %v486, %v487
      %v490 = vsel %vm338, %v482, %v489
      %v491 = vrot.slane %v486, 4
      %v493 = vshrl.u32 %v323, 16
      %v495 = vrot.slane %v493, 7
      %v496 = vshll.u32 %v323, 16
      %v498 = vor.u32 %v495, %v496
      %v499 = vrot.slane %v495, 4
      %v501 = vshrl.u32 %v324, 16
      %v503 = vrot.slane %v501, 7
      %v504 = vshll.u32 %v324, 16
      %v506 = vor.u32 %v503, %v504
      %v507 = vsel %vm338, %v499, %v506
      %v508 = vrot.slane %v503, 4
      %v510 = vshrl.u32 %v325, 16
      %v512 = vrot.slane %v510, 7
      %v513 = vshll.u32 %v325, 16
      %v515 = vor.u32 %v512, %v513
      %v516 = vrot.slane %v512, 4
      %v518 = vshrl.u32 %v326, 16
      %v520 = vrot.slane %v518, 7
      %v521 = vshll.u32 %v326, 16
      %v523 = vor.u32 %v520, %v521
      %v524 = vsel %vm338, %v516, %v523
      %v525 = vrot.slane %v520, 4
      %v527 = vshrl.u32 %v327, 16
      %v529 = vrot.slane %v527, 7
      %v530 = vshll.u32 %v327, 16
      %v532 = vor.u32 %v529, %v530
      %v533 = vrot.slane %v529, 4
      %v535 = vshrl.u32 %v328, 16
      %v537 = vrot.slane %v535, 7
      %v538 = vshll.u32 %v328, 16
      %v540 = vor.u32 %v537, %v538
      %v541 = vsel %vm338, %v533, %v540
      %v542 = vrot.slane %v537, 4
      %v544 = vshrl.u32 %v329, 16
      %v546 = vrot.slane %v544, 7
      %v547 = vshll.u32 %v329, 16
      %v549 = vor.u32 %v546, %v547
      %v550 = vrot.slane %v546, 4
      %v552 = vshrl.u32 %v330, 16
      %v554 = vrot.slane %v552, 7
      %v555 = vshll.u32 %v330, 16
      %v557 = vor.u32 %v554, %v555
      %v558 = vsel %vm338, %v550, %v557
      %v559 = vrot.slane %v554, 4
      %v561 = vshrl.u32 %v331, 16
      %v563 = vrot.slane %v561, 7
      %v564 = vshll.u32 %v331, 16
      %v566 = vor.u32 %v563, %v564
      %v567 = vrot.slane %v563, 4
      %v569 = vshrl.u32 %v332, 16
      %v571 = vrot.slane %v569, 7
      %v572 = vshll.u32 %v332, 16
      %v574 = vor.u32 %v571, %v572
      %v575 = vsel %vm338, %v567, %v574
      %v576 = vrot.slane %v571, 4
      %v578 = vshrl.u32 %v333, 16
      %v580 = vrot.slane %v578, 7
      %v581 = vshll.u32 %v333, 16
      %v583 = vor.u32 %v580, %v581
      %v584 = vrot.slane %v580, 4
      %v586 = vshrl.u32 %v334, 16
      %v588 = vrot.slane %v586, 7
      %v589 = vshll.u32 %v334, 16
      %v591 = vor.u32 %v588, %v589
      %v592 = vsel %vm338, %v584, %v591
      %v593 = vrot.slane %v588, 4
      %v595 = vshrl.u32 %v335, 16
      %v597 = vrot.slane %v595, 7
      %v598 = vshll.u32 %v335, 16
      %v600 = vor.u32 %v597, %v598
      %v601 = vrot.slane %v597, 4
      %v603 = vshrl.u32 %v336, 16
      %v605 = vrot.slane %v603, 7
      %v606 = vshll.u32 %v336, 16
      %v608 = vor.u32 %v605, %v606
      %v609 = vsel %vm338, %v601, %v608
      %v610 = vrot.slane %v605, 4
      %s659 = scalar_lea.vmem [#allocation2], 12
      %vm660 = vcmask 27648
      %vm661 = vmand %vm660, %vm249
      %v662 = vld [vmem:[%s659] sm:$0xf]
      %v663 = vsel %vm661, %v345, %v662
      %664 = vst [vmem:[%s659] sm:$0xf] %v663
      %665 = vst.msk [vmem:[%s659 + $0x4] sm:$0xf] %vm183, %v354
      %v666 = vld [vmem:[%s659 + $0x8] sm:$0x1]
      %v667 = vsel %vm194, %v355, %v666
      %668 = vst [vmem:[%s659 + $0x8] sm:$0x1] %v667
      %v669 = vld [vmem:[%s659 + $0xc] sm:$0xf]
      %v670 = vsel %vm661, %v362, %v669
      %671 = vst [vmem:[%s659 + $0xc] sm:$0xf] %v670
      %672 = vst.msk [vmem:[%s659 + $0x10] sm:$0xf] %vm183, %v371
      %v673 = vld [vmem:[%s659 + $0x14] sm:$0x1]
      %v674 = vsel %vm194, %v372, %v673
      %675 = vst [vmem:[%s659 + $0x14] sm:$0x1] %v674
      %v676 = vld [vmem:[%s659 + $0x18] sm:$0xf]
      %v677 = vsel %vm661, %v379, %v676
      %678 = vst [vmem:[%s659 + $0x18] sm:$0xf] %v677
      %679 = vst.msk [vmem:[%s659 + $0x1c] sm:$0xf] %vm183, %v388
      %v680 = vld [vmem:[%s659 + $0x20] sm:$0x1]
      %v681 = vsel %vm194, %v389, %v680
      %682 = vst [vmem:[%s659 + $0x20] sm:$0x1] %v681
      %v683 = vld [vmem:[%s659 + $0x24] sm:$0xf]
      %v684 = vsel %vm661, %v396, %v683
      %685 = vst [vmem:[%s659 + $0x24] sm:$0xf] %v684
      %686 = vst.msk [vmem:[%s659 + $0x28] sm:$0xf] %vm183, %v405
      %v687 = vld [vmem:[%s659 + $0x2c] sm:$0x1]
      %v688 = vsel %vm194, %v406, %v687
      %689 = vst [vmem:[%s659 + $0x2c] sm:$0x1] %v688
      %v690 = vld [vmem:[%s659 + $0x30] sm:$0xf]
      %v691 = vsel %vm661, %v413, %v690
      %692 = vst [vmem:[%s659 + $0x30] sm:$0xf] %v691
      %693 = vst.msk [vmem:[%s659 + $0x34] sm:$0xf] %vm183, %v422
      %v694 = vld [vmem:[%s659 + $0x38] sm:$0x1]
      %v695 = vsel %vm194, %v423, %v694
      %696 = vst [vmem:[%s659 + $0x38] sm:$0x1] %v695
      %v697 = vld [vmem:[%s659 + $0x3c] sm:$0xf]
      %v698 = vsel %vm661, %v430, %v697
      %699 = vst [vmem:[%s659 + $0x3c] sm:$0xf] %v698
      %700 = vst.msk [vmem:[%s659 + $0x40] sm:$0xf] %vm183, %v439
      %v701 = vld [vmem:[%s659 + $0x44] sm:$0x1]
      %v702 = vsel %vm194, %v440, %v701
      %703 = vst [vmem:[%s659 + $0x44] sm:$0x1] %v702
      %v704 = vld [vmem:[%s659 + $0x48] sm:$0xf]
      %v705 = vsel %vm661, %v447, %v704
      %706 = vst [vmem:[%s659 + $0x48] sm:$0xf] %v705
      %707 = vst.msk [vmem:[%s659 + $0x4c] sm:$0xf] %vm183, %v456
      %v708 = vld [vmem:[%s659 + $0x50] sm:$0x1]
      %v709 = vsel %vm194, %v457, %v708
      %710 = vst [vmem:[%s659 + $0x50] sm:$0x1] %v709
      %v711 = vld [vmem:[%s659 + $0x54] sm:$0xf]
      %v712 = vsel %vm661, %v464, %v711
      %713 = vst [vmem:[%s659 + $0x54] sm:$0xf] %v712
      %714 = vst.msk [vmem:[%s659 + $0x58] sm:$0xf] %vm183, %v473
      %v715 = vld [vmem:[%s659 + $0x5c] sm:$0x1]
      %v716 = vsel %vm194, %v474, %v715
      %717 = vst [vmem:[%s659 + $0x5c] sm:$0x1] %v716
      %v718 = vld [vmem:[%s659 + $0x60] sm:$0xf]
      %v719 = vsel %vm661, %v481, %v718
      %720 = vst [vmem:[%s659 + $0x60] sm:$0xf] %v719
      %721 = vst.msk [vmem:[%s659 + $0x64] sm:$0xf] %vm183, %v490
      %v722 = vld [vmem:[%s659 + $0x68] sm:$0x1]
      %v723 = vsel %vm194, %v491, %v722
      %724 = vst [vmem:[%s659 + $0x68] sm:$0x1] %v723
      %v725 = vld [vmem:[%s659 + $0x6c] sm:$0xf]
      %v726 = vsel %vm661, %v498, %v725
      %727 = vst [vmem:[%s659 + $0x6c] sm:$0xf] %v726
      %728 = vst.msk [vmem:[%s659 + $0x70] sm:$0xf] %vm183, %v507
      %v729 = vld [vmem:[%s659 + $0x74] sm:$0x1]
      %v730 = vsel %vm194, %v508, %v729
      %731 = vst [vmem:[%s659 + $0x74] sm:$0x1] %v730
      %v732 = vld [vmem:[%s659 + $0x78] sm:$0xf]
      %v733 = vsel %vm661, %v515, %v732
      %734 = vst [vmem:[%s659 + $0x78] sm:$0xf] %v733
      %735 = vst.msk [vmem:[%s659 + $0x7c] sm:$0xf] %vm183, %v524
      %v736 = vld [vmem:[%s659 + $0x80] sm:$0x1]
      %v737 = vsel %vm194, %v525, %v736
      %738 = vst [vmem:[%s659 + $0x80] sm:$0x1] %v737
      %v739 = vld [vmem:[%s659 + $0x84] sm:$0xf]
      %v740 = vsel %vm661, %v532, %v739
      %741 = vst [vmem:[%s659 + $0x84] sm:$0xf] %v740
      %742 = vst.msk [vmem:[%s659 + $0x88] sm:$0xf] %vm183, %v541
      %v743 = vld [vmem:[%s659 + $0x8c] sm:$0x1]
      %v744 = vsel %vm194, %v542, %v743
      %745 = vst [vmem:[%s659 + $0x8c] sm:$0x1] %v744
      %v746 = vld [vmem:[%s659 + $0x90] sm:$0xf]
      %v747 = vsel %vm661, %v549, %v746
      %748 = vst [vmem:[%s659 + $0x90] sm:$0xf] %v747
      %749 = vst.msk [vmem:[%s659 + $0x94] sm:$0xf] %vm183, %v558
      %v750 = vld [vmem:[%s659 + $0x98] sm:$0x1]
      %v751 = vsel %vm194, %v559, %v750
      %752 = vst [vmem:[%s659 + $0x98] sm:$0x1] %v751
      %v753 = vld [vmem:[%s659 + $0x9c] sm:$0xf]
      %v754 = vsel %vm661, %v566, %v753
      %755 = vst [vmem:[%s659 + $0x9c] sm:$0xf] %v754
      %756 = vst.msk [vmem:[%s659 + $0xa0] sm:$0xf] %vm183, %v575
      %v757 = vld [vmem:[%s659 + $0xa4] sm:$0x1]
      %v758 = vsel %vm194, %v576, %v757
      %759 = vst [vmem:[%s659 + $0xa4] sm:$0x1] %v758
      %v760 = vld [vmem:[%s659 + $0xa8] sm:$0xf]
      %v761 = vsel %vm661, %v583, %v760
      %762 = vst [vmem:[%s659 + $0xa8] sm:$0xf] %v761
      %763 = vst.msk [vmem:[%s659 + $0xac] sm:$0xf] %vm183, %v592
      %v764 = vld [vmem:[%s659 + $0xb0] sm:$0x1]
      %v765 = vsel %vm194, %v593, %v764
      %766 = vst [vmem:[%s659 + $0xb0] sm:$0x1] %v765
      %v767 = vld [vmem:[%s659 + $0xb4] sm:$0xf]
      %v768 = vsel %vm661, %v600, %v767
      %769 = vst [vmem:[%s659 + $0xb4] sm:$0xf] %v768
      %770 = vst.msk [vmem:[%s659 + $0xb8] sm:$0xf] %vm183, %v609
      %v771 = vld [vmem:[%s659 + $0xbc] sm:$0x1]
      %v772 = vsel %vm194, %v610, %v771
      %773 = vst [vmem:[%s659 + $0xbc] sm:$0x1] %v772
      %v774 = vld [vmem:[#allocation2] sm:$0xf]
      %v775 = vld [vmem:[#allocation2 + $0x4] sm:$0xf]
      %v776 = vld [vmem:[#allocation2 + $0xc] sm:$0xf]
      %v777 = vld [vmem:[#allocation2 + $0x10] sm:$0xf]
      %v778 = vld [vmem:[#allocation2 + $0x18] sm:$0xf]
      %v779 = vld [vmem:[#allocation2 + $0x1c] sm:$0xf]
      %v780 = vld [vmem:[#allocation2 + $0x24] sm:$0xf]
      %v781 = vld [vmem:[#allocation2 + $0x28] sm:$0xf]
      %v782 = vld [vmem:[#allocation2 + $0x30] sm:$0xf]
      %v783 = vld [vmem:[#allocation2 + $0x34] sm:$0xf]
      %v784 = vld [vmem:[#allocation2 + $0x3c] sm:$0xf]
      %v785 = vld [vmem:[#allocation2 + $0x40] sm:$0xf]
      %v786 = vld [vmem:[#allocation2 + $0x48] sm:$0xf]
      %v787 = vld [vmem:[#allocation2 + $0x4c] sm:$0xf]
      %v788 = vld [vmem:[#allocation2 + $0x54] sm:$0xf]
      %v789 = vld [vmem:[#allocation2 + $0x58] sm:$0xf]
      %v790 = vld [vmem:[#allocation2 + $0x60] sm:$0xf]
      %v791 = vld [vmem:[#allocation2 + $0x64] sm:$0xf]
      %v792 = vld [vmem:[#allocation2 + $0x6c] sm:$0xf]
      %v793 = vld [vmem:[#allocation2 + $0x70] sm:$0xf]
      %v794 = vld [vmem:[#allocation2 + $0x78] sm:$0xf]
      %v795 = vld [vmem:[#allocation2 + $0x7c] sm:$0xf]
      %v796 = vld [vmem:[#allocation2 + $0x84] sm:$0xf]
      %v797 = vld [vmem:[#allocation2 + $0x88] sm:$0xf]
      %v798 = vld [vmem:[#allocation2 + $0x90] sm:$0xf]
      %v799 = vld [vmem:[#allocation2 + $0x94] sm:$0xf]
      %v800 = vld [vmem:[#allocation2 + $0x9c] sm:$0xf]
      %v801 = vld [vmem:[#allocation2 + $0xa0] sm:$0xf]
      %v802 = vld [vmem:[#allocation2 + $0xa8] sm:$0xf]
      %v803 = vld [vmem:[#allocation2 + $0xac] sm:$0xf]
      %v804 = vld [vmem:[#allocation2 + $0xb4] sm:$0xf]
      %v805 = vld [vmem:[#allocation2 + $0xb8] sm:$0xf]
      %v806 = vld [vmem:[#allocation2 + $0x8] sm:$0x1]
      %v807 = vld [vmem:[#allocation2 + $0x14] sm:$0x1]
      %v808 = vld [vmem:[#allocation2 + $0x20] sm:$0x1]
      %v809 = vld [vmem:[#allocation2 + $0x2c] sm:$0x1]
      %v810 = vld [vmem:[#allocation2 + $0x38] sm:$0x1]
      %v811 = vld [vmem:[#allocation2 + $0x44] sm:$0x1]
      %v812 = vld [vmem:[#allocation2 + $0x50] sm:$0x1]
      %v813 = vld [vmem:[#allocation2 + $0x5c] sm:$0x1]
      %v814 = vld [vmem:[#allocation2 + $0x68] sm:$0x1]
      %v815 = vld [vmem:[#allocation2 + $0x74] sm:$0x1]
      %v816 = vld [vmem:[#allocation2 + $0x80] sm:$0x1]
      %v817 = vld [vmem:[#allocation2 + $0x8c] sm:$0x1]
      %v818 = vld [vmem:[#allocation2 + $0x98] sm:$0x1]
      %v819 = vld [vmem:[#allocation2 + $0xa4] sm:$0x1]
      %v820 = vld [vmem:[#allocation2 + $0xb0] sm:$0x1]
      %v821 = vld [vmem:[#allocation2 + $0xbc] sm:$0x1]
      %vm822 = vsmask.f32 3328
      %vm823 = vsmask.f32 7440
      %vm824 = vmor %vm822, %vm823
      %v826 = vshrl.u32 %v774, 16
      %v828 = vrot.slane %v826, 4
      %v829 = vshll.u32 %v774, 16
      %v831 = vrot.slane %v829, 5
      %v832 = vor.u32 %v828, %v831
      %v833 = vrot.slane %v832, 4
      %v835 = vshll.u32 %v775, 16
      %v837 = vrot.slane %v835, 5
      %v838 = vsel %vm824, %v833, %v837
      %v839 = vshrl.u32 %v775, 16
      %v841 = vrot.slane %v839, 4
      %v842 = vor.u32 %v841, %v837
      %v843 = vrot.slane %v842, 4
      %v845 = vshll.u32 %v806, 16
      %v847 = vrot.slane %v845, 5
      %v848 = vsel %vm824, %v843, %v847
      %v850 = vshrl.u32 %v776, 16
      %v852 = vrot.slane %v850, 4
      %v853 = vshll.u32 %v776, 16
      %v855 = vrot.slane %v853, 5
      %v856 = vor.u32 %v852, %v855
      %v857 = vrot.slane %v856, 4
      %v859 = vshll.u32 %v777, 16
      %v861 = vrot.slane %v859, 5
      %v862 = vsel %vm824, %v857, %v861
      %v863 = vshrl.u32 %v777, 16
      %v865 = vrot.slane %v863, 4
      %v866 = vor.u32 %v865, %v861
      %v867 = vrot.slane %v866, 4
      %v869 = vshll.u32 %v807, 16
      %v871 = vrot.slane %v869, 5
      %v872 = vsel %vm824, %v867, %v871
      %v874 = vshrl.u32 %v778, 16
      %v876 = vrot.slane %v874, 4
      %v877 = vshll.u32 %v778, 16
      %v879 = vrot.slane %v877, 5
      %v880 = vor.u32 %v876, %v879
      %v881 = vrot.slane %v880, 4
      %v883 = vshll.u32 %v779, 16
      %v885 = vrot.slane %v883, 5
      %v886 = vsel %vm824, %v881, %v885
      %v887 = vshrl.u32 %v779, 16
      %v889 = vrot.slane %v887, 4
      %v890 = vor.u32 %v889, %v885
      %v891 = vrot.slane %v890, 4
      %v893 = vshll.u32 %v808, 16
      %v895 = vrot.slane %v893, 5
      %v896 = vsel %vm824, %v891, %v895
      %v898 = vshrl.u32 %v780, 16
      %v900 = vrot.slane %v898, 4
      %v901 = vshll.u32 %v780, 16
      %v903 = vrot.slane %v901, 5
      %v904 = vor.u32 %v900, %v903
      %v905 = vrot.slane %v904, 4
      %v907 = vshll.u32 %v781, 16
      %v909 = vrot.slane %v907, 5
      %v910 = vsel %vm824, %v905, %v909
      %v911 = vshrl.u32 %v781, 16
      %v913 = vrot.slane %v911, 4
      %v914 = vor.u32 %v913, %v909
      %v915 = vrot.slane %v914, 4
      %v917 = vshll.u32 %v809, 16
      %v919 = vrot.slane %v917, 5
      %v920 = vsel %vm824, %v915, %v919
      %v922 = vshrl.u32 %v782, 16
      %v924 = vrot.slane %v922, 4
      %v925 = vshll.u32 %v782, 16
      %v927 = vrot.slane %v925, 5
      %v928 = vor.u32 %v924, %v927
      %v929 = vrot.slane %v928, 4
      %v931 = vshll.u32 %v783, 16
      %v933 = vrot.slane %v931, 5
      %v934 = vsel %vm824, %v929, %v933
      %v935 = vshrl.u32 %v783, 16
      %v937 = vrot.slane %v935, 4
      %v938 = vor.u32 %v937, %v933
      %v939 = vrot.slane %v938, 4
      %v941 = vshll.u32 %v810, 16
      %v943 = vrot.slane %v941, 5
      %v944 = vsel %vm824, %v939, %v943
      %v946 = vshrl.u32 %v784, 16
      %v948 = vrot.slane %v946, 4
      %v949 = vshll.u32 %v784, 16
      %v951 = vrot.slane %v949, 5
      %v952 = vor.u32 %v948, %v951
      %v953 = vrot.slane %v952, 4
      %v955 = vshll.u32 %v785, 16
      %v957 = vrot.slane %v955, 5
      %v958 = vsel %vm824, %v953, %v957
      %v959 = vshrl.u32 %v785, 16
      %v961 = vrot.slane %v959, 4
      %v962 = vor.u32 %v961, %v957
      %v963 = vrot.slane %v962, 4
      %v965 = vshll.u32 %v811, 16
      %v967 = vrot.slane %v965, 5
      %v968 = vsel %vm824, %v963, %v967
      %v970 = vshrl.u32 %v786, 16
      %v972 = vrot.slane %v970, 4
      %v973 = vshll.u32 %v786, 16
      %v975 = vrot.slane %v973, 5
      %v976 = vor.u32 %v972, %v975
      %v977 = vrot.slane %v976, 4
      %v979 = vshll.u32 %v787, 16
      %v981 = vrot.slane %v979, 5
      %v982 = vsel %vm824, %v977, %v981
      %v983 = vshrl.u32 %v787, 16
      %v985 = vrot.slane %v983, 4
      %v986 = vor.u32 %v985, %v981
      %v987 = vrot.slane %v986, 4
      %v989 = vshll.u32 %v812, 16
      %v991 = vrot.slane %v989, 5
      %v992 = vsel %vm824, %v987, %v991
      %v994 = vshrl.u32 %v788, 16
      %v996 = vrot.slane %v994, 4
      %v997 = vshll.u32 %v788, 16
      %v999 = vrot.slane %v997, 5
      %v1000 = vor.u32 %v996, %v999
      %v1001 = vrot.slane %v1000, 4
      %v1003 = vshll.u32 %v789, 16
      %v1005 = vrot.slane %v1003, 5
      %v1006 = vsel %vm824, %v1001, %v1005
      %v1007 = vshrl.u32 %v789, 16
      %v1009 = vrot.slane %v1007, 4
      %v1010 = vor.u32 %v1009, %v1005
      %v1011 = vrot.slane %v1010, 4
      %v1013 = vshll.u32 %v813, 16
      %v1015 = vrot.slane %v1013, 5
      %v1016 = vsel %vm824, %v1011, %v1015
      %v1018 = vshrl.u32 %v790, 16
      %v1020 = vrot.slane %v1018, 4
      %v1021 = vshll.u32 %v790, 16
      %v1023 = vrot.slane %v1021, 5
      %v1024 = vor.u32 %v1020, %v1023
      %v1025 = vrot.slane %v1024, 4
      %v1027 = vshll.u32 %v791, 16
      %v1029 = vrot.slane %v1027, 5
      %v1030 = vsel %vm824, %v1025, %v1029
      %v1031 = vshrl.u32 %v791, 16
      %v1033 = vrot.slane %v1031, 4
      %v1034 = vor.u32 %v1033, %v1029
      %v1035 = vrot.slane %v1034, 4
      %v1037 = vshll.u32 %v814, 16
      %v1039 = vrot.slane %v1037, 5
      %v1040 = vsel %vm824, %v1035, %v1039
      %v1042 = vshrl.u32 %v792, 16
      %v1044 = vrot.slane %v1042, 4
      %v1045 = vshll.u32 %v792, 16
      %v1047 = vrot.slane %v1045, 5
      %v1048 = vor.u32 %v1044, %v1047
      %v1049 = vrot.slane %v1048, 4
      %v1051 = vshll.u32 %v793, 16
      %v1053 = vrot.slane %v1051, 5
      %v1054 = vsel %vm824, %v1049, %v1053
      %v1055 = vshrl.u32 %v793, 16
      %v1057 = vrot.slane %v1055, 4
      %v1058 = vor.u32 %v1057, %v1053
      %v1059 = vrot.slane %v1058, 4
      %v1061 = vshll.u32 %v815, 16
      %v1063 = vrot.slane %v1061, 5
      %v1064 = vsel %vm824, %v1059, %v1063
      %v1066 = vshrl.u32 %v794, 16
      %v1068 = vrot.slane %v1066, 4
      %v1069 = vshll.u32 %v794, 16
      %v1071 = vrot.slane %v1069, 5
      %v1072 = vor.u32 %v1068, %v1071
      %v1073 = vrot.slane %v1072, 4
      %v1075 = vshll.u32 %v795, 16
      %v1077 = vrot.slane %v1075, 5
      %v1078 = vsel %vm824, %v1073, %v1077
      %v1079 = vshrl.u32 %v795, 16
      %v1081 = vrot.slane %v1079, 4
      %v1082 = vor.u32 %v1081, %v1077
      %v1083 = vrot.slane %v1082, 4
      %v1085 = vshll.u32 %v816, 16
      %v1087 = vrot.slane %v1085, 5
      %v1088 = vsel %vm824, %v1083, %v1087
      %v1090 = vshrl.u32 %v796, 16
      %v1092 = vrot.slane %v1090, 4
      %v1093 = vshll.u32 %v796, 16
      %v1095 = vrot.slane %v1093, 5
      %v1096 = vor.u32 %v1092, %v1095
      %v1097 = vrot.slane %v1096, 4
      %v1099 = vshll.u32 %v797, 16
      %v1101 = vrot.slane %v1099, 5
      %v1102 = vsel %vm824, %v1097, %v1101
      %v1103 = vshrl.u32 %v797, 16
      %v1105 = vrot.slane %v1103, 4
      %v1106 = vor.u32 %v1105, %v1101
      %v1107 = vrot.slane %v1106, 4
      %v1109 = vshll.u32 %v817, 16
      %v1111 = vrot.slane %v1109, 5
      %v1112 = vsel %vm824, %v1107, %v1111
      %v1114 = vshrl.u32 %v798, 16
      %v1116 = vrot.slane %v1114, 4
      %v1117 = vshll.u32 %v798, 16
      %v1119 = vrot.slane %v1117, 5
      %v1120 = vor.u32 %v1116, %v1119
      %v1121 = vrot.slane %v1120, 4
      %v1123 = vshll.u32 %v799, 16
      %v1125 = vrot.slane %v1123, 5
      %v1126 = vsel %vm824, %v1121, %v1125
      %v1127 = vshrl.u32 %v799, 16
      %v1129 = vrot.slane %v1127, 4
      %v1130 = vor.u32 %v1129, %v1125
      %v1131 = vrot.slane %v1130, 4
      %v1133 = vshll.u32 %v818, 16
      %v1135 = vrot.slane %v1133, 5
      %v1136 = vsel %vm824, %v1131, %v1135
      %v1138 = vshrl.u32 %v800, 16
      %v1140 = vrot.slane %v1138, 4
      %v1141 = vshll.u32 %v800, 16
      %v1143 = vrot.slane %v1141, 5
      %v1144 = vor.u32 %v1140, %v1143
      %v1145 = vrot.slane %v1144, 4
      %v1147 = vshll.u32 %v801, 16
      %v1149 = vrot.slane %v1147, 5
      %v1150 = vsel %vm824, %v1145, %v1149
      %v1151 = vshrl.u32 %v801, 16
      %v1153 = vrot.slane %v1151, 4
      %v1154 = vor.u32 %v1153, %v1149
      %v1155 = vrot.slane %v1154, 4
      %v1157 = vshll.u32 %v819, 16
      %v1159 = vrot.slane %v1157, 5
      %v1160 = vsel %vm824, %v1155, %v1159
      %v1162 = vshrl.u32 %v802, 16
      %v1164 = vrot.slane %v1162, 4
      %v1165 = vshll.u32 %v802, 16
      %v1167 = vrot.slane %v1165, 5
      %v1168 = vor.u32 %v1164, %v1167
      %v1169 = vrot.slane %v1168, 4
      %v1171 = vshll.u32 %v803, 16
      %v1173 = vrot.slane %v1171, 5
      %v1174 = vsel %vm824, %v1169, %v1173
      %v1175 = vshrl.u32 %v803, 16
      %v1177 = vrot.slane %v1175, 4
      %v1178 = vor.u32 %v1177, %v1173
      %v1179 = vrot.slane %v1178, 4
      %v1181 = vshll.u32 %v820, 16
      %v1183 = vrot.slane %v1181, 5
      %v1184 = vsel %vm824, %v1179, %v1183
      %v1186 = vshrl.u32 %v804, 16
      %v1188 = vrot.slane %v1186, 4
      %v1189 = vshll.u32 %v804, 16
      %v1191 = vrot.slane %v1189, 5
      %v1192 = vor.u32 %v1188, %v1191
      %v1193 = vrot.slane %v1192, 4
      %v1195 = vshll.u32 %v805, 16
      %v1197 = vrot.slane %v1195, 5
      %v1198 = vsel %vm824, %v1193, %v1197
      %v1199 = vshrl.u32 %v805, 16
      %v1201 = vrot.slane %v1199, 4
      %v1202 = vor.u32 %v1201, %v1197
      %v1203 = vrot.slane %v1202, 4
      %v1205 = vshll.u32 %v821, 16
      %v1207 = vrot.slane %v1205, 5
      %v1208 = vsel %vm824, %v1203, %v1207
      %v1209 = vld [vmem:[#allocation2] sm:$0xe]
      %v1210 = vld [vmem:[#allocation2 + $0xc] sm:$0xe]
      %v1211 = vld [vmem:[#allocation2 + $0x18] sm:$0xe]
      %v1212 = vld [vmem:[#allocation2 + $0x24] sm:$0xe]
      %v1213 = vld [vmem:[#allocation2 + $0x30] sm:$0xe]
      %v1214 = vld [vmem:[#allocation2 + $0x3c] sm:$0xe]
      %v1215 = vld [vmem:[#allocation2 + $0x48] sm:$0xe]
      %v1216 = vld [vmem:[#allocation2 + $0x54] sm:$0xe]
      %v1217 = vld [vmem:[#allocation2 + $0x60] sm:$0xe]
      %v1218 = vld [vmem:[#allocation2 + $0x6c] sm:$0xe]
      %v1219 = vld [vmem:[#allocation2 + $0x78] sm:$0xe]
      %v1220 = vld [vmem:[#allocation2 + $0x84] sm:$0xe]
      %v1221 = vld [vmem:[#allocation2 + $0x90] sm:$0xe]
      %v1222 = vld [vmem:[#allocation2 + $0x9c] sm:$0xe]
      %v1223 = vld [vmem:[#allocation2 + $0xa8] sm:$0xe]
      %v1224 = vld [vmem:[#allocation2 + $0xb4] sm:$0xe]
      %vm1273 = vcmask 1042432
      %vm1274 = vcmask 1046532
      %vm1275 = vmor %vm1273, %vm1274
      %v1276 = vrot.slane %v1209, 5
      %v1277 = vrot.slane %v1276, 4
      %v1278 = vrot.slane %v775, 5
      %v1279 = vsel %vm1275, %v1277, %v1278
      %v1280 = vrot.slane %v1278, 4
      %v1281 = vrot.slane %v806, 5
      %v1282 = vsel %vm1275, %v1280, %v1281
      %v1283 = vrot.slane %v1210, 5
      %v1284 = vrot.slane %v1283, 4
      %v1285 = vrot.slane %v777, 5
      %v1286 = vsel %vm1275, %v1284, %v1285
      %v1287 = vrot.slane %v1285, 4
      %v1288 = vrot.slane %v807, 5
      %v1289 = vsel %vm1275, %v1287, %v1288
      %v1290 = vrot.slane %v1211, 5
      %v1291 = vrot.slane %v1290, 4
      %v1292 = vrot.slane %v779, 5
      %v1293 = vsel %vm1275, %v1291, %v1292
      %v1294 = vrot.slane %v1292, 4
      %v1295 = vrot.slane %v808, 5
      %v1296 = vsel %vm1275, %v1294, %v1295
      %v1297 = vrot.slane %v1212, 5
      %v1298 = vrot.slane %v1297, 4
      %v1299 = vrot.slane %v781, 5
      %v1300 = vsel %vm1275, %v1298, %v1299
      %v1301 = vrot.slane %v1299, 4
      %v1302 = vrot.slane %v809, 5
      %v1303 = vsel %vm1275, %v1301, %v1302
      %v1304 = vrot.slane %v1213, 5
      %v1305 = vrot.slane %v1304, 4
      %v1306 = vrot.slane %v783, 5
      %v1307 = vsel %vm1275, %v1305, %v1306
      %v1308 = vrot.slane %v1306, 4
      %v1309 = vrot.slane %v810, 5
      %v1310 = vsel %vm1275, %v1308, %v1309
      %v1311 = vrot.slane %v1214, 5
      %v1312 = vrot.slane %v1311, 4
      %v1313 = vrot.slane %v785, 5
      %v1314 = vsel %vm1275, %v1312, %v1313
      %v1315 = vrot.slane %v1313, 4
      %v1316 = vrot.slane %v811, 5
      %v1317 = vsel %vm1275, %v1315, %v1316
      %v1318 = vrot.slane %v1215, 5
      %v1319 = vrot.slane %v1318, 4
      %v1320 = vrot.slane %v787, 5
      %v1321 = vsel %vm1275, %v1319, %v1320
      %v1322 = vrot.slane %v1320, 4
      %v1323 = vrot.slane %v812, 5
      %v1324 = vsel %vm1275, %v1322, %v1323
      %v1325 = vrot.slane %v1216, 5
      %v1326 = vrot.slane %v1325, 4
      %v1327 = vrot.slane %v789, 5
      %v1328 = vsel %vm1275, %v1326, %v1327
      %v1329 = vrot.slane %v1327, 4
      %v1330 = vrot.slane %v813, 5
      %v1331 = vsel %vm1275, %v1329, %v1330
      %v1332 = vrot.slane %v1217, 5
      %v1333 = vrot.slane %v1332, 4
      %v1334 = vrot.slane %v791, 5
      %v1335 = vsel %vm1275, %v1333, %v1334
      %v1336 = vrot.slane %v1334, 4
      %v1337 = vrot.slane %v814, 5
      %v1338 = vsel %vm1275, %v1336, %v1337
      %v1339 = vrot.slane %v1218, 5
      %v1340 = vrot.slane %v1339, 4
      %v1341 = vrot.slane %v793, 5
      %v1342 = vsel %vm1275, %v1340, %v1341
      %v1343 = vrot.slane %v1341, 4
      %v1344 = vrot.slane %v815, 5
      %v1345 = vsel %vm1275, %v1343, %v1344
      %v1346 = vrot.slane %v1219, 5
      %v1347 = vrot.slane %v1346, 4
      %v1348 = vrot.slane %v795, 5
      %v1349 = vsel %vm1275, %v1347, %v1348
      %v1350 = vrot.slane %v1348, 4
      %v1351 = vrot.slane %v816, 5
      %v1352 = vsel %vm1275, %v1350, %v1351
      %v1353 = vrot.slane %v1220, 5
      %v1354 = vrot.slane %v1353, 4
      %v1355 = vrot.slane %v797, 5
      %v1356 = vsel %vm1275, %v1354, %v1355
      %v1357 = vrot.slane %v1355, 4
      %v1358 = vrot.slane %v817, 5
      %v1359 = vsel %vm1275, %v1357, %v1358
      %v1360 = vrot.slane %v1221, 5
      %v1361 = vrot.slane %v1360, 4
      %v1362 = vrot.slane %v799, 5
      %v1363 = vsel %vm1275, %v1361, %v1362
      %v1364 = vrot.slane %v1362, 4
      %v1365 = vrot.slane %v818, 5
      %v1366 = vsel %vm1275, %v1364, %v1365
      %v1367 = vrot.slane %v1222, 5
      %v1368 = vrot.slane %v1367, 4
      %v1369 = vrot.slane %v801, 5
      %v1370 = vsel %vm1275, %v1368, %v1369
      %v1371 = vrot.slane %v1369, 4
      %v1372 = vrot.slane %v819, 5
      %v1373 = vsel %vm1275, %v1371, %v1372
      %v1374 = vrot.slane %v1223, 5
      %v1375 = vrot.slane %v1374, 4
      %v1376 = vrot.slane %v803, 5
      %v1377 = vsel %vm1275, %v1375, %v1376
      %v1378 = vrot.slane %v1376, 4
      %v1379 = vrot.slane %v820, 5
      %v1380 = vsel %vm1275, %v1378, %v1379
      %v1381 = vrot.slane %v1224, 5
      %v1382 = vrot.slane %v1381, 4
      %v1383 = vrot.slane %v805, 5
      %v1384 = vsel %vm1275, %v1382, %v1383
      %v1385 = vrot.slane %v1383, 4
      %v1386 = vrot.slane %v821, 5
      %v1387 = vsel %vm1275, %v1385, %v1386
      %v1388 = vld [vmem:[%s659] sm:$0xf]
      %v1389 = vld [vmem:[%s659 + $0x4] sm:$0xf]
      %v1390 = vld [vmem:[%s659 + $0xc] sm:$0xf]
      %v1391 = vld [vmem:[%s659 + $0x10] sm:$0xf]
      %v1392 = vld [vmem:[%s659 + $0x18] sm:$0xf]
      %v1393 = vld [vmem:[%s659 + $0x1c] sm:$0xf]
      %v1394 = vld [vmem:[%s659 + $0x24] sm:$0xf]
      %v1395 = vld [vmem:[%s659 + $0x28] sm:$0xf]
      %v1396 = vld [vmem:[%s659 + $0x30] sm:$0xf]
      %v1397 = vld [vmem:[%s659 + $0x34] sm:$0xf]
      %v1398 = vld [vmem:[%s659 + $0x3c] sm:$0xf]
      %v1399 = vld [vmem:[%s659 + $0x40] sm:$0xf]
      %v1400 = vld [vmem:[%s659 + $0x48] sm:$0xf]
      %v1401 = vld [vmem:[%s659 + $0x4c] sm:$0xf]
      %v1402 = vld [vmem:[%s659 + $0x54] sm:$0xf]
      %v1403 = vld [vmem:[%s659 + $0x58] sm:$0xf]
      %v1404 = vld [vmem:[%s659 + $0x60] sm:$0xf]
      %v1405 = vld [vmem:[%s659 + $0x64] sm:$0xf]
      %v1406 = vld [vmem:[%s659 + $0x6c] sm:$0xf]
      %v1407 = vld [vmem:[%s659 + $0x70] sm:$0xf]
      %v1408 = vld [vmem:[%s659 + $0x78] sm:$0xf]
      %v1409 = vld [vmem:[%s659 + $0x7c] sm:$0xf]
      %v1410 = vld [vmem:[%s659 + $0x84] sm:$0xf]
      %v1411 = vld [vmem:[%s659 + $0x88] sm:$0xf]
      %v1412 = vld [vmem:[%s659 + $0x90] sm:$0xf]
      %v1413 = vld [vmem:[%s659 + $0x94] sm:$0xf]
      %v1414 = vld [vmem:[%s659 + $0x9c] sm:$0xf]
      %v1415 = vld [vmem:[%s659 + $0xa0] sm:$0xf]
      %v1416 = vld [vmem:[%s659 + $0xa8] sm:$0xf]
      %v1417 = vld [vmem:[%s659 + $0xac] sm:$0xf]
      %v1418 = vld [vmem:[%s659 + $0xb4] sm:$0xf]
      %v1419 = vld [vmem:[%s659 + $0xb8] sm:$0xf]
      %v1420 = vld [vmem:[%s659 + $0x8] sm:$0x1]
      %v1421 = vld [vmem:[%s659 + $0x14] sm:$0x1]
      %v1422 = vld [vmem:[%s659 + $0x20] sm:$0x1]
      %v1423 = vld [vmem:[%s659 + $0x2c] sm:$0x1]
      %v1424 = vld [vmem:[%s659 + $0x38] sm:$0x1]
      %v1425 = vld [vmem:[%s659 + $0x44] sm:$0x1]
      %v1426 = vld [vmem:[%s659 + $0x50] sm:$0x1]
      %v1427 = vld [vmem:[%s659 + $0x5c] sm:$0x1]
      %v1428 = vld [vmem:[%s659 + $0x68] sm:$0x1]
      %v1429 = vld [vmem:[%s659 + $0x74] sm:$0x1]
      %v1430 = vld [vmem:[%s659 + $0x80] sm:$0x1]
      %v1431 = vld [vmem:[%s659 + $0x8c] sm:$0x1]
      %v1432 = vld [vmem:[%s659 + $0x98] sm:$0x1]
      %v1433 = vld [vmem:[%s659 + $0xa4] sm:$0x1]
      %v1434 = vld [vmem:[%s659 + $0xb0] sm:$0x1]
      %v1435 = vld [vmem:[%s659 + $0xbc] sm:$0x1]
      %v1437 = vshrl.u32 %v1388, 16
      %v1439 = vrot.slane %v1437, 4
      %v1440 = vshll.u32 %v1388, 16
      %v1442 = vrot.slane %v1440, 5
      %v1443 = vor.u32 %v1439, %v1442
      %v1444 = vrot.slane %v1443, 4
      %v1446 = vshll.u32 %v1389, 16
      %v1448 = vrot.slane %v1446, 5
      %v1449 = vsel %vm824, %v1444, %v1448
      %v1450 = vshrl.u32 %v1389, 16
      %v1452 = vrot.slane %v1450, 4
      %v1453 = vor.u32 %v1452, %v1448
      %v1454 = vrot.slane %v1453, 4
      %v1456 = vshll.u32 %v1420, 16
      %v1458 = vrot.slane %v1456, 5
      %v1459 = vsel %vm824, %v1454, %v1458
      %v1461 = vshrl.u32 %v1390, 16
      %v1463 = vrot.slane %v1461, 4
      %v1464 = vshll.u32 %v1390, 16
      %v1466 = vrot.slane %v1464, 5
      %v1467 = vor.u32 %v1463, %v1466
      %v1468 = vrot.slane %v1467, 4
      %v1470 = vshll.u32 %v1391, 16
      %v1472 = vrot.slane %v1470, 5
      %v1473 = vsel %vm824, %v1468, %v1472
      %v1474 = vshrl.u32 %v1391, 16
      %v1476 = vrot.slane %v1474, 4
      %v1477 = vor.u32 %v1476, %v1472
      %v1478 = vrot.slane %v1477, 4
      %v1480 = vshll.u32 %v1421, 16
      %v1482 = vrot.slane %v1480, 5
      %v1483 = vsel %vm824, %v1478, %v1482
      %v1485 = vshrl.u32 %v1392, 16
      %v1487 = vrot.slane %v1485, 4
      %v1488 = vshll.u32 %v1392, 16
      %v1490 = vrot.slane %v1488, 5
      %v1491 = vor.u32 %v1487, %v1490
      %v1492 = vrot.slane %v1491, 4
      %v1494 = vshll.u32 %v1393, 16
      %v1496 = vrot.slane %v1494, 5
      %v1497 = vsel %vm824, %v1492, %v1496
      %v1498 = vshrl.u32 %v1393, 16
      %v1500 = vrot.slane %v1498, 4
      %v1501 = vor.u32 %v1500, %v1496
      %v1502 = vrot.slane %v1501, 4
      %v1504 = vshll.u32 %v1422, 16
      %v1506 = vrot.slane %v1504, 5
      %v1507 = vsel %vm824, %v1502, %v1506
      %v1509 = vshrl.u32 %v1394, 16
      %v1511 = vrot.slane %v1509, 4
      %v1512 = vshll.u32 %v1394, 16
      %v1514 = vrot.slane %v1512, 5
      %v1515 = vor.u32 %v1511, %v1514
      %v1516 = vrot.slane %v1515, 4
      %v1518 = vshll.u32 %v1395, 16
      %v1520 = vrot.slane %v1518, 5
      %v1521 = vsel %vm824, %v1516, %v1520
      %v1522 = vshrl.u32 %v1395, 16
      %v1524 = vrot.slane %v1522, 4
      %v1525 = vor.u32 %v1524, %v1520
      %v1526 = vrot.slane %v1525, 4
      %v1528 = vshll.u32 %v1423, 16
      %v1530 = vrot.slane %v1528, 5
      %v1531 = vsel %vm824, %v1526, %v1530
      %v1533 = vshrl.u32 %v1396, 16
      %v1535 = vrot.slane %v1533, 4
      %v1536 = vshll.u32 %v1396, 16
      %v1538 = vrot.slane %v1536, 5
      %v1539 = vor.u32 %v1535, %v1538
      %v1540 = vrot.slane %v1539, 4
      %v1542 = vshll.u32 %v1397, 16
      %v1544 = vrot.slane %v1542, 5
      %v1545 = vsel %vm824, %v1540, %v1544
      %v1546 = vshrl.u32 %v1397, 16
      %v1548 = vrot.slane %v1546, 4
      %v1549 = vor.u32 %v1548, %v1544
      %v1550 = vrot.slane %v1549, 4
      %v1552 = vshll.u32 %v1424, 16
      %v1554 = vrot.slane %v1552, 5
      %v1555 = vsel %vm824, %v1550, %v1554
      %v1557 = vshrl.u32 %v1398, 16
      %v1559 = vrot.slane %v1557, 4
      %v1560 = vshll.u32 %v1398, 16
      %v1562 = vrot.slane %v1560, 5
      %v1563 = vor.u32 %v1559, %v1562
      %v1564 = vrot.slane %v1563, 4
      %v1566 = vshll.u32 %v1399, 16
      %v1568 = vrot.slane %v1566, 5
      %v1569 = vsel %vm824, %v1564, %v1568
      %v1570 = vshrl.u32 %v1399, 16
      %v1572 = vrot.slane %v1570, 4
      %v1573 = vor.u32 %v1572, %v1568
      %v1574 = vrot.slane %v1573, 4
      %v1576 = vshll.u32 %v1425, 16
      %v1578 = vrot.slane %v1576, 5
      %v1579 = vsel %vm824, %v1574, %v1578
      %v1581 = vshrl.u32 %v1400, 16
      %v1583 = vrot.slane %v1581, 4
      %v1584 = vshll.u32 %v1400, 16
      %v1586 = vrot.slane %v1584, 5
      %v1587 = vor.u32 %v1583, %v1586
      %v1588 = vrot.slane %v1587, 4
      %v1590 = vshll.u32 %v1401, 16
      %v1592 = vrot.slane %v1590, 5
      %v1593 = vsel %vm824, %v1588, %v1592
      %v1594 = vshrl.u32 %v1401, 16
      %v1596 = vrot.slane %v1594, 4
      %v1597 = vor.u32 %v1596, %v1592
      %v1598 = vrot.slane %v1597, 4
      %v1600 = vshll.u32 %v1426, 16
      %v1602 = vrot.slane %v1600, 5
      %v1603 = vsel %vm824, %v1598, %v1602
      %v1605 = vshrl.u32 %v1402, 16
      %v1607 = vrot.slane %v1605, 4
      %v1608 = vshll.u32 %v1402, 16
      %v1610 = vrot.slane %v1608, 5
      %v1611 = vor.u32 %v1607, %v1610
      %v1612 = vrot.slane %v1611, 4
      %v1614 = vshll.u32 %v1403, 16
      %v1616 = vrot.slane %v1614, 5
      %v1617 = vsel %vm824, %v1612, %v1616
      %v1618 = vshrl.u32 %v1403, 16
      %v1620 = vrot.slane %v1618, 4
      %v1621 = vor.u32 %v1620, %v1616
      %v1622 = vrot.slane %v1621, 4
      %v1624 = vshll.u32 %v1427, 16
      %v1626 = vrot.slane %v1624, 5
      %v1627 = vsel %vm824, %v1622, %v1626
      %v1629 = vshrl.u32 %v1404, 16
      %v1631 = vrot.slane %v1629, 4
      %v1632 = vshll.u32 %v1404, 16
      %v1634 = vrot.slane %v1632, 5
      %v1635 = vor.u32 %v1631, %v1634
      %v1636 = vrot.slane %v1635, 4
      %v1638 = vshll.u32 %v1405, 16
      %v1640 = vrot.slane %v1638, 5
      %v1641 = vsel %vm824, %v1636, %v1640
      %v1642 = vshrl.u32 %v1405, 16
      %v1644 = vrot.slane %v1642, 4
      %v1645 = vor.u32 %v1644, %v1640
      %v1646 = vrot.slane %v1645, 4
      %v1648 = vshll.u32 %v1428, 16
      %v1650 = vrot.slane %v1648, 5
      %v1651 = vsel %vm824, %v1646, %v1650
      %v1653 = vshrl.u32 %v1406, 16
      %v1655 = vrot.slane %v1653, 4
      %v1656 = vshll.u32 %v1406, 16
      %v1658 = vrot.slane %v1656, 5
      %v1659 = vor.u32 %v1655, %v1658
      %v1660 = vrot.slane %v1659, 4
      %v1662 = vshll.u32 %v1407, 16
      %v1664 = vrot.slane %v1662, 5
      %v1665 = vsel %vm824, %v1660, %v1664
      %v1666 = vshrl.u32 %v1407, 16
      %v1668 = vrot.slane %v1666, 4
      %v1669 = vor.u32 %v1668, %v1664
      %v1670 = vrot.slane %v1669, 4
      %v1672 = vshll.u32 %v1429, 16
      %v1674 = vrot.slane %v1672, 5
      %v1675 = vsel %vm824, %v1670, %v1674
      %v1677 = vshrl.u32 %v1408, 16
      %v1679 = vrot.slane %v1677, 4
      %v1680 = vshll.u32 %v1408, 16
      %v1682 = vrot.slane %v1680, 5
      %v1683 = vor.u32 %v1679, %v1682
      %v1684 = vrot.slane %v1683, 4
      %v1686 = vshll.u32 %v1409, 16
      %v1688 = vrot.slane %v1686, 5
      %v1689 = vsel %vm824, %v1684, %v1688
      %v1690 = vshrl.u32 %v1409, 16
      %v1692 = vrot.slane %v1690, 4
      %v1693 = vor.u32 %v1692, %v1688
      %v1694 = vrot.slane %v1693, 4
      %v1696 = vshll.u32 %v1430, 16
      %v1698 = vrot.slane %v1696, 5
      %v1699 = vsel %vm824, %v1694, %v1698
      %v1701 = vshrl.u32 %v1410, 16
      %v1703 = vrot.slane %v1701, 4
      %v1704 = vshll.u32 %v1410, 16
      %v1706 = vrot.slane %v1704, 5
      %v1707 = vor.u32 %v1703, %v1706
      %v1708 = vrot.slane %v1707, 4
      %v1710 = vshll.u32 %v1411, 16
      %v1712 = vrot.slane %v1710, 5
      %v1713 = vsel %vm824, %v1708, %v1712
      %v1714 = vshrl.u32 %v1411, 16
      %v1716 = vrot.slane %v1714, 4
      %v1717 = vor.u32 %v1716, %v1712
      %v1718 = vrot.slane %v1717, 4
      %v1720 = vshll.u32 %v1431, 16
      %v1722 = vrot.slane %v1720, 5
      %v1723 = vsel %vm824, %v1718, %v1722
      %v1725 = vshrl.u32 %v1412, 16
      %v1727 = vrot.slane %v1725, 4
      %v1728 = vshll.u32 %v1412, 16
      %v1730 = vrot.slane %v1728, 5
      %v1731 = vor.u32 %v1727, %v1730
      %v1732 = vrot.slane %v1731, 4
      %v1734 = vshll.u32 %v1413, 16
      %v1736 = vrot.slane %v1734, 5
      %v1737 = vsel %vm824, %v1732, %v1736
      %v1738 = vshrl.u32 %v1413, 16
      %v1740 = vrot.slane %v1738, 4
      %v1741 = vor.u32 %v1740, %v1736
      %v1742 = vrot.slane %v1741, 4
      %v1744 = vshll.u32 %v1432, 16
      %v1746 = vrot.slane %v1744, 5
      %v1747 = vsel %vm824, %v1742, %v1746
      %v1749 = vshrl.u32 %v1414, 16
      %v1751 = vrot.slane %v1749, 4
      %v1752 = vshll.u32 %v1414, 16
      %v1754 = vrot.slane %v1752, 5
      %v1755 = vor.u32 %v1751, %v1754
      %v1756 = vrot.slane %v1755, 4
      %v1758 = vshll.u32 %v1415, 16
      %v1760 = vrot.slane %v1758, 5
      %v1761 = vsel %vm824, %v1756, %v1760
      %v1762 = vshrl.u32 %v1415, 16
      %v1764 = vrot.slane %v1762, 4
      %v1765 = vor.u32 %v1764, %v1760
      %v1766 = vrot.slane %v1765, 4
      %v1768 = vshll.u32 %v1433, 16
      %v1770 = vrot.slane %v1768, 5
      %v1771 = vsel %vm824, %v1766, %v1770
      %v1773 = vshrl.u32 %v1416, 16
      %v1775 = vrot.slane %v1773, 4
      %v1776 = vshll.u32 %v1416, 16
      %v1778 = vrot.slane %v1776, 5
      %v1779 = vor.u32 %v1775, %v1778
      %v1780 = vrot.slane %v1779, 4
      %v1782 = vshll.u32 %v1417, 16
      %v1784 = vrot.slane %v1782, 5
      %v1785 = vsel %vm824, %v1780, %v1784
      %v1786 = vshrl.u32 %v1417, 16
      %v1788 = vrot.slane %v1786, 4
      %v1789 = vor.u32 %v1788, %v1784
      %v1790 = vrot.slane %v1789, 4
      %v1792 = vshll.u32 %v1434, 16
      %v1794 = vrot.slane %v1792, 5
      %v1795 = vsel %vm824, %v1790, %v1794
      %v1797 = vshrl.u32 %v1418, 16
      %v1799 = vrot.slane %v1797, 4
      %v1800 = vshll.u32 %v1418, 16
      %v1802 = vrot.slane %v1800, 5
      %v1803 = vor.u32 %v1799, %v1802
      %v1804 = vrot.slane %v1803, 4
      %v1806 = vshll.u32 %v1419, 16
      %v1808 = vrot.slane %v1806, 5
      %v1809 = vsel %vm824, %v1804, %v1808
      %v1810 = vshrl.u32 %v1419, 16
      %v1812 = vrot.slane %v1810, 4
      %v1813 = vor.u32 %v1812, %v1808
      %v1814 = vrot.slane %v1813, 4
      %v1816 = vshll.u32 %v1435, 16
      %v1818 = vrot.slane %v1816, 5
      %v1819 = vsel %vm824, %v1814, %v1818
      %v1820 = vld [vmem:[%s659] sm:$0xe]
      %v1821 = vld [vmem:[%s659 + $0xc] sm:$0xe]
      %v1822 = vld [vmem:[%s659 + $0x18] sm:$0xe]
      %v1823 = vld [vmem:[%s659 + $0x24] sm:$0xe]
      %v1824 = vld [vmem:[%s659 + $0x30] sm:$0xe]
      %v1825 = vld [vmem:[%s659 + $0x3c] sm:$0xe]
      %v1826 = vld [vmem:[%s659 + $0x48] sm:$0xe]
      %v1827 = vld [vmem:[%s659 + $0x54] sm:$0xe]
      %v1828 = vld [vmem:[%s659 + $0x60] sm:$0xe]
      %v1829 = vld [vmem:[%s659 + $0x6c] sm:$0xe]
      %v1830 = vld [vmem:[%s659 + $0x78] sm:$0xe]
      %v1831 = vld [vmem:[%s659 + $0x84] sm:$0xe]
      %v1832 = vld [vmem:[%s659 + $0x90] sm:$0xe]
      %v1833 = vld [vmem:[%s659 + $0x9c] sm:$0xe]
      %v1834 = vld [vmem:[%s659 + $0xa8] sm:$0xe]
      %v1835 = vld [vmem:[%s659 + $0xb4] sm:$0xe]
      %v1884 = vrot.slane %v1820, 5
      %v1885 = vrot.slane %v1884, 4
      %v1886 = vrot.slane %v1389, 5
      %v1887 = vsel %vm1275, %v1885, %v1886
      %v1888 = vrot.slane %v1886, 4
      %v1889 = vrot.slane %v1420, 5
      %v1890 = vsel %vm1275, %v1888, %v1889
      %v1891 = vrot.slane %v1821, 5
      %v1892 = vrot.slane %v1891, 4
      %v1893 = vrot.slane %v1391, 5
      %v1894 = vsel %vm1275, %v1892, %v1893
      %v1895 = vrot.slane %v1893, 4
      %v1896 = vrot.slane %v1421, 5
      %v1897 = vsel %vm1275, %v1895, %v1896
      %v1898 = vrot.slane %v1822, 5
      %v1899 = vrot.slane %v1898, 4
      %v1900 = vrot.slane %v1393, 5
      %v1901 = vsel %vm1275, %v1899, %v1900
      %v1902 = vrot.slane %v1900, 4
      %v1903 = vrot.slane %v1422, 5
      %v1904 = vsel %vm1275, %v1902, %v1903
      %v1905 = vrot.slane %v1823, 5
      %v1906 = vrot.slane %v1905, 4
      %v1907 = vrot.slane %v1395, 5
      %v1908 = vsel %vm1275, %v1906, %v1907
      %v1909 = vrot.slane %v1907, 4
      %v1910 = vrot.slane %v1423, 5
      %v1911 = vsel %vm1275, %v1909, %v1910
      %v1912 = vrot.slane %v1824, 5
      %v1913 = vrot.slane %v1912, 4
      %v1914 = vrot.slane %v1397, 5
      %v1915 = vsel %vm1275, %v1913, %v1914
      %v1916 = vrot.slane %v1914, 4
      %v1917 = vrot.slane %v1424, 5
      %v1918 = vsel %vm1275, %v1916, %v1917
      %v1919 = vrot.slane %v1825, 5
      %v1920 = vrot.slane %v1919, 4
      %v1921 = vrot.slane %v1399, 5
      %v1922 = vsel %vm1275, %v1920, %v1921
      %v1923 = vrot.slane %v1921, 4
      %v1924 = vrot.slane %v1425, 5
      %v1925 = vsel %vm1275, %v1923, %v1924
      %v1926 = vrot.slane %v1826, 5
      %v1927 = vrot.slane %v1926, 4
      %v1928 = vrot.slane %v1401, 5
      %v1929 = vsel %vm1275, %v1927, %v1928
      %v1930 = vrot.slane %v1928, 4
      %v1931 = vrot.slane %v1426, 5
      %v1932 = vsel %vm1275, %v1930, %v1931
      %v1933 = vrot.slane %v1827, 5
      %v1934 = vrot.slane %v1933, 4
      %v1935 = vrot.slane %v1403, 5
      %v1936 = vsel %vm1275, %v1934, %v1935
      %v1937 = vrot.slane %v1935, 4
      %v1938 = vrot.slane %v1427, 5
      %v1939 = vsel %vm1275, %v1937, %v1938
      %v1940 = vrot.slane %v1828, 5
      %v1941 = vrot.slane %v1940, 4
      %v1942 = vrot.slane %v1405, 5
      %v1943 = vsel %vm1275, %v1941, %v1942
      %v1944 = vrot.slane %v1942, 4
      %v1945 = vrot.slane %v1428, 5
      %v1946 = vsel %vm1275, %v1944, %v1945
      %v1947 = vrot.slane %v1829, 5
      %v1948 = vrot.slane %v1947, 4
      %v1949 = vrot.slane %v1407, 5
      %v1950 = vsel %vm1275, %v1948, %v1949
      %v1951 = vrot.slane %v1949, 4
      %v1952 = vrot.slane %v1429, 5
      %v1953 = vsel %vm1275, %v1951, %v1952
      %v1954 = vrot.slane %v1830, 5
      %v1955 = vrot.slane %v1954, 4
      %v1956 = vrot.slane %v1409, 5
      %v1957 = vsel %vm1275, %v1955, %v1956
      %v1958 = vrot.slane %v1956, 4
      %v1959 = vrot.slane %v1430, 5
      %v1960 = vsel %vm1275, %v1958, %v1959
      %v1961 = vrot.slane %v1831, 5
      %v1962 = vrot.slane %v1961, 4
      %v1963 = vrot.slane %v1411, 5
      %v1964 = vsel %vm1275, %v1962, %v1963
      %v1965 = vrot.slane %v1963, 4
      %v1966 = vrot.slane %v1431, 5
      %v1967 = vsel %vm1275, %v1965, %v1966
      %v1968 = vrot.slane %v1832, 5
      %v1969 = vrot.slane %v1968, 4
      %v1970 = vrot.slane %v1413, 5
      %v1971 = vsel %vm1275, %v1969, %v1970
      %v1972 = vrot.slane %v1970, 4
      %v1973 = vrot.slane %v1432, 5
      %v1974 = vsel %vm1275, %v1972, %v1973
      %v1975 = vrot.slane %v1833, 5
      %v1976 = vrot.slane %v1975, 4
      %v1977 = vrot.slane %v1415, 5
      %v1978 = vsel %vm1275, %v1976, %v1977
      %v1979 = vrot.slane %v1977, 4
      %v1980 = vrot.slane %v1433, 5
      %v1981 = vsel %vm1275, %v1979, %v1980
      %v1982 = vrot.slane %v1834, 5
      %v1983 = vrot.slane %v1982, 4
      %v1984 = vrot.slane %v1417, 5
      %v1985 = vsel %vm1275, %v1983, %v1984
      %v1986 = vrot.slane %v1984, 4
      %v1987 = vrot.slane %v1434, 5
      %v1988 = vsel %vm1275, %v1986, %v1987
      %v1989 = vrot.slane %v1835, 5
      %v1990 = vrot.slane %v1989, 4
      %v1991 = vrot.slane %v1419, 5
      %v1992 = vsel %vm1275, %v1990, %v1991
      %v1993 = vrot.slane %v1991, 4
      %v1994 = vrot.slane %v1435, 5
      %v1995 = vsel %vm1275, %v1993, %v1994
      %s1996 = scalar_lea.vmem [#allocation2], 24
      %v1997 = vld [vmem:[%s1996] sm:$0xf]
      %v1998 = vld [vmem:[%s1996 + $0x4] sm:$0xf]
      %v1999 = vld [vmem:[%s1996 + $0xc] sm:$0xf]
      %v2000 = vld [vmem:[%s1996 + $0x10] sm:$0xf]
      %v2001 = vld [vmem:[%s1996 + $0x18] sm:$0xf]
      %v2002 = vld [vmem:[%s1996 + $0x1c] sm:$0xf]
      %v2003 = vld [vmem:[%s1996 + $0x24] sm:$0xf]
      %v2004 = vld [vmem:[%s1996 + $0x28] sm:$0xf]
      %v2005 = vld [vmem:[%s1996 + $0x30] sm:$0xf]
      %v2006 = vld [vmem:[%s1996 + $0x34] sm:$0xf]
      %v2007 = vld [vmem:[%s1996 + $0x3c] sm:$0xf]
      %v2008 = vld [vmem:[%s1996 + $0x40] sm:$0xf]
      %v2009 = vld [vmem:[%s1996 + $0x48] sm:$0xf]
      %v2010 = vld [vmem:[%s1996 + $0x4c] sm:$0xf]
      %v2011 = vld [vmem:[%s1996 + $0x54] sm:$0xf]
      %v2012 = vld [vmem:[%s1996 + $0x58] sm:$0xf]
      %v2013 = vld [vmem:[%s1996 + $0x60] sm:$0xf]
      %v2014 = vld [vmem:[%s1996 + $0x64] sm:$0xf]
      %v2015 = vld [vmem:[%s1996 + $0x6c] sm:$0xf]
      %v2016 = vld [vmem:[%s1996 + $0x70] sm:$0xf]
      %v2017 = vld [vmem:[%s1996 + $0x78] sm:$0xf]
      %v2018 = vld [vmem:[%s1996 + $0x7c] sm:$0xf]
      %v2019 = vld [vmem:[%s1996 + $0x84] sm:$0xf]
      %v2020 = vld [vmem:[%s1996 + $0x88] sm:$0xf]
      %v2021 = vld [vmem:[%s1996 + $0x90] sm:$0xf]
      %v2022 = vld [vmem:[%s1996 + $0x94] sm:$0xf]
      %v2023 = vld [vmem:[%s1996 + $0x9c] sm:$0xf]
      %v2024 = vld [vmem:[%s1996 + $0xa0] sm:$0xf]
      %v2025 = vld [vmem:[%s1996 + $0xa8] sm:$0xf]
      %v2026 = vld [vmem:[%s1996 + $0xac] sm:$0xf]
      %v2027 = vld [vmem:[%s1996 + $0xb4] sm:$0xf]
      %v2028 = vld [vmem:[%s1996 + $0xb8] sm:$0xf]
      %v2029 = vld [vmem:[%s1996 + $0x8] sm:$0x1]
      %v2030 = vld [vmem:[%s1996 + $0x14] sm:$0x1]
      %v2031 = vld [vmem:[%s1996 + $0x20] sm:$0x1]
      %v2032 = vld [vmem:[%s1996 + $0x2c] sm:$0x1]
      %v2033 = vld [vmem:[%s1996 + $0x38] sm:$0x1]
      %v2034 = vld [vmem:[%s1996 + $0x44] sm:$0x1]
      %v2035 = vld [vmem:[%s1996 + $0x50] sm:$0x1]
      %v2036 = vld [vmem:[%s1996 + $0x5c] sm:$0x1]
      %v2037 = vld [vmem:[%s1996 + $0x68] sm:$0x1]
      %v2038 = vld [vmem:[%s1996 + $0x74] sm:$0x1]
      %v2039 = vld [vmem:[%s1996 + $0x80] sm:$0x1]
      %v2040 = vld [vmem:[%s1996 + $0x8c] sm:$0x1]
      %v2041 = vld [vmem:[%s1996 + $0x98] sm:$0x1]
      %v2042 = vld [vmem:[%s1996 + $0xa4] sm:$0x1]
      %v2043 = vld [vmem:[%s1996 + $0xb0] sm:$0x1]
      %v2044 = vld [vmem:[%s1996 + $0xbc] sm:$0x1]
      %v2046 = vshrl.u32 %v1997, 16
      %v2048 = vrot.slane %v2046, 4
      %v2049 = vshll.u32 %v1997, 16
      %v2051 = vrot.slane %v2049, 5
      %v2052 = vor.u32 %v2048, %v2051
      %v2053 = vrot.slane %v2052, 4
      %v2055 = vshll.u32 %v1998, 16
      %v2057 = vrot.slane %v2055, 5
      %v2058 = vsel %vm824, %v2053, %v2057
      %v2059 = vshrl.u32 %v1998, 16
      %v2061 = vrot.slane %v2059, 4
      %v2062 = vor.u32 %v2061, %v2057
      %v2063 = vrot.slane %v2062, 4
      %v2065 = vshll.u32 %v2029, 16
      %v2067 = vrot.slane %v2065, 5
      %v2068 = vsel %vm824, %v2063, %v2067
      %v2070 = vshrl.u32 %v1999, 16
      %v2072 = vrot.slane %v2070, 4
      %v2073 = vshll.u32 %v1999, 16
      %v2075 = vrot.slane %v2073, 5
      %v2076 = vor.u32 %v2072, %v2075
      %v2077 = vrot.slane %v2076, 4
      %v2079 = vshll.u32 %v2000, 16
      %v2081 = vrot.slane %v2079, 5
      %v2082 = vsel %vm824, %v2077, %v2081
      %v2083 = vshrl.u32 %v2000, 16
      %v2085 = vrot.slane %v2083, 4
      %v2086 = vor.u32 %v2085, %v2081
      %v2087 = vrot.slane %v2086, 4
      %v2089 = vshll.u32 %v2030, 16
      %v2091 = vrot.slane %v2089, 5
      %v2092 = vsel %vm824, %v2087, %v2091
      %v2094 = vshrl.u32 %v2001, 16
      %v2096 = vrot.slane %v2094, 4
      %v2097 = vshll.u32 %v2001, 16
      %v2099 = vrot.slane %v2097, 5
      %v2100 = vor.u32 %v2096, %v2099
      %v2101 = vrot.slane %v2100, 4
      %v2103 = vshll.u32 %v2002, 16
      %v2105 = vrot.slane %v2103, 5
      %v2106 = vsel %vm824, %v2101, %v2105
      %v2107 = vshrl.u32 %v2002, 16
      %v2109 = vrot.slane %v2107, 4
      %v2110 = vor.u32 %v2109, %v2105
      %v2111 = vrot.slane %v2110, 4
      %v2113 = vshll.u32 %v2031, 16
      %v2115 = vrot.slane %v2113, 5
      %v2116 = vsel %vm824, %v2111, %v2115
      %v2118 = vshrl.u32 %v2003, 16
      %v2120 = vrot.slane %v2118, 4
      %v2121 = vshll.u32 %v2003, 16
      %v2123 = vrot.slane %v2121, 5
      %v2124 = vor.u32 %v2120, %v2123
      %v2125 = vrot.slane %v2124, 4
      %v2127 = vshll.u32 %v2004, 16
      %v2129 = vrot.slane %v2127, 5
      %v2130 = vsel %vm824, %v2125, %v2129
      %v2131 = vshrl.u32 %v2004, 16
      %v2133 = vrot.slane %v2131, 4
      %v2134 = vor.u32 %v2133, %v2129
      %v2135 = vrot.slane %v2134, 4
      %v2137 = vshll.u32 %v2032, 16
      %v2139 = vrot.slane %v2137, 5
      %v2140 = vsel %vm824, %v2135, %v2139
      %v2142 = vshrl.u32 %v2005, 16
      %v2144 = vrot.slane %v2142, 4
      %v2145 = vshll.u32 %v2005, 16
      %v2147 = vrot.slane %v2145, 5
      %v2148 = vor.u32 %v2144, %v2147
      %v2149 = vrot.slane %v2148, 4
      %v2151 = vshll.u32 %v2006, 16
      %v2153 = vrot.slane %v2151, 5
      %v2154 = vsel %vm824, %v2149, %v2153
      %v2155 = vshrl.u32 %v2006, 16
      %v2157 = vrot.slane %v2155, 4
      %v2158 = vor.u32 %v2157, %v2153
      %v2159 = vrot.slane %v2158, 4
      %v2161 = vshll.u32 %v2033, 16
      %v2163 = vrot.slane %v2161, 5
      %v2164 = vsel %vm824, %v2159, %v2163
      %v2166 = vshrl.u32 %v2007, 16
      %v2168 = vrot.slane %v2166, 4
      %v2169 = vshll.u32 %v2007, 16
      %v2171 = vrot.slane %v2169, 5
      %v2172 = vor.u32 %v2168, %v2171
      %v2173 = vrot.slane %v2172, 4
      %v2175 = vshll.u32 %v2008, 16
      %v2177 = vrot.slane %v2175, 5
      %v2178 = vsel %vm824, %v2173, %v2177
      %v2179 = vshrl.u32 %v2008, 16
      %v2181 = vrot.slane %v2179, 4
      %v2182 = vor.u32 %v2181, %v2177
      %v2183 = vrot.slane %v2182, 4
      %v2185 = vshll.u32 %v2034, 16
      %v2187 = vrot.slane %v2185, 5
      %v2188 = vsel %vm824, %v2183, %v2187
      %v2190 = vshrl.u32 %v2009, 16
      %v2192 = vrot.slane %v2190, 4
      %v2193 = vshll.u32 %v2009, 16
      %v2195 = vrot.slane %v2193, 5
      %v2196 = vor.u32 %v2192, %v2195
      %v2197 = vrot.slane %v2196, 4
      %v2199 = vshll.u32 %v2010, 16
      %v2201 = vrot.slane %v2199, 5
      %v2202 = vsel %vm824, %v2197, %v2201
      %v2203 = vshrl.u32 %v2010, 16
      %v2205 = vrot.slane %v2203, 4
      %v2206 = vor.u32 %v2205, %v2201
      %v2207 = vrot.slane %v2206, 4
      %v2209 = vshll.u32 %v2035, 16
      %v2211 = vrot.slane %v2209, 5
      %v2212 = vsel %vm824, %v2207, %v2211
      %v2214 = vshrl.u32 %v2011, 16
      %v2216 = vrot.slane %v2214, 4
      %v2217 = vshll.u32 %v2011, 16
      %v2219 = vrot.slane %v2217, 5
      %v2220 = vor.u32 %v2216, %v2219
      %v2221 = vrot.slane %v2220, 4
      %v2223 = vshll.u32 %v2012, 16
      %v2225 = vrot.slane %v2223, 5
      %v2226 = vsel %vm824, %v2221, %v2225
      %v2227 = vshrl.u32 %v2012, 16
      %v2229 = vrot.slane %v2227, 4
      %v2230 = vor.u32 %v2229, %v2225
      %v2231 = vrot.slane %v2230, 4
      %v2233 = vshll.u32 %v2036, 16
      %v2235 = vrot.slane %v2233, 5
      %v2236 = vsel %vm824, %v2231, %v2235
      %v2238 = vshrl.u32 %v2013, 16
      %v2240 = vrot.slane %v2238, 4
      %v2241 = vshll.u32 %v2013, 16
      %v2243 = vrot.slane %v2241, 5
      %v2244 = vor.u32 %v2240, %v2243
      %v2245 = vrot.slane %v2244, 4
      %v2247 = vshll.u32 %v2014, 16
      %v2249 = vrot.slane %v2247, 5
      %v2250 = vsel %vm824, %v2245, %v2249
      %v2251 = vshrl.u32 %v2014, 16
      %v2253 = vrot.slane %v2251, 4
      %v2254 = vor.u32 %v2253, %v2249
      %v2255 = vrot.slane %v2254, 4
      %v2257 = vshll.u32 %v2037, 16
      %v2259 = vrot.slane %v2257, 5
      %v2260 = vsel %vm824, %v2255, %v2259
      %v2262 = vshrl.u32 %v2015, 16
      %v2264 = vrot.slane %v2262, 4
      %v2265 = vshll.u32 %v2015, 16
      %v2267 = vrot.slane %v2265, 5
      %v2268 = vor.u32 %v2264, %v2267
      %v2269 = vrot.slane %v2268, 4
      %v2271 = vshll.u32 %v2016, 16
      %v2273 = vrot.slane %v2271, 5
      %v2274 = vsel %vm824, %v2269, %v2273
      %v2275 = vshrl.u32 %v2016, 16
      %v2277 = vrot.slane %v2275, 4
      %v2278 = vor.u32 %v2277, %v2273
      %v2279 = vrot.slane %v2278, 4
      %v2281 = vshll.u32 %v2038, 16
      %v2283 = vrot.slane %v2281, 5
      %v2284 = vsel %vm824, %v2279, %v2283
      %v2286 = vshrl.u32 %v2017, 16
      %v2288 = vrot.slane %v2286, 4
      %v2289 = vshll.u32 %v2017, 16
      %v2291 = vrot.slane %v2289, 5
      %v2292 = vor.u32 %v2288, %v2291
      %v2293 = vrot.slane %v2292, 4
      %v2295 = vshll.u32 %v2018, 16
      %v2297 = vrot.slane %v2295, 5
      %v2298 = vsel %vm824, %v2293, %v2297
      %v2299 = vshrl.u32 %v2018, 16
      %v2301 = vrot.slane %v2299, 4
      %v2302 = vor.u32 %v2301, %v2297
      %v2303 = vrot.slane %v2302, 4
      %v2305 = vshll.u32 %v2039, 16
      %v2307 = vrot.slane %v2305, 5
      %v2308 = vsel %vm824, %v2303, %v2307
      %v2310 = vshrl.u32 %v2019, 16
      %v2312 = vrot.slane %v2310, 4
      %v2313 = vshll.u32 %v2019, 16
      %v2315 = vrot.slane %v2313, 5
      %v2316 = vor.u32 %v2312, %v2315
      %v2317 = vrot.slane %v2316, 4
      %v2319 = vshll.u32 %v2020, 16
      %v2321 = vrot.slane %v2319, 5
      %v2322 = vsel %vm824, %v2317, %v2321
      %v2323 = vshrl.u32 %v2020, 16
      %v2325 = vrot.slane %v2323, 4
      %v2326 = vor.u32 %v2325, %v2321
      %v2327 = vrot.slane %v2326, 4
      %v2329 = vshll.u32 %v2040, 16
      %v2331 = vrot.slane %v2329, 5
      %v2332 = vsel %vm824, %v2327, %v2331
      %v2334 = vshrl.u32 %v2021, 16
      %v2336 = vrot.slane %v2334, 4
      %v2337 = vshll.u32 %v2021, 16
      %v2339 = vrot.slane %v2337, 5
      %v2340 = vor.u32 %v2336, %v2339
      %v2341 = vrot.slane %v2340, 4
      %v2343 = vshll.u32 %v2022, 16
      %v2345 = vrot.slane %v2343, 5
      %v2346 = vsel %vm824, %v2341, %v2345
      %v2347 = vshrl.u32 %v2022, 16
      %v2349 = vrot.slane %v2347, 4
      %v2350 = vor.u32 %v2349, %v2345
      %v2351 = vrot.slane %v2350, 4
      %v2353 = vshll.u32 %v2041, 16
      %v2355 = vrot.slane %v2353, 5
      %v2356 = vsel %vm824, %v2351, %v2355
      %v2358 = vshrl.u32 %v2023, 16
      %v2360 = vrot.slane %v2358, 4
      %v2361 = vshll.u32 %v2023, 16
      %v2363 = vrot.slane %v2361, 5
      %v2364 = vor.u32 %v2360, %v2363
      %v2365 = vrot.slane %v2364, 4
      %v2367 = vshll.u32 %v2024, 16
      %v2369 = vrot.slane %v2367, 5
      %v2370 = vsel %vm824, %v2365, %v2369
      %v2371 = vshrl.u32 %v2024, 16
      %v2373 = vrot.slane %v2371, 4
      %v2374 = vor.u32 %v2373, %v2369
      %v2375 = vrot.slane %v2374, 4
      %v2377 = vshll.u32 %v2042, 16
      %v2379 = vrot.slane %v2377, 5
      %v2380 = vsel %vm824, %v2375, %v2379
      %v2382 = vshrl.u32 %v2025, 16
      %v2384 = vrot.slane %v2382, 4
      %v2385 = vshll.u32 %v2025, 16
      %v2387 = vrot.slane %v2385, 5
      %v2388 = vor.u32 %v2384, %v2387
      %v2389 = vrot.slane %v2388, 4
      %v2391 = vshll.u32 %v2026, 16
      %v2393 = vrot.slane %v2391, 5
      %v2394 = vsel %vm824, %v2389, %v2393
      %v2395 = vshrl.u32 %v2026, 16
      %v2397 = vrot.slane %v2395, 4
      %v2398 = vor.u32 %v2397, %v2393
      %v2399 = vrot.slane %v2398, 4
      %v2401 = vshll.u32 %v2043, 16
      %v2403 = vrot.slane %v2401, 5
      %v2404 = vsel %vm824, %v2399, %v2403
      %v2406 = vshrl.u32 %v2027, 16
      %v2408 = vrot.slane %v2406, 4
      %v2409 = vshll.u32 %v2027, 16
      %v2411 = vrot.slane %v2409, 5
      %v2412 = vor.u32 %v2408, %v2411
      %v2413 = vrot.slane %v2412, 4
      %v2415 = vshll.u32 %v2028, 16
      %v2417 = vrot.slane %v2415, 5
      %v2418 = vsel %vm824, %v2413, %v2417
      %v2419 = vshrl.u32 %v2028, 16
      %v2421 = vrot.slane %v2419, 4
      %v2422 = vor.u32 %v2421, %v2417
      %v2423 = vrot.slane %v2422, 4
      %v2425 = vshll.u32 %v2044, 16
      %v2427 = vrot.slane %v2425, 5
      %v2428 = vsel %vm824, %v2423, %v2427
      %v2429 = vld [vmem:[%s1996] sm:$0xe]
      %v2430 = vld [vmem:[%s1996 + $0xc] sm:$0xe]
      %v2431 = vld [vmem:[%s1996 + $0x18] sm:$0xe]
      %v2432 = vld [vmem:[%s1996 + $0x24] sm:$0xe]
      %v2433 = vld [vmem:[%s1996 + $0x30] sm:$0xe]
      %v2434 = vld [vmem:[%s1996 + $0x3c] sm:$0xe]
      %v2435 = vld [vmem:[%s1996 + $0x48] sm:$0xe]
      %v2436 = vld [vmem:[%s1996 + $0x54] sm:$0xe]
      %v2437 = vld [vmem:[%s1996 + $0x60] sm:$0xe]
      %v2438 = vld [vmem:[%s1996 + $0x6c] sm:$0xe]
      %v2439 = vld [vmem:[%s1996 + $0x78] sm:$0xe]
      %v2440 = vld [vmem:[%s1996 + $0x84] sm:$0xe]
      %v2441 = vld [vmem:[%s1996 + $0x90] sm:$0xe]
      %v2442 = vld [vmem:[%s1996 + $0x9c] sm:$0xe]
      %v2443 = vld [vmem:[%s1996 + $0xa8] sm:$0xe]
      %v2444 = vld [vmem:[%s1996 + $0xb4] sm:$0xe]
      %v2493 = vrot.slane %v2429, 5
      %v2494 = vrot.slane %v2493, 4
      %v2495 = vrot.slane %v1998, 5
      %v2496 = vsel %vm1275, %v2494, %v2495
      %v2497 = vrot.slane %v2495, 4
      %v2498 = vrot.slane %v2029, 5
      %v2499 = vsel %vm1275, %v2497, %v2498
      %v2500 = vrot.slane %v2430, 5
      %v2501 = vrot.slane %v2500, 4
      %v2502 = vrot.slane %v2000, 5
      %v2503 = vsel %vm1275, %v2501, %v2502
      %v2504 = vrot.slane %v2502, 4
      %v2505 = vrot.slane %v2030, 5
      %v2506 = vsel %vm1275, %v2504, %v2505
      %v2507 = vrot.slane %v2431, 5
      %v2508 = vrot.slane %v2507, 4
      %v2509 = vrot.slane %v2002, 5
      %v2510 = vsel %vm1275, %v2508, %v2509
      %v2511 = vrot.slane %v2509, 4
      %v2512 = vrot.slane %v2031, 5
      %v2513 = vsel %vm1275, %v2511, %v2512
      %v2514 = vrot.slane %v2432, 5
      %v2515 = vrot.slane %v2514, 4
      %v2516 = vrot.slane %v2004, 5
      %v2517 = vsel %vm1275, %v2515, %v2516
      %v2518 = vrot.slane %v2516, 4
      %v2519 = vrot.slane %v2032, 5
      %v2520 = vsel %vm1275, %v2518, %v2519
      %v2521 = vrot.slane %v2433, 5
      %v2522 = vrot.slane %v2521, 4
      %v2523 = vrot.slane %v2006, 5
      %v2524 = vsel %vm1275, %v2522, %v2523
      %v2525 = vrot.slane %v2523, 4
      %v2526 = vrot.slane %v2033, 5
      %v2527 = vsel %vm1275, %v2525, %v2526
      %v2528 = vrot.slane %v2434, 5
      %v2529 = vrot.slane %v2528, 4
      %v2530 = vrot.slane %v2008, 5
      %v2531 = vsel %vm1275, %v2529, %v2530
      %v2532 = vrot.slane %v2530, 4
      %v2533 = vrot.slane %v2034, 5
      %v2534 = vsel %vm1275, %v2532, %v2533
      %v2535 = vrot.slane %v2435, 5
      %v2536 = vrot.slane %v2535, 4
      %v2537 = vrot.slane %v2010, 5
      %v2538 = vsel %vm1275, %v2536, %v2537
      %v2539 = vrot.slane %v2537, 4
      %v2540 = vrot.slane %v2035, 5
      %v2541 = vsel %vm1275, %v2539, %v2540
      %v2542 = vrot.slane %v2436, 5
      %v2543 = vrot.slane %v2542, 4
      %v2544 = vrot.slane %v2012, 5
      %v2545 = vsel %vm1275, %v2543, %v2544
      %v2546 = vrot.slane %v2544, 4
      %v2547 = vrot.slane %v2036, 5
      %v2548 = vsel %vm1275, %v2546, %v2547
      %v2549 = vrot.slane %v2437, 5
      %v2550 = vrot.slane %v2549, 4
      %v2551 = vrot.slane %v2014, 5
      %v2552 = vsel %vm1275, %v2550, %v2551
      %v2553 = vrot.slane %v2551, 4
      %v2554 = vrot.slane %v2037, 5
      %v2555 = vsel %vm1275, %v2553, %v2554
      %v2556 = vrot.slane %v2438, 5
      %v2557 = vrot.slane %v2556, 4
      %v2558 = vrot.slane %v2016, 5
      %v2559 = vsel %vm1275, %v2557, %v2558
      %v2560 = vrot.slane %v2558, 4
      %v2561 = vrot.slane %v2038, 5
      %v2562 = vsel %vm1275, %v2560, %v2561
      %v2563 = vrot.slane %v2439, 5
      %v2564 = vrot.slane %v2563, 4
      %v2565 = vrot.slane %v2018, 5
      %v2566 = vsel %vm1275, %v2564, %v2565
      %v2567 = vrot.slane %v2565, 4
      %v2568 = vrot.slane %v2039, 5
      %v2569 = vsel %vm1275, %v2567, %v2568
      %v2570 = vrot.slane %v2440, 5
      %v2571 = vrot.slane %v2570, 4
      %v2572 = vrot.slane %v2020, 5
      %v2573 = vsel %vm1275, %v2571, %v2572
      %v2574 = vrot.slane %v2572, 4
      %v2575 = vrot.slane %v2040, 5
      %v2576 = vsel %vm1275, %v2574, %v2575
      %v2577 = vrot.slane %v2441, 5
      %v2578 = vrot.slane %v2577, 4
      %v2579 = vrot.slane %v2022, 5
      %v2580 = vsel %vm1275, %v2578, %v2579
      %v2581 = vrot.slane %v2579, 4
      %v2582 = vrot.slane %v2041, 5
      %v2583 = vsel %vm1275, %v2581, %v2582
      %v2584 = vrot.slane %v2442, 5
      %v2585 = vrot.slane %v2584, 4
      %v2586 = vrot.slane %v2024, 5
      %v2587 = vsel %vm1275, %v2585, %v2586
      %v2588 = vrot.slane %v2586, 4
      %v2589 = vrot.slane %v2042, 5
      %v2590 = vsel %vm1275, %v2588, %v2589
      %v2591 = vrot.slane %v2443, 5
      %v2592 = vrot.slane %v2591, 4
      %v2593 = vrot.slane %v2026, 5
      %v2594 = vsel %vm1275, %v2592, %v2593
      %v2595 = vrot.slane %v2593, 4
      %v2596 = vrot.slane %v2043, 5
      %v2597 = vsel %vm1275, %v2595, %v2596
      %v2598 = vrot.slane %v2444, 5
      %v2599 = vrot.slane %v2598, 4
      %v2600 = vrot.slane %v2028, 5
      %v2601 = vsel %vm1275, %v2599, %v2600
      %v2602 = vrot.slane %v2600, 4
      %v2603 = vrot.slane %v2044, 5
      %v2604 = vsel %vm1275, %v2602, %v2603
      %v2621 = vunpack.c.l.b16 %v774
      %v2622 = vunpack.c.l.b16 %v775
      %v2623 = vunpack.c.l.b16 %v776
      %v2624 = vunpack.c.l.b16 %v777
      %v2625 = vunpack.c.l.b16 %v778
      %v2626 = vunpack.c.l.b16 %v779
      %v2627 = vunpack.c.l.b16 %v780
      %v2628 = vunpack.c.l.b16 %v781
      %v2629 = vunpack.c.l.b16 %v782
      %v2630 = vunpack.c.l.b16 %v783
      %v2631 = vunpack.c.l.b16 %v784
      %v2632 = vunpack.c.l.b16 %v785
      %v2633 = vunpack.c.l.b16 %v786
      %v2634 = vunpack.c.l.b16 %v787
      %v2635 = vunpack.c.l.b16 %v788
      %v2636 = vunpack.c.l.b16 %v789
      %v2637 = vunpack.c.l.b16 %v790
      %v2638 = vunpack.c.l.b16 %v791
      %v2639 = vunpack.c.l.b16 %v792
      %v2640 = vunpack.c.l.b16 %v793
      %v2641 = vunpack.c.l.b16 %v794
      %v2642 = vunpack.c.l.b16 %v795
      %v2643 = vunpack.c.l.b16 %v796
      %v2644 = vunpack.c.l.b16 %v797
      %v2645 = vunpack.c.l.b16 %v798
      %v2646 = vunpack.c.l.b16 %v799
      %v2647 = vunpack.c.l.b16 %v800
      %v2648 = vunpack.c.l.b16 %v801
      %v2649 = vunpack.c.l.b16 %v802
      %v2650 = vunpack.c.l.b16 %v803
      %v2651 = vunpack.c.l.b16 %v804
      %v2652 = vunpack.c.l.b16 %v805
      %v2653 = vpack.c.b16 %v2622, %v2621
      %v2654 = vpack.c.b16 %v2624, %v2623
      %v2655 = vpack.c.b16 %v2626, %v2625
      %v2656 = vpack.c.b16 %v2628, %v2627
      %v2657 = vpack.c.b16 %v2630, %v2629
      %v2658 = vpack.c.b16 %v2632, %v2631
      %v2659 = vpack.c.b16 %v2634, %v2633
      %v2660 = vpack.c.b16 %v2636, %v2635
      %v2661 = vpack.c.b16 %v2638, %v2637
      %v2662 = vpack.c.b16 %v2640, %v2639
      %v2663 = vpack.c.b16 %v2642, %v2641
      %v2664 = vpack.c.b16 %v2644, %v2643
      %v2665 = vpack.c.b16 %v2646, %v2645
      %v2666 = vpack.c.b16 %v2648, %v2647
      %v2667 = vpack.c.b16 %v2650, %v2649
      %v2668 = vpack.c.b16 %v2652, %v2651
      %v2669 = vunpack.c.l.b16 %v838
      %v2670 = vunpack.c.l.b16 %v848
      %v2671 = vunpack.c.l.b16 %v862
      %v2672 = vunpack.c.l.b16 %v872
      %v2673 = vunpack.c.l.b16 %v886
      %v2674 = vunpack.c.l.b16 %v896
      %v2675 = vunpack.c.l.b16 %v910
      %v2676 = vunpack.c.l.b16 %v920
      %v2677 = vunpack.c.l.b16 %v934
      %v2678 = vunpack.c.l.b16 %v944
      %v2679 = vunpack.c.l.b16 %v958
      %v2680 = vunpack.c.l.b16 %v968
      %v2681 = vunpack.c.l.b16 %v982
      %v2682 = vunpack.c.l.b16 %v992
      %v2683 = vunpack.c.l.b16 %v1006
      %v2684 = vunpack.c.l.b16 %v1016
      %v2685 = vunpack.c.l.b16 %v1030
      %v2686 = vunpack.c.l.b16 %v1040
      %v2687 = vunpack.c.l.b16 %v1054
      %v2688 = vunpack.c.l.b16 %v1064
      %v2689 = vunpack.c.l.b16 %v1078
      %v2690 = vunpack.c.l.b16 %v1088
      %v2691 = vunpack.c.l.b16 %v1102
      %v2692 = vunpack.c.l.b16 %v1112
      %v2693 = vunpack.c.l.b16 %v1126
      %v2694 = vunpack.c.l.b16 %v1136
      %v2695 = vunpack.c.l.b16 %v1150
      %v2696 = vunpack.c.l.b16 %v1160
      %v2697 = vunpack.c.l.b16 %v1174
      %v2698 = vunpack.c.l.b16 %v1184
      %v2699 = vunpack.c.l.b16 %v1198
      %v2700 = vunpack.c.l.b16 %v1208
      %v2701 = vpack.c.b16 %v2670, %v2669
      %v2702 = vpack.c.b16 %v2672, %v2671
      %v2703 = vpack.c.b16 %v2674, %v2673
      %v2704 = vpack.c.b16 %v2676, %v2675
      %v2705 = vpack.c.b16 %v2678, %v2677
      %v2706 = vpack.c.b16 %v2680, %v2679
      %v2707 = vpack.c.b16 %v2682, %v2681
      %v2708 = vpack.c.b16 %v2684, %v2683
      %v2709 = vpack.c.b16 %v2686, %v2685
      %v2710 = vpack.c.b16 %v2688, %v2687
      %v2711 = vpack.c.b16 %v2690, %v2689
      %v2712 = vpack.c.b16 %v2692, %v2691
      %v2713 = vpack.c.b16 %v2694, %v2693
      %v2714 = vpack.c.b16 %v2696, %v2695
      %v2715 = vpack.c.b16 %v2698, %v2697
      %v2716 = vpack.c.b16 %v2700, %v2699
      %2717 = vrot.lane.b32.xlu0 %v2701, 4
      %v2718 = vpop.permute.xlu0 %2717
      %2719 = vrot.lane.b32.xlu0 %v2702, 4
      %v2720 = vpop.permute.xlu0 %2719
      %2721 = vrot.lane.b32.xlu0 %v2703, 4
      %v2722 = vpop.permute.xlu0 %2721
      %2723 = vrot.lane.b32.xlu0 %v2704, 4
      %v2724 = vpop.permute.xlu0 %2723
      %2725 = vrot.lane.b32.xlu0 %v2705, 4
      %v2726 = vpop.permute.xlu0 %2725
      %2727 = vrot.lane.b32.xlu0 %v2706, 4
      %v2728 = vpop.permute.xlu0 %2727
      %2729 = vrot.lane.b32.xlu0 %v2707, 4
      %v2730 = vpop.permute.xlu0 %2729
      %2731 = vrot.lane.b32.xlu0 %v2708, 4
      %v2732 = vpop.permute.xlu0 %2731
      %2733 = vrot.lane.b32.xlu0 %v2709, 4
      %v2734 = vpop.permute.xlu0 %2733
      %2735 = vrot.lane.b32.xlu0 %v2710, 4
      %v2736 = vpop.permute.xlu0 %2735
      %2737 = vrot.lane.b32.xlu0 %v2711, 4
      %v2738 = vpop.permute.xlu0 %2737
      %2739 = vrot.lane.b32.xlu0 %v2712, 4
      %v2740 = vpop.permute.xlu0 %2739
      %2741 = vrot.lane.b32.xlu0 %v2713, 4
      %v2742 = vpop.permute.xlu0 %2741
      %2743 = vrot.lane.b32.xlu0 %v2714, 4
      %v2744 = vpop.permute.xlu0 %2743
      %2745 = vrot.lane.b32.xlu0 %v2715, 4
      %v2746 = vpop.permute.xlu0 %2745
      %2747 = vrot.lane.b32.xlu0 %v2716, 4
      %v2748 = vpop.permute.xlu0 %2747
      %v2749 = vunpack.c.l.b16 %v1279
      %v2750 = vunpack.c.l.b16 %v1282
      %v2751 = vunpack.c.l.b16 %v1286
      %v2752 = vunpack.c.l.b16 %v1289
      %v2753 = vunpack.c.l.b16 %v1293
      %v2754 = vunpack.c.l.b16 %v1296
      %v2755 = vunpack.c.l.b16 %v1300
      %v2756 = vunpack.c.l.b16 %v1303
      %v2757 = vunpack.c.l.b16 %v1307
      %v2758 = vunpack.c.l.b16 %v1310
      %v2759 = vunpack.c.l.b16 %v1314
      %v2760 = vunpack.c.l.b16 %v1317
      %v2761 = vunpack.c.l.b16 %v1321
      %v2762 = vunpack.c.l.b16 %v1324
      %v2763 = vunpack.c.l.b16 %v1328
      %v2764 = vunpack.c.l.b16 %v1331
      %v2765 = vunpack.c.l.b16 %v1335
      %v2766 = vunpack.c.l.b16 %v1338
      %v2767 = vunpack.c.l.b16 %v1342
      %v2768 = vunpack.c.l.b16 %v1345
      %v2769 = vunpack.c.l.b16 %v1349
      %v2770 = vunpack.c.l.b16 %v1352
      %v2771 = vunpack.c.l.b16 %v1356
      %v2772 = vunpack.c.l.b16 %v1359
      %v2773 = vunpack.c.l.b16 %v1363
      %v2774 = vunpack.c.l.b16 %v1366
      %v2775 = vunpack.c.l.b16 %v1370
      %v2776 = vunpack.c.l.b16 %v1373
      %v2777 = vunpack.c.l.b16 %v1377
      %v2778 = vunpack.c.l.b16 %v1380
      %v2779 = vunpack.c.l.b16 %v1384
      %v2780 = vunpack.c.l.b16 %v1387
      %v2781 = vpack.c.b16 %v2750, %v2749
      %v2782 = vpack.c.b16 %v2752, %v2751
      %v2783 = vpack.c.b16 %v2754, %v2753
      %v2784 = vpack.c.b16 %v2756, %v2755
      %v2785 = vpack.c.b16 %v2758, %v2757
      %v2786 = vpack.c.b16 %v2760, %v2759
      %v2787 = vpack.c.b16 %v2762, %v2761
      %v2788 = vpack.c.b16 %v2764, %v2763
      %v2789 = vpack.c.b16 %v2766, %v2765
      %v2790 = vpack.c.b16 %v2768, %v2767
      %v2791 = vpack.c.b16 %v2770, %v2769
      %v2792 = vpack.c.b16 %v2772, %v2771
      %v2793 = vpack.c.b16 %v2774, %v2773
      %v2794 = vpack.c.b16 %v2776, %v2775
      %v2795 = vpack.c.b16 %v2778, %v2777
      %v2796 = vpack.c.b16 %v2780, %v2779
      %2797 = vrot.lane.b32.xlu0 %v2781, 8
      %v2798 = vpop.permute.xlu0 %2797
      %2799 = vrot.lane.b32.xlu0 %v2782, 8
      %v2800 = vpop.permute.xlu0 %2799
      %2801 = vrot.lane.b32.xlu0 %v2783, 8
      %v2802 = vpop.permute.xlu0 %2801
      %2803 = vrot.lane.b32.xlu0 %v2784, 8
      %v2804 = vpop.permute.xlu0 %2803
      %2805 = vrot.lane.b32.xlu0 %v2785, 8
      %v2806 = vpop.permute.xlu0 %2805
      %2807 = vrot.lane.b32.xlu0 %v2786, 8
      %v2808 = vpop.permute.xlu0 %2807
      %2809 = vrot.lane.b32.xlu0 %v2787, 8
      %v2810 = vpop.permute.xlu0 %2809
      %2811 = vrot.lane.b32.xlu0 %v2788, 8
      %v2812 = vpop.permute.xlu0 %2811
      %2813 = vrot.lane.b32.xlu0 %v2789, 8
      %v2814 = vpop.permute.xlu0 %2813
      %2815 = vrot.lane.b32.xlu0 %v2790, 8
      %v2816 = vpop.permute.xlu0 %2815
      %2817 = vrot.lane.b32.xlu0 %v2791, 8
      %v2818 = vpop.permute.xlu0 %2817
      %2819 = vrot.lane.b32.xlu0 %v2792, 8
      %v2820 = vpop.permute.xlu0 %2819
      %2821 = vrot.lane.b32.xlu0 %v2793, 8
      %v2822 = vpop.permute.xlu0 %2821
      %2823 = vrot.lane.b32.xlu0 %v2794, 8
      %v2824 = vpop.permute.xlu0 %2823
      %2825 = vrot.lane.b32.xlu0 %v2795, 8
      %v2826 = vpop.permute.xlu0 %2825
      %2827 = vrot.lane.b32.xlu0 %v2796, 8
      %v2828 = vpop.permute.xlu0 %2827
      %v2845 = vunpack.c.l.b16 %v1388
      %v2846 = vunpack.c.l.b16 %v1389
      %v2847 = vunpack.c.l.b16 %v1390
      %v2848 = vunpack.c.l.b16 %v1391
      %v2849 = vunpack.c.l.b16 %v1392
      %v2850 = vunpack.c.l.b16 %v1393
      %v2851 = vunpack.c.l.b16 %v1394
      %v2852 = vunpack.c.l.b16 %v1395
      %v2853 = vunpack.c.l.b16 %v1396
      %v2854 = vunpack.c.l.b16 %v1397
      %v2855 = vunpack.c.l.b16 %v1398
      %v2856 = vunpack.c.l.b16 %v1399
      %v2857 = vunpack.c.l.b16 %v1400
      %v2858 = vunpack.c.l.b16 %v1401
      %v2859 = vunpack.c.l.b16 %v1402
      %v2860 = vunpack.c.l.b16 %v1403
      %v2861 = vunpack.c.l.b16 %v1404
      %v2862 = vunpack.c.l.b16 %v1405
      %v2863 = vunpack.c.l.b16 %v1406
      %v2864 = vunpack.c.l.b16 %v1407
      %v2865 = vunpack.c.l.b16 %v1408
      %v2866 = vunpack.c.l.b16 %v1409
      %v2867 = vunpack.c.l.b16 %v1410
      %v2868 = vunpack.c.l.b16 %v1411
      %v2869 = vunpack.c.l.b16 %v1412
      %v2870 = vunpack.c.l.b16 %v1413
      %v2871 = vunpack.c.l.b16 %v1414
      %v2872 = vunpack.c.l.b16 %v1415
      %v2873 = vunpack.c.l.b16 %v1416
      %v2874 = vunpack.c.l.b16 %v1417
      %v2875 = vunpack.c.l.b16 %v1418
      %v2876 = vunpack.c.l.b16 %v1419
      %v2877 = vpack.c.b16 %v2846, %v2845
      %v2878 = vpack.c.b16 %v2848, %v2847
      %v2879 = vpack.c.b16 %v2850, %v2849
      %v2880 = vpack.c.b16 %v2852, %v2851
      %v2881 = vpack.c.b16 %v2854, %v2853
      %v2882 = vpack.c.b16 %v2856, %v2855
      %v2883 = vpack.c.b16 %v2858, %v2857
      %v2884 = vpack.c.b16 %v2860, %v2859
      %v2885 = vpack.c.b16 %v2862, %v2861
      %v2886 = vpack.c.b16 %v2864, %v2863
      %v2887 = vpack.c.b16 %v2866, %v2865
      %v2888 = vpack.c.b16 %v2868, %v2867
      %v2889 = vpack.c.b16 %v2870, %v2869
      %v2890 = vpack.c.b16 %v2872, %v2871
      %v2891 = vpack.c.b16 %v2874, %v2873
      %v2892 = vpack.c.b16 %v2876, %v2875
      %2893 = vrot.lane.b32.xlu0 %v2877, 12
      %v2894 = vpop.permute.xlu0 %2893
      %2895 = vrot.lane.b32.xlu0 %v2878, 12
      %v2896 = vpop.permute.xlu0 %2895
      %2897 = vrot.lane.b32.xlu0 %v2879, 12
      %v2898 = vpop.permute.xlu0 %2897
      %2899 = vrot.lane.b32.xlu0 %v2880, 12
      %v2900 = vpop.permute.xlu0 %2899
      %2901 = vrot.lane.b32.xlu0 %v2881, 12
      %v2902 = vpop.permute.xlu0 %2901
      %2903 = vrot.lane.b32.xlu0 %v2882, 12
      %v2904 = vpop.permute.xlu0 %2903
      %2905 = vrot.lane.b32.xlu0 %v2883, 12
      %v2906 = vpop.permute.xlu0 %2905
      %2907 = vrot.lane.b32.xlu0 %v2884, 12
      %v2908 = vpop.permute.xlu0 %2907
      %2909 = vrot.lane.b32.xlu0 %v2885, 12
      %v2910 = vpop.permute.xlu0 %2909
      %2911 = vrot.lane.b32.xlu0 %v2886, 12
      %v2912 = vpop.permute.xlu0 %2911
      %2913 = vrot.lane.b32.xlu0 %v2887, 12
      %v2914 = vpop.permute.xlu0 %2913
      %2915 = vrot.lane.b32.xlu0 %v2888, 12
      %v2916 = vpop.permute.xlu0 %2915
      %2917 = vrot.lane.b32.xlu0 %v2889, 12
      %v2918 = vpop.permute.xlu0 %2917
      %2919 = vrot.lane.b32.xlu0 %v2890, 12
      %v2920 = vpop.permute.xlu0 %2919
      %2921 = vrot.lane.b32.xlu0 %v2891, 12
      %v2922 = vpop.permute.xlu0 %2921
      %2923 = vrot.lane.b32.xlu0 %v2892, 12
      %v2924 = vpop.permute.xlu0 %2923
      %v2925 = vunpack.c.l.b16 %v1449
      %v2926 = vunpack.c.l.b16 %v1459
      %v2927 = vunpack.c.l.b16 %v1473
      %v2928 = vunpack.c.l.b16 %v1483
      %v2929 = vunpack.c.l.b16 %v1497
      %v2930 = vunpack.c.l.b16 %v1507
      %v2931 = vunpack.c.l.b16 %v1521
      %v2932 = vunpack.c.l.b16 %v1531
      %v2933 = vunpack.c.l.b16 %v1545
      %v2934 = vunpack.c.l.b16 %v1555
      %v2935 = vunpack.c.l.b16 %v1569
      %v2936 = vunpack.c.l.b16 %v1579
      %v2937 = vunpack.c.l.b16 %v1593
      %v2938 = vunpack.c.l.b16 %v1603
      %v2939 = vunpack.c.l.b16 %v1617
      %v2940 = vunpack.c.l.b16 %v1627
      %v2941 = vunpack.c.l.b16 %v1641
      %v2942 = vunpack.c.l.b16 %v1651
      %v2943 = vunpack.c.l.b16 %v1665
      %v2944 = vunpack.c.l.b16 %v1675
      %v2945 = vunpack.c.l.b16 %v1689
      %v2946 = vunpack.c.l.b16 %v1699
      %v2947 = vunpack.c.l.b16 %v1713
      %v2948 = vunpack.c.l.b16 %v1723
      %v2949 = vunpack.c.l.b16 %v1737
      %v2950 = vunpack.c.l.b16 %v1747
      %v2951 = vunpack.c.l.b16 %v1761
      %v2952 = vunpack.c.l.b16 %v1771
      %v2953 = vunpack.c.l.b16 %v1785
      %v2954 = vunpack.c.l.b16 %v1795
      %v2955 = vunpack.c.l.b16 %v1809
      %v2956 = vunpack.c.l.b16 %v1819
      %v2957 = vpack.c.b16 %v2926, %v2925
      %v2958 = vpack.c.b16 %v2928, %v2927
      %v2959 = vpack.c.b16 %v2930, %v2929
      %v2960 = vpack.c.b16 %v2932, %v2931
      %v2961 = vpack.c.b16 %v2934, %v2933
      %v2962 = vpack.c.b16 %v2936, %v2935
      %v2963 = vpack.c.b16 %v2938, %v2937
      %v2964 = vpack.c.b16 %v2940, %v2939
      %v2965 = vpack.c.b16 %v2942, %v2941
      %v2966 = vpack.c.b16 %v2944, %v2943
      %v2967 = vpack.c.b16 %v2946, %v2945
      %v2968 = vpack.c.b16 %v2948, %v2947
      %v2969 = vpack.c.b16 %v2950, %v2949
      %v2970 = vpack.c.b16 %v2952, %v2951
      %v2971 = vpack.c.b16 %v2954, %v2953
      %v2972 = vpack.c.b16 %v2956, %v2955
      %2973 = vrot.lane.b32.xlu0 %v2957, 16
      %v2974 = vpop.permute.xlu0 %2973
      %2975 = vrot.lane.b32.xlu0 %v2958, 16
      %v2976 = vpop.permute.xlu0 %2975
      %2977 = vrot.lane.b32.xlu0 %v2959, 16
      %v2978 = vpop.permute.xlu0 %2977
      %2979 = vrot.lane.b32.xlu0 %v2960, 16
      %v2980 = vpop.permute.xlu0 %2979
      %2981 = vrot.lane.b32.xlu0 %v2961, 16
      %v2982 = vpop.permute.xlu0 %2981
      %2983 = vrot.lane.b32.xlu0 %v2962, 16
      %v2984 = vpop.permute.xlu0 %2983
      %2985 = vrot.lane.b32.xlu0 %v2963, 16
      %v2986 = vpop.permute.xlu0 %2985
      %2987 = vrot.lane.b32.xlu0 %v2964, 16
      %v2988 = vpop.permute.xlu0 %2987
      %2989 = vrot.lane.b32.xlu0 %v2965, 16
      %v2990 = vpop.permute.xlu0 %2989
      %2991 = vrot.lane.b32.xlu0 %v2966, 16
      %v2992 = vpop.permute.xlu0 %2991
      %2993 = vrot.lane.b32.xlu0 %v2967, 16
      %v2994 = vpop.permute.xlu0 %2993
      %2995 = vrot.lane.b32.xlu0 %v2968, 16
      %v2996 = vpop.permute.xlu0 %2995
      %2997 = vrot.lane.b32.xlu0 %v2969, 16
      %v2998 = vpop.permute.xlu0 %2997
      %2999 = vrot.lane.b32.xlu0 %v2970, 16
      %v3000 = vpop.permute.xlu0 %2999
      %3001 = vrot.lane.b32.xlu0 %v2971, 16
      %v3002 = vpop.permute.xlu0 %3001
      %3003 = vrot.lane.b32.xlu0 %v2972, 16
      %v3004 = vpop.permute.xlu0 %3003
      %v3005 = vunpack.c.l.b16 %v1887
      %v3006 = vunpack.c.l.b16 %v1890
      %v3007 = vunpack.c.l.b16 %v1894
      %v3008 = vunpack.c.l.b16 %v1897
      %v3009 = vunpack.c.l.b16 %v1901
      %v3010 = vunpack.c.l.b16 %v1904
      %v3011 = vunpack.c.l.b16 %v1908
      %v3012 = vunpack.c.l.b16 %v1911
      %v3013 = vunpack.c.l.b16 %v1915
      %v3014 = vunpack.c.l.b16 %v1918
      %v3015 = vunpack.c.l.b16 %v1922
      %v3016 = vunpack.c.l.b16 %v1925
      %v3017 = vunpack.c.l.b16 %v1929
      %v3018 = vunpack.c.l.b16 %v1932
      %v3019 = vunpack.c.l.b16 %v1936
      %v3020 = vunpack.c.l.b16 %v1939
      %v3021 = vunpack.c.l.b16 %v1943
      %v3022 = vunpack.c.l.b16 %v1946
      %v3023 = vunpack.c.l.b16 %v1950
      %v3024 = vunpack.c.l.b16 %v1953
      %v3025 = vunpack.c.l.b16 %v1957
      %v3026 = vunpack.c.l.b16 %v1960
      %v3027 = vunpack.c.l.b16 %v1964
      %v3028 = vunpack.c.l.b16 %v1967
      %v3029 = vunpack.c.l.b16 %v1971
      %v3030 = vunpack.c.l.b16 %v1974
      %v3031 = vunpack.c.l.b16 %v1978
      %v3032 = vunpack.c.l.b16 %v1981
      %v3033 = vunpack.c.l.b16 %v1985
      %v3034 = vunpack.c.l.b16 %v1988
      %v3035 = vunpack.c.l.b16 %v1992
      %v3036 = vunpack.c.l.b16 %v1995
      %v3037 = vpack.c.b16 %v3006, %v3005
      %v3038 = vpack.c.b16 %v3008, %v3007
      %v3039 = vpack.c.b16 %v3010, %v3009
      %v3040 = vpack.c.b16 %v3012, %v3011
      %v3041 = vpack.c.b16 %v3014, %v3013
      %v3042 = vpack.c.b16 %v3016, %v3015
      %v3043 = vpack.c.b16 %v3018, %v3017
      %v3044 = vpack.c.b16 %v3020, %v3019
      %v3045 = vpack.c.b16 %v3022, %v3021
      %v3046 = vpack.c.b16 %v3024, %v3023
      %v3047 = vpack.c.b16 %v3026, %v3025
      %v3048 = vpack.c.b16 %v3028, %v3027
      %v3049 = vpack.c.b16 %v3030, %v3029
      %v3050 = vpack.c.b16 %v3032, %v3031
      %v3051 = vpack.c.b16 %v3034, %v3033
      %v3052 = vpack.c.b16 %v3036, %v3035
      %3053 = vrot.lane.b32.xlu0 %v3037, 20
      %v3054 = vpop.permute.xlu0 %3053
      %3055 = vrot.lane.b32.xlu0 %v3038, 20
      %v3056 = vpop.permute.xlu0 %3055
      %3057 = vrot.lane.b32.xlu0 %v3039, 20
      %v3058 = vpop.permute.xlu0 %3057
      %3059 = vrot.lane.b32.xlu0 %v3040, 20
      %v3060 = vpop.permute.xlu0 %3059
      %3061 = vrot.lane.b32.xlu0 %v3041, 20
      %v3062 = vpop.permute.xlu0 %3061
      %3063 = vrot.lane.b32.xlu0 %v3042, 20
      %v3064 = vpop.permute.xlu0 %3063
      %3065 = vrot.lane.b32.xlu0 %v3043, 20
      %v3066 = vpop.permute.xlu0 %3065
      %3067 = vrot.lane.b32.xlu0 %v3044, 20
      %v3068 = vpop.permute.xlu0 %3067
      %3069 = vrot.lane.b32.xlu0 %v3045, 20
      %v3070 = vpop.permute.xlu0 %3069
      %3071 = vrot.lane.b32.xlu0 %v3046, 20
      %v3072 = vpop.permute.xlu0 %3071
      %3073 = vrot.lane.b32.xlu0 %v3047, 20
      %v3074 = vpop.permute.xlu0 %3073
      %3075 = vrot.lane.b32.xlu0 %v3048, 20
      %v3076 = vpop.permute.xlu0 %3075
      %3077 = vrot.lane.b32.xlu0 %v3049, 20
      %v3078 = vpop.permute.xlu0 %3077
      %3079 = vrot.lane.b32.xlu0 %v3050, 20
      %v3080 = vpop.permute.xlu0 %3079
      %3081 = vrot.lane.b32.xlu0 %v3051, 20
      %v3082 = vpop.permute.xlu0 %3081
      %3083 = vrot.lane.b32.xlu0 %v3052, 20
      %v3084 = vpop.permute.xlu0 %3083
      %v3101 = vunpack.c.l.b16 %v1997
      %v3102 = vunpack.c.l.b16 %v1998
      %v3103 = vunpack.c.l.b16 %v1999
      %v3104 = vunpack.c.l.b16 %v2000
      %v3105 = vunpack.c.l.b16 %v2001
      %v3106 = vunpack.c.l.b16 %v2002
      %v3107 = vunpack.c.l.b16 %v2003
      %v3108 = vunpack.c.l.b16 %v2004
      %v3109 = vunpack.c.l.b16 %v2005
      %v3110 = vunpack.c.l.b16 %v2006
      %v3111 = vunpack.c.l.b16 %v2007
      %v3112 = vunpack.c.l.b16 %v2008
      %v3113 = vunpack.c.l.b16 %v2009
      %v3114 = vunpack.c.l.b16 %v2010
      %v3115 = vunpack.c.l.b16 %v2011
      %v3116 = vunpack.c.l.b16 %v2012
      %v3117 = vunpack.c.l.b16 %v2013
      %v3118 = vunpack.c.l.b16 %v2014
      %v3119 = vunpack.c.l.b16 %v2015
      %v3120 = vunpack.c.l.b16 %v2016
      %v3121 = vunpack.c.l.b16 %v2017
      %v3122 = vunpack.c.l.b16 %v2018
      %v3123 = vunpack.c.l.b16 %v2019
      %v3124 = vunpack.c.l.b16 %v2020
      %v3125 = vunpack.c.l.b16 %v2021
      %v3126 = vunpack.c.l.b16 %v2022
      %v3127 = vunpack.c.l.b16 %v2023
      %v3128 = vunpack.c.l.b16 %v2024
      %v3129 = vunpack.c.l.b16 %v2025
      %v3130 = vunpack.c.l.b16 %v2026
      %v3131 = vunpack.c.l.b16 %v2027
      %v3132 = vunpack.c.l.b16 %v2028
      %v3133 = vpack.c.b16 %v3102, %v3101
      %v3134 = vpack.c.b16 %v3104, %v3103
      %v3135 = vpack.c.b16 %v3106, %v3105
      %v3136 = vpack.c.b16 %v3108, %v3107
      %v3137 = vpack.c.b16 %v3110, %v3109
      %v3138 = vpack.c.b16 %v3112, %v3111
      %v3139 = vpack.c.b16 %v3114, %v3113
      %v3140 = vpack.c.b16 %v3116, %v3115
      %v3141 = vpack.c.b16 %v3118, %v3117
      %v3142 = vpack.c.b16 %v3120, %v3119
      %v3143 = vpack.c.b16 %v3122, %v3121
      %v3144 = vpack.c.b16 %v3124, %v3123
      %v3145 = vpack.c.b16 %v3126, %v3125
      %v3146 = vpack.c.b16 %v3128, %v3127
      %v3147 = vpack.c.b16 %v3130, %v3129
      %v3148 = vpack.c.b16 %v3132, %v3131
      %3149 = vrot.lane.b32.xlu0 %v3133, 24
      %v3150 = vpop.permute.xlu0 %3149
      %3151 = vrot.lane.b32.xlu0 %v3134, 24
      %v3152 = vpop.permute.xlu0 %3151
      %3153 = vrot.lane.b32.xlu0 %v3135, 24
      %v3154 = vpop.permute.xlu0 %3153
      %3155 = vrot.lane.b32.xlu0 %v3136, 24
      %v3156 = vpop.permute.xlu0 %3155
      %3157 = vrot.lane.b32.xlu0 %v3137, 24
      %v3158 = vpop.permute.xlu0 %3157
      %3159 = vrot.lane.b32.xlu0 %v3138, 24
      %v3160 = vpop.permute.xlu0 %3159
      %3161 = vrot.lane.b32.xlu0 %v3139, 24
      %v3162 = vpop.permute.xlu0 %3161
      %3163 = vrot.lane.b32.xlu0 %v3140, 24
      %v3164 = vpop.permute.xlu0 %3163
      %3165 = vrot.lane.b32.xlu0 %v3141, 24
      %v3166 = vpop.permute.xlu0 %3165
      %3167 = vrot.lane.b32.xlu0 %v3142, 24
      %v3168 = vpop.permute.xlu0 %3167
      %3169 = vrot.lane.b32.xlu0 %v3143, 24
      %v3170 = vpop.permute.xlu0 %3169
      %3171 = vrot.lane.b32.xlu0 %v3144, 24
      %v3172 = vpop.permute.xlu0 %3171
      %3173 = vrot.lane.b32.xlu0 %v3145, 24
      %v3174 = vpop.permute.xlu0 %3173
      %3175 = vrot.lane.b32.xlu0 %v3146, 24
      %v3176 = vpop.permute.xlu0 %3175
      %3177 = vrot.lane.b32.xlu0 %v3147, 24
      %v3178 = vpop.permute.xlu0 %3177
      %3179 = vrot.lane.b32.xlu0 %v3148, 24
      %v3180 = vpop.permute.xlu0 %3179
      %v3181 = vunpack.c.l.b16 %v2058
      %v3182 = vunpack.c.l.b16 %v2068
      %v3183 = vunpack.c.l.b16 %v2082
      %v3184 = vunpack.c.l.b16 %v2092
      %v3185 = vunpack.c.l.b16 %v2106
      %v3186 = vunpack.c.l.b16 %v2116
      %v3187 = vunpack.c.l.b16 %v2130
      %v3188 = vunpack.c.l.b16 %v2140
      %v3189 = vunpack.c.l.b16 %v2154
      %v3190 = vunpack.c.l.b16 %v2164
      %v3191 = vunpack.c.l.b16 %v2178
      %v3192 = vunpack.c.l.b16 %v2188
      %v3193 = vunpack.c.l.b16 %v2202
      %v3194 = vunpack.c.l.b16 %v2212
      %v3195 = vunpack.c.l.b16 %v2226
      %v3196 = vunpack.c.l.b16 %v2236
      %v3197 = vunpack.c.l.b16 %v2250
      %v3198 = vunpack.c.l.b16 %v2260
      %v3199 = vunpack.c.l.b16 %v2274
      %v3200 = vunpack.c.l.b16 %v2284
      %v3201 = vunpack.c.l.b16 %v2298
      %v3202 = vunpack.c.l.b16 %v2308
      %v3203 = vunpack.c.l.b16 %v2322
      %v3204 = vunpack.c.l.b16 %v2332
      %v3205 = vunpack.c.l.b16 %v2346
      %v3206 = vunpack.c.l.b16 %v2356
      %v3207 = vunpack.c.l.b16 %v2370
      %v3208 = vunpack.c.l.b16 %v2380
      %v3209 = vunpack.c.l.b16 %v2394
      %v3210 = vunpack.c.l.b16 %v2404
      %v3211 = vunpack.c.l.b16 %v2418
      %v3212 = vunpack.c.l.b16 %v2428
      %v3213 = vpack.c.b16 %v3182, %v3181
      %v3214 = vpack.c.b16 %v3184, %v3183
      %v3215 = vpack.c.b16 %v3186, %v3185
      %v3216 = vpack.c.b16 %v3188, %v3187
      %v3217 = vpack.c.b16 %v3190, %v3189
      %v3218 = vpack.c.b16 %v3192, %v3191
      %v3219 = vpack.c.b16 %v3194, %v3193
      %v3220 = vpack.c.b16 %v3196, %v3195
      %v3221 = vpack.c.b16 %v3198, %v3197
      %v3222 = vpack.c.b16 %v3200, %v3199
      %v3223 = vpack.c.b16 %v3202, %v3201
      %v3224 = vpack.c.b16 %v3204, %v3203
      %v3225 = vpack.c.b16 %v3206, %v3205
      %v3226 = vpack.c.b16 %v3208, %v3207
      %v3227 = vpack.c.b16 %v3210, %v3209
      %v3228 = vpack.c.b16 %v3212, %v3211
      %3229 = vrot.lane.b32.xlu0 %v3213, 28
      %v3230 = vpop.permute.xlu0 %3229
      %3231 = vrot.lane.b32.xlu0 %v3214, 28
      %v3232 = vpop.permute.xlu0 %3231
      %3233 = vrot.lane.b32.xlu0 %v3215, 28
      %v3234 = vpop.permute.xlu0 %3233
      %3235 = vrot.lane.b32.xlu0 %v3216, 28
      %v3236 = vpop.permute.xlu0 %3235
      %3237 = vrot.lane.b32.xlu0 %v3217, 28
      %v3238 = vpop.permute.xlu0 %3237
      %3239 = vrot.lane.b32.xlu0 %v3218, 28
      %v3240 = vpop.permute.xlu0 %3239
      %3241 = vrot.lane.b32.xlu0 %v3219, 28
      %v3242 = vpop.permute.xlu0 %3241
      %3243 = vrot.lane.b32.xlu0 %v3220, 28
      %v3244 = vpop.permute.xlu0 %3243
      %3245 = vrot.lane.b32.xlu0 %v3221, 28
      %v3246 = vpop.permute.xlu0 %3245
      %3247 = vrot.lane.b32.xlu0 %v3222, 28
      %v3248 = vpop.permute.xlu0 %3247
      %3249 = vrot.lane.b32.xlu0 %v3223, 28
      %v3250 = vpop.permute.xlu0 %3249
      %3251 = vrot.lane.b32.xlu0 %v3224, 28
      %v3252 = vpop.permute.xlu0 %3251
      %3253 = vrot.lane.b32.xlu0 %v3225, 28
      %v3254 = vpop.permute.xlu0 %3253
      %3255 = vrot.lane.b32.xlu0 %v3226, 28
      %v3256 = vpop.permute.xlu0 %3255
      %3257 = vrot.lane.b32.xlu0 %v3227, 28
      %v3258 = vpop.permute.xlu0 %3257
      %3259 = vrot.lane.b32.xlu0 %v3228, 28
      %v3260 = vpop.permute.xlu0 %3259
      %v3261 = vunpack.c.l.b16 %v2496
      %v3262 = vunpack.c.l.b16 %v2499
      %v3263 = vunpack.c.l.b16 %v2503
      %v3264 = vunpack.c.l.b16 %v2506
      %v3265 = vunpack.c.l.b16 %v2510
      %v3266 = vunpack.c.l.b16 %v2513
      %v3267 = vunpack.c.l.b16 %v2517
      %v3268 = vunpack.c.l.b16 %v2520
      %v3269 = vunpack.c.l.b16 %v2524
      %v3270 = vunpack.c.l.b16 %v2527
      %v3271 = vunpack.c.l.b16 %v2531
      %v3272 = vunpack.c.l.b16 %v2534
      %v3273 = vunpack.c.l.b16 %v2538
      %v3274 = vunpack.c.l.b16 %v2541
      %v3275 = vunpack.c.l.b16 %v2545
      %v3276 = vunpack.c.l.b16 %v2548
      %v3277 = vunpack.c.l.b16 %v2552
      %v3278 = vunpack.c.l.b16 %v2555
      %v3279 = vunpack.c.l.b16 %v2559
      %v3280 = vunpack.c.l.b16 %v2562
      %v3281 = vunpack.c.l.b16 %v2566
      %v3282 = vunpack.c.l.b16 %v2569
      %v3283 = vunpack.c.l.b16 %v2573
      %v3284 = vunpack.c.l.b16 %v2576
      %v3285 = vunpack.c.l.b16 %v2580
      %v3286 = vunpack.c.l.b16 %v2583
      %v3287 = vunpack.c.l.b16 %v2587
      %v3288 = vunpack.c.l.b16 %v2590
      %v3289 = vunpack.c.l.b16 %v2594
      %v3290 = vunpack.c.l.b16 %v2597
      %v3291 = vunpack.c.l.b16 %v2601
      %v3292 = vunpack.c.l.b16 %v2604
      %v3293 = vpack.c.b16 %v3262, %v3261
      %v3294 = vpack.c.b16 %v3264, %v3263
      %v3295 = vpack.c.b16 %v3266, %v3265
      %v3296 = vpack.c.b16 %v3268, %v3267
      %v3297 = vpack.c.b16 %v3270, %v3269
      %v3298 = vpack.c.b16 %v3272, %v3271
      %v3299 = vpack.c.b16 %v3274, %v3273
      %v3300 = vpack.c.b16 %v3276, %v3275
      %v3301 = vpack.c.b16 %v3278, %v3277
      %v3302 = vpack.c.b16 %v3280, %v3279
      %v3303 = vpack.c.b16 %v3282, %v3281
      %v3304 = vpack.c.b16 %v3284, %v3283
      %v3305 = vpack.c.b16 %v3286, %v3285
      %v3306 = vpack.c.b16 %v3288, %v3287
      %v3307 = vpack.c.b16 %v3290, %v3289
      %v3308 = vpack.c.b16 %v3292, %v3291
      %3309 = vrot.lane.b32.xlu0 %v3293, 32
      %v3310 = vpop.permute.xlu0 %3309
      %3311 = vrot.lane.b32.xlu0 %v3294, 32
      %v3312 = vpop.permute.xlu0 %3311
      %3313 = vrot.lane.b32.xlu0 %v3295, 32
      %v3314 = vpop.permute.xlu0 %3313
      %3315 = vrot.lane.b32.xlu0 %v3296, 32
      %v3316 = vpop.permute.xlu0 %3315
      %3317 = vrot.lane.b32.xlu0 %v3297, 32
      %v3318 = vpop.permute.xlu0 %3317
      %3319 = vrot.lane.b32.xlu0 %v3298, 32
      %v3320 = vpop.permute.xlu0 %3319
      %3321 = vrot.lane.b32.xlu0 %v3299, 32
      %v3322 = vpop.permute.xlu0 %3321
      %3323 = vrot.lane.b32.xlu0 %v3300, 32
      %v3324 = vpop.permute.xlu0 %3323
      %3325 = vrot.lane.b32.xlu0 %v3301, 32
      %v3326 = vpop.permute.xlu0 %3325
      %3327 = vrot.lane.b32.xlu0 %v3302, 32
      %v3328 = vpop.permute.xlu0 %3327
      %3329 = vrot.lane.b32.xlu0 %v3303, 32
      %v3330 = vpop.permute.xlu0 %3329
      %3331 = vrot.lane.b32.xlu0 %v3304, 32
      %v3332 = vpop.permute.xlu0 %3331
      %3333 = vrot.lane.b32.xlu0 %v3305, 32
      %v3334 = vpop.permute.xlu0 %3333
      %3335 = vrot.lane.b32.xlu0 %v3306, 32
      %v3336 = vpop.permute.xlu0 %3335
      %3337 = vrot.lane.b32.xlu0 %v3307, 32
      %v3338 = vpop.permute.xlu0 %3337
      %3339 = vrot.lane.b32.xlu0 %v3308, 32
      %v3340 = vpop.permute.xlu0 %3339
      %vm3341 = vcmask 31744
      %v3344 = vsel %vm3341, %v2653, %v2718
      %v3347 = vsel %vm3341, %v2654, %v2720
      %v3350 = vsel %vm3341, %v2655, %v2722
      %v3353 = vsel %vm3341, %v2656, %v2724
      %v3356 = vsel %vm3341, %v2657, %v2726
      %v3359 = vsel %vm3341, %v2658, %v2728
      %v3362 = vsel %vm3341, %v2659, %v2730
      %v3365 = vsel %vm3341, %v2660, %v2732
      %v3368 = vsel %vm3341, %v2661, %v2734
      %v3371 = vsel %vm3341, %v2662, %v2736
      %v3374 = vsel %vm3341, %v2663, %v2738
      %v3377 = vsel %vm3341, %v2664, %v2740
      %v3380 = vsel %vm3341, %v2665, %v2742
      %v3383 = vsel %vm3341, %v2666, %v2744
      %v3386 = vsel %vm3341, %v2667, %v2746
      %v3389 = vsel %vm3341, %v2668, %v2748
      %vm3390 = vcmask 64512
      %v3392 = vsel %vm3390, %v3344, %v2798
      %v3394 = vsel %vm3390, %v3347, %v2800
      %v3396 = vsel %vm3390, %v3350, %v2802
      %v3398 = vsel %vm3390, %v3353, %v2804
      %v3400 = vsel %vm3390, %v3356, %v2806
      %v3402 = vsel %vm3390, %v3359, %v2808
      %v3404 = vsel %vm3390, %v3362, %v2810
      %v3406 = vsel %vm3390, %v3365, %v2812
      %v3408 = vsel %vm3390, %v3368, %v2814
      %v3410 = vsel %vm3390, %v3371, %v2816
      %v3412 = vsel %vm3390, %v3374, %v2818
      %v3414 = vsel %vm3390, %v3377, %v2820
      %v3416 = vsel %vm3390, %v3380, %v2822
      %v3418 = vsel %vm3390, %v3383, %v2824
      %v3420 = vsel %vm3390, %v3386, %v2826
      %v3422 = vsel %vm3390, %v3389, %v2828
      %vm3423 = vcmask 97280
      %v3425 = vsel %vm3423, %v3392, %v2894
      %v3427 = vsel %vm3423, %v3394, %v2896
      %v3429 = vsel %vm3423, %v3396, %v2898
      %v3431 = vsel %vm3423, %v3398, %v2900
      %v3433 = vsel %vm3423, %v3400, %v2902
      %v3435 = vsel %vm3423, %v3402, %v2904
      %v3437 = vsel %vm3423, %v3404, %v2906
      %v3439 = vsel %vm3423, %v3406, %v2908
      %v3441 = vsel %vm3423, %v3408, %v2910
      %v3443 = vsel %vm3423, %v3410, %v2912
      %v3445 = vsel %vm3423, %v3412, %v2914
      %v3447 = vsel %vm3423, %v3414, %v2916
      %v3449 = vsel %vm3423, %v3416, %v2918
      %v3451 = vsel %vm3423, %v3418, %v2920
      %v3453 = vsel %vm3423, %v3420, %v2922
      %v3455 = vsel %vm3423, %v3422, %v2924
      %vm3456 = vcmask 130048
      %v3458 = vsel %vm3456, %v3425, %v2974
      %v3460 = vsel %vm3456, %v3427, %v2976
      %v3462 = vsel %vm3456, %v3429, %v2978
      %v3464 = vsel %vm3456, %v3431, %v2980
      %v3466 = vsel %vm3456, %v3433, %v2982
      %v3468 = vsel %vm3456, %v3435, %v2984
      %v3470 = vsel %vm3456, %v3437, %v2986
      %v3472 = vsel %vm3456, %v3439, %v2988
      %v3474 = vsel %vm3456, %v3441, %v2990
      %v3476 = vsel %vm3456, %v3443, %v2992
      %v3478 = vsel %vm3456, %v3445, %v2994
      %v3480 = vsel %vm3456, %v3447, %v2996
      %v3482 = vsel %vm3456, %v3449, %v2998
      %v3484 = vsel %vm3456, %v3451, %v3000
      %v3486 = vsel %vm3456, %v3453, %v3002
      %v3488 = vsel %vm3456, %v3455, %v3004
      %vm3489 = vcmask 162816
      %v3491 = vsel %vm3489, %v3458, %v3054
      %v3493 = vsel %vm3489, %v3460, %v3056
      %v3495 = vsel %vm3489, %v3462, %v3058
      %v3497 = vsel %vm3489, %v3464, %v3060
      %v3499 = vsel %vm3489, %v3466, %v3062
      %v3501 = vsel %vm3489, %v3468, %v3064
      %v3503 = vsel %vm3489, %v3470, %v3066
      %v3505 = vsel %vm3489, %v3472, %v3068
      %v3507 = vsel %vm3489, %v3474, %v3070
      %v3509 = vsel %vm3489, %v3476, %v3072
      %v3511 = vsel %vm3489, %v3478, %v3074
      %v3513 = vsel %vm3489, %v3480, %v3076
      %v3515 = vsel %vm3489, %v3482, %v3078
      %v3517 = vsel %vm3489, %v3484, %v3080
      %v3519 = vsel %vm3489, %v3486, %v3082
      %v3521 = vsel %vm3489, %v3488, %v3084
      %vm3522 = vcmask 195584
      %v3524 = vsel %vm3522, %v3491, %v3150
      %v3526 = vsel %vm3522, %v3493, %v3152
      %v3528 = vsel %vm3522, %v3495, %v3154
      %v3530 = vsel %vm3522, %v3497, %v3156
      %v3532 = vsel %vm3522, %v3499, %v3158
      %v3534 = vsel %vm3522, %v3501, %v3160
      %v3536 = vsel %vm3522, %v3503, %v3162
      %v3538 = vsel %vm3522, %v3505, %v3164
      %v3540 = vsel %vm3522, %v3507, %v3166
      %v3542 = vsel %vm3522, %v3509, %v3168
      %v3544 = vsel %vm3522, %v3511, %v3170
      %v3546 = vsel %vm3522, %v3513, %v3172
      %v3548 = vsel %vm3522, %v3515, %v3174
      %v3550 = vsel %vm3522, %v3517, %v3176
      %v3552 = vsel %vm3522, %v3519, %v3178
      %v3554 = vsel %vm3522, %v3521, %v3180
      %vm3555 = vcmask 228352
      %v3557 = vsel %vm3555, %v3524, %v3230
      %v3559 = vsel %vm3555, %v3526, %v3232
      %v3561 = vsel %vm3555, %v3528, %v3234
      %v3563 = vsel %vm3555, %v3530, %v3236
      %v3565 = vsel %vm3555, %v3532, %v3238
      %v3567 = vsel %vm3555, %v3534, %v3240
      %v3569 = vsel %vm3555, %v3536, %v3242
      %v3571 = vsel %vm3555, %v3538, %v3244
      %v3573 = vsel %vm3555, %v3540, %v3246
      %v3575 = vsel %vm3555, %v3542, %v3248
      %v3577 = vsel %vm3555, %v3544, %v3250
      %v3579 = vsel %vm3555, %v3546, %v3252
      %v3581 = vsel %vm3555, %v3548, %v3254
      %v3583 = vsel %vm3555, %v3550, %v3256
      %v3585 = vsel %vm3555, %v3552, %v3258
      %v3587 = vsel %vm3555, %v3554, %v3260
      %vm3588 = vcmask 261120
      %v3590 = vsel %vm3588, %v3557, %v3310
      %v3592 = vsel %vm3588, %v3559, %v3312
      %v3594 = vsel %vm3588, %v3561, %v3314
      %v3596 = vsel %vm3588, %v3563, %v3316
      %v3598 = vsel %vm3588, %v3565, %v3318
      %v3600 = vsel %vm3588, %v3567, %v3320
      %v3602 = vsel %vm3588, %v3569, %v3322
      %v3604 = vsel %vm3588, %v3571, %v3324
      %v3606 = vsel %vm3588, %v3573, %v3326
      %v3608 = vsel %vm3588, %v3575, %v3328
      %v3610 = vsel %vm3588, %v3577, %v3330
      %v3612 = vsel %vm3588, %v3579, %v3332
      %v3614 = vsel %vm3588, %v3581, %v3334
      %v3616 = vsel %vm3588, %v3583, %v3336
      %v3618 = vsel %vm3588, %v3585, %v3338
      %v3620 = vsel %vm3588, %v3587, %v3340
      %v3621 = vld [vmem:[%s1] sm:$0xf]
      %v3622 = vld [vmem:[%s1 + $0x4] sm:$0xf]
      %v3623 = vld [vmem:[%s1 + $0x8] sm:$0xf]
      %v3624 = vld [vmem:[%s1 + $0xc] sm:$0xf]
      %v3625 = vld [vmem:[%s1 + $0x10] sm:$0x3]
      %v3631 = vunpack.c.l.b16 %v3621
      %v3632 = vunpack.c.l.b16 %v3622
      %v3633 = vunpack.c.l.b16 %v3623
      %v3634 = vunpack.c.l.b16 %v3624
      %v3635 = vunpack.c.l.b16 %v3625
      %v3636 = vpack.c.b16 %v3632, %v3631
      %v3637 = vpack.c.b16 %v3634, %v3633
      %v3638 = vpack.c.b16 %v3635, %v3635
      %vm3641 = vcmask 293888
      %v3642 = vsel %vm3641, %v3590, 0
      %v3644 = vsel %vm3641, %v3592, 0
      %v3646 = vsel %vm3641, %v3594, 0
      %v3648 = vsel %vm3641, %v3596, 0
      %v3650 = vsel %vm3641, %v3598, 0
      %v3652 = vsel %vm3641, %v3600, 0
      %v3654 = vsel %vm3641, %v3602, 0
      %v3656 = vsel %vm3641, %v3604, 0
      %v3658 = vsel %vm3641, %v3606, 0
      %v3660 = vsel %vm3641, %v3608, 0
      %v3662 = vsel %vm3641, %v3610, 0
      %v3664 = vsel %vm3641, %v3612, 0
      %v3666 = vsel %vm3641, %v3614, 0
      %v3668 = vsel %vm3641, %v3616, 0
      %v3670 = vsel %vm3641, %v3618, 0
      %v3672 = vsel %vm3641, %v3620, 0
      %vm3674 = vcmask 1041408
      %v3676 = vsel %vm3674, %v3638, 0
      %3678 = vmatprep.subr.bf16.mxu0 0
      %3679 = vmatpush1.bf16.msra.mxu0 0
      %3680 = vmatprep.subr.bf16.mxu0 0
      %3681 = vmatpush1.bf16.msra.mxu0 0
      %3682 = vmatprep.subr.bf16.mxu0 0
      %3683 = vmatpush1.bf16.msra.mxu0 0
      %3684 = vmatprep.subr.bf16.mxu0 0
      %3685 = vmatpush1.bf16.msra.mxu0 0
      %3686 = vmatprep.subr.bf16.mxu0 0
      %3687 = vmatpush1.bf16.msra.mxu0 0
      %3688 = vmatprep.subr.bf16.mxu0 0
      %3689 = vmatpush1.bf16.msra.mxu0 %v3676
      %3690 = vmatprep.subr.bf16.mxu0 0
      %3691 = vmatpush1.bf16.msra.mxu0 %v3637
      %3692 = vmatprep.subr.bf16.mxu0 0
      %3693 = vmatpush1.bf16.msra.mxu0 %v3636
      %3694 = vmatprep.subr.bf16.mxu0 0
      %3695 = vmatpush2.bf16.msra.mxu0 0
      %3696 = vmatprep.subr.bf16.mxu0 0
      %3697 = vmatpush2.bf16.msra.mxu0 0
      %3698 = vmatprep.subr.bf16.mxu0 0
      %3699 = vmatpush2.bf16.msra.mxu0 0
      %3700 = vmatprep.subr.bf16.mxu0 0
      %3701 = vmatpush2.bf16.msra.mxu0 0
      %3702 = vmatprep.subr.bf16.mxu0 0
      %3703 = vmatpush2.bf16.msra.mxu0 0
      %3704 = vmatprep.subr.bf16.mxu0 0
      %3705 = vmatpush2.bf16.msra.mxu0 0
      %3706 = vmatprep.subr.bf16.mxu0 0
      %3707 = vmatpush2.bf16.msra.mxu0 0
      %3708 = vmatprep.subr.bf16.mxu0 0
      %3709 = vmatpush2.bf16.msra.mxu0 0
      %3710 = vmatprep.mubr.bf16.mxu0 0
      %3711 = vmatmul.mubr.bf16.gmra.mxu0 %v3642
      %v3712 = vpop.f32.mrf.mxu0
      %v3713 = vadd.f32 0.0, %v3712
      %v3714 = vpop.f32.mrf.mxu0
      %v3715 = vpop.f32.mrf.mxu0
      %v3716 = vadd.f32 0.0, %v3715
      %v3717 = vpop.f32.mrf.mxu0
      %3718 = vmatprep.mubr.bf16.mxu0 0
      %3719 = vmatmul.mubr.bf16.gmra.mxu0 %v3644
      %v3720 = vpop.f32.mrf.mxu0
      %v3721 = vadd.f32 0.0, %v3720
      %v3722 = vpop.f32.mrf.mxu0
      %v3723 = vpop.f32.mrf.mxu0
      %v3724 = vadd.f32 0.0, %v3723
      %v3725 = vpop.f32.mrf.mxu0
      %3726 = vmatprep.mubr.bf16.mxu0 0
      %3727 = vmatmul.mubr.bf16.gmra.mxu0 %v3646
      %v3728 = vpop.f32.mrf.mxu0
      %v3729 = vadd.f32 0.0, %v3728
      %v3730 = vpop.f32.mrf.mxu0
      %v3731 = vpop.f32.mrf.mxu0
      %v3732 = vadd.f32 0.0, %v3731
      %v3733 = vpop.f32.mrf.mxu0
      %3734 = vmatprep.mubr.bf16.mxu0 0
      %3735 = vmatmul.mubr.bf16.gmra.mxu0 %v3648
      %v3736 = vpop.f32.mrf.mxu0
      %v3737 = vadd.f32 0.0, %v3736
      %v3738 = vpop.f32.mrf.mxu0
      %v3739 = vpop.f32.mrf.mxu0
      %v3740 = vadd.f32 0.0, %v3739
      %v3741 = vpop.f32.mrf.mxu0
      %3742 = vmatprep.mubr.bf16.mxu0 0
      %3743 = vmatmul.mubr.bf16.gmra.mxu0 %v3650
      %v3744 = vpop.f32.mrf.mxu0
      %v3745 = vadd.f32 0.0, %v3744
      %v3746 = vpop.f32.mrf.mxu0
      %v3747 = vpop.f32.mrf.mxu0
      %v3748 = vadd.f32 0.0, %v3747
      %v3749 = vpop.f32.mrf.mxu0
      %3750 = vmatprep.mubr.bf16.mxu0 0
      %3751 = vmatmul.mubr.bf16.gmra.mxu0 %v3652
      %v3752 = vpop.f32.mrf.mxu0
      %v3753 = vadd.f32 0.0, %v3752
      %v3754 = vpop.f32.mrf.mxu0
      %v3755 = vpop.f32.mrf.mxu0
      %v3756 = vadd.f32 0.0, %v3755
      %v3757 = vpop.f32.mrf.mxu0
      %3758 = vmatprep.mubr.bf16.mxu0 0
      %3759 = vmatmul.mubr.bf16.gmra.mxu0 %v3654
      %v3760 = vpop.f32.mrf.mxu0
      %v3761 = vadd.f32 0.0, %v3760
      %v3762 = vpop.f32.mrf.mxu0
      %v3763 = vpop.f32.mrf.mxu0
      %v3764 = vadd.f32 0.0, %v3763
      %v3765 = vpop.f32.mrf.mxu0
      %3766 = vmatprep.mubr.bf16.mxu0 0
      %3767 = vmatmul.mubr.bf16.gmra.mxu0 %v3656
      %v3768 = vpop.f32.mrf.mxu0
      %v3769 = vadd.f32 0.0, %v3768
      %v3770 = vpop.f32.mrf.mxu0
      %v3771 = vpop.f32.mrf.mxu0
      %v3772 = vadd.f32 0.0, %v3771
      %v3773 = vpop.f32.mrf.mxu0
      %3774 = vmatprep.mubr.bf16.mxu0 0
      %3775 = vmatmul.mubr.bf16.gmra.mxu0 %v3658
      %v3776 = vpop.f32.mrf.mxu0
      %v3777 = vadd.f32 0.0, %v3776
      %v3778 = vpop.f32.mrf.mxu0
      %v3779 = vpop.f32.mrf.mxu0
      %v3780 = vadd.f32 0.0, %v3779
      %v3781 = vpop.f32.mrf.mxu0
      %3782 = vmatprep.mubr.bf16.mxu0 0
      %3783 = vmatmul.mubr.bf16.gmra.mxu0 %v3660
      %v3784 = vpop.f32.mrf.mxu0
      %v3785 = vadd.f32 0.0, %v3784
      %v3786 = vpop.f32.mrf.mxu0
      %v3787 = vpop.f32.mrf.mxu0
      %v3788 = vadd.f32 0.0, %v3787
      %v3789 = vpop.f32.mrf.mxu0
      %3790 = vmatprep.mubr.bf16.mxu0 0
      %3791 = vmatmul.mubr.bf16.gmra.mxu0 %v3662
      %v3792 = vpop.f32.mrf.mxu0
      %v3793 = vadd.f32 0.0, %v3792
      %v3794 = vpop.f32.mrf.mxu0
      %v3795 = vpop.f32.mrf.mxu0
      %v3796 = vadd.f32 0.0, %v3795
      %v3797 = vpop.f32.mrf.mxu0
      %3798 = vmatprep.mubr.bf16.mxu0 0
      %3799 = vmatmul.mubr.bf16.gmra.mxu0 %v3664
      %v3800 = vpop.f32.mrf.mxu0
      %v3801 = vadd.f32 0.0, %v3800
      %v3802 = vpop.f32.mrf.mxu0
      %v3803 = vpop.f32.mrf.mxu0
      %v3804 = vadd.f32 0.0, %v3803
      %v3805 = vpop.f32.mrf.mxu0
      %3806 = vmatprep.mubr.bf16.mxu0 0
      %3807 = vmatmul.mubr.bf16.gmra.mxu0 %v3666
      %v3808 = vpop.f32.mrf.mxu0
      %v3809 = vadd.f32 0.0, %v3808
      %v3810 = vpop.f32.mrf.mxu0
      %v3811 = vpop.f32.mrf.mxu0
      %v3812 = vadd.f32 0.0, %v3811
      %v3813 = vpop.f32.mrf.mxu0
      %3814 = vmatprep.mubr.bf16.mxu0 0
      %3815 = vmatmul.mubr.bf16.gmra.mxu0 %v3668
      %v3816 = vpop.f32.mrf.mxu0
      %v3817 = vadd.f32 0.0, %v3816
      %v3818 = vpop.f32.mrf.mxu0
      %v3819 = vpop.f32.mrf.mxu0
      %v3820 = vadd.f32 0.0, %v3819
      %v3821 = vpop.f32.mrf.mxu0
      %3822 = vmatprep.mubr.bf16.mxu0 0
      %3823 = vmatmul.mubr.bf16.gmra.mxu0 %v3670
      %v3824 = vpop.f32.mrf.mxu0
      %v3825 = vadd.f32 0.0, %v3824
      %v3826 = vpop.f32.mrf.mxu0
      %v3827 = vpop.f32.mrf.mxu0
      %v3828 = vadd.f32 0.0, %v3827
      %v3829 = vpop.f32.mrf.mxu0
      %3830 = vmatprep.mubr.bf16.mxu0 0
      %3831 = vmatmul.mubr.bf16.gmra.mxu0 %v3672
      %v3832 = vpop.f32.mrf.mxu0
      %v3833 = vadd.f32 0.0, %v3832
      %v3834 = vpop.f32.mrf.mxu0
      %v3835 = vpop.f32.mrf.mxu0
      %v3836 = vadd.f32 0.0, %v3835
      %v3837 = vpop.f32.mrf.mxu0
      %3838 = vdwg.mxu0
      %v3839 = vadd.f32 %v3713, %v3716
      %v3840 = vadd.f32 %v3839, %v3721
      %v3841 = vadd.f32 %v3840, %v3724
      %v3842 = vadd.f32 %v3841, %v3729
      %v3843 = vadd.f32 %v3842, %v3732
      %v3844 = vadd.f32 %v3843, %v3737
      %v3845 = vadd.f32 %v3844, %v3740
      %v3846 = vadd.f32 %v3845, %v3745
      %v3847 = vadd.f32 %v3846, %v3748
      %v3848 = vadd.f32 %v3847, %v3753
      %v3849 = vadd.f32 %v3848, %v3756
      %v3850 = vadd.f32 %v3849, %v3761
      %v3851 = vadd.f32 %v3850, %v3764
      %v3852 = vadd.f32 %v3851, %v3769
      %v3853 = vadd.f32 %v3852, %v3772
      %v3854 = vadd.f32 %v3853, %v3777
      %v3855 = vadd.f32 %v3854, %v3780
      %v3856 = vadd.f32 %v3855, %v3785
      %v3857 = vadd.f32 %v3856, %v3788
      %v3858 = vadd.f32 %v3857, %v3793
      %v3859 = vadd.f32 %v3858, %v3796
      %v3860 = vadd.f32 %v3859, %v3801
      %v3861 = vadd.f32 %v3860, %v3804
      %v3862 = vadd.f32 %v3861, %v3809
      %v3863 = vadd.f32 %v3862, %v3812
      %v3864 = vadd.f32 %v3863, %v3817
      %v3865 = vadd.f32 %v3864, %v3820
      %v3866 = vadd.f32 %v3865, %v3825
      %v3867 = vadd.f32 %v3866, %v3828
      %v3868 = vadd.f32 %v3867, %v3833
      %v3869 = vadd.f32 %v3868, %v3836
      %v3870 = vrot.slane %v3869, 4
      %v3871 = vadd.f32 %v3869, %v3870
      %v3872 = vrot.slane %v3871, 2
      %v3873 = vadd.f32 %v3871, %v3872
      %v3874 = vrot.slane %v3873, 1
      %v3875 = vadd.f32 %v3873, %v3874
      %3876 = vst [vmem:[%s181] sm:$0x1] %v3875
      %v3877 = vmul.f32 %v3713, %v3713
      %v3878 = vmul.f32 %v3716, %v3716
      %v3879 = vmul.f32 %v3721, %v3721
      %v3880 = vmul.f32 %v3724, %v3724
      %v3881 = vmul.f32 %v3729, %v3729
      %v3882 = vmul.f32 %v3732, %v3732
      %v3883 = vmul.f32 %v3737, %v3737
      %v3884 = vmul.f32 %v3740, %v3740
      %v3885 = vmul.f32 %v3745, %v3745
      %v3886 = vmul.f32 %v3748, %v3748
      %v3887 = vmul.f32 %v3753, %v3753
      %v3888 = vmul.f32 %v3756, %v3756
      %v3889 = vmul.f32 %v3761, %v3761
      %v3890 = vmul.f32 %v3764, %v3764
      %v3891 = vmul.f32 %v3769, %v3769
      %v3892 = vmul.f32 %v3772, %v3772
      %v3893 = vmul.f32 %v3777, %v3777
      %v3894 = vmul.f32 %v3780, %v3780
      %v3895 = vmul.f32 %v3785, %v3785
      %v3896 = vmul.f32 %v3788, %v3788
      %v3897 = vmul.f32 %v3793, %v3793
      %v3898 = vmul.f32 %v3796, %v3796
      %v3899 = vmul.f32 %v3801, %v3801
      %v3900 = vmul.f32 %v3804, %v3804
      %v3901 = vmul.f32 %v3809, %v3809
      %v3902 = vmul.f32 %v3812, %v3812
      %v3903 = vmul.f32 %v3817, %v3817
      %v3904 = vmul.f32 %v3820, %v3820
      %v3905 = vmul.f32 %v3825, %v3825
      %v3906 = vmul.f32 %v3828, %v3828
      %v3907 = vmul.f32 %v3833, %v3833
      %v3908 = vmul.f32 %v3836, %v3836
      %v3909 = vadd.f32 %v3877, %v3878
      %v3910 = vadd.f32 %v3909, %v3879
      %v3911 = vadd.f32 %v3910, %v3880
      %v3912 = vadd.f32 %v3911, %v3881
      %v3913 = vadd.f32 %v3912, %v3882
      %v3914 = vadd.f32 %v3913, %v3883
      %v3915 = vadd.f32 %v3914, %v3884
      %v3916 = vadd.f32 %v3915, %v3885
      %v3917 = vadd.f32 %v3916, %v3886
      %v3918 = vadd.f32 %v3917, %v3887
      %v3919 = vadd.f32 %v3918, %v3888
      %v3920 = vadd.f32 %v3919, %v3889
      %v3921 = vadd.f32 %v3920, %v3890
      %v3922 = vadd.f32 %v3921, %v3891
      %v3923 = vadd.f32 %v3922, %v3892
      %v3924 = vadd.f32 %v3923, %v3893
      %v3925 = vadd.f32 %v3924, %v3894
      %v3926 = vadd.f32 %v3925, %v3895
      %v3927 = vadd.f32 %v3926, %v3896
      %v3928 = vadd.f32 %v3927, %v3897
      %v3929 = vadd.f32 %v3928, %v3898
      %v3930 = vadd.f32 %v3929, %v3899
      %v3931 = vadd.f32 %v3930, %v3900
      %v3932 = vadd.f32 %v3931, %v3901
      %v3933 = vadd.f32 %v3932, %v3902
      %v3934 = vadd.f32 %v3933, %v3903
      %v3935 = vadd.f32 %v3934, %v3904
      %v3936 = vadd.f32 %v3935, %v3905
      %v3937 = vadd.f32 %v3936, %v3906
      %v3938 = vadd.f32 %v3937, %v3907
      %v3939 = vadd.f32 %v3938, %v3908
      %v3940 = vrot.slane %v3939, 4
      %v3941 = vadd.f32 %v3939, %v3940
      %v3942 = vrot.slane %v3941, 2
      %v3943 = vadd.f32 %v3941, %v3942
      %v3944 = vrot.slane %v3943, 1
      %v3945 = vadd.f32 %v3943, %v3944
      %3946 = vst [vmem:[%s181 + $0x1] sm:$0x1] %v3945
      %v3947 = vpack.c.bf16 %v3716, %v3713
      %v3948 = vpack.c.bf16 %v3724, %v3721
      %v3949 = vpack.c.bf16 %v3732, %v3729
      %v3950 = vpack.c.bf16 %v3740, %v3737
      %v3951 = vpack.c.bf16 %v3748, %v3745
      %v3952 = vpack.c.bf16 %v3756, %v3753
      %v3953 = vpack.c.bf16 %v3764, %v3761
      %v3954 = vpack.c.bf16 %v3772, %v3769
      %v3955 = vpack.c.bf16 %v3780, %v3777
      %v3956 = vpack.c.bf16 %v3788, %v3785
      %v3957 = vpack.c.bf16 %v3796, %v3793
      %v3958 = vpack.c.bf16 %v3804, %v3801
      %v3959 = vpack.c.bf16 %v3812, %v3809
      %v3960 = vpack.c.bf16 %v3820, %v3817
      %v3961 = vpack.c.bf16 %v3828, %v3825
      %v3962 = vpack.c.bf16 %v3836, %v3833
      %v3979 = vunpack.c.l.b16 %v3947
      %v3980 = vunpack.c.h.b16 %v3947
      %v3981 = vunpack.c.l.b16 %v3948
      %v3982 = vunpack.c.h.b16 %v3948
      %v3983 = vunpack.c.l.b16 %v3949
      %v3984 = vunpack.c.h.b16 %v3949
      %v3985 = vunpack.c.l.b16 %v3950
      %v3986 = vunpack.c.h.b16 %v3950
      %v3987 = vunpack.c.l.b16 %v3951
      %v3988 = vunpack.c.h.b16 %v3951
      %v3989 = vunpack.c.l.b16 %v3952
      %v3990 = vunpack.c.h.b16 %v3952
      %v3991 = vunpack.c.l.b16 %v3953
      %v3992 = vunpack.c.h.b16 %v3953
      %v3993 = vunpack.c.l.b16 %v3954
      %v3994 = vunpack.c.h.b16 %v3954
      %v3995 = vunpack.c.l.b16 %v3955
      %v3996 = vunpack.c.h.b16 %v3955
      %v3997 = vunpack.c.l.b16 %v3956
      %v3998 = vunpack.c.h.b16 %v3956
      %v3999 = vunpack.c.l.b16 %v3957
      %v4000 = vunpack.c.h.b16 %v3957
      %v4001 = vunpack.c.l.b16 %v3958
      %v4002 = vunpack.c.h.b16 %v3958
      %v4003 = vunpack.c.l.b16 %v3959
      %v4004 = vunpack.c.h.b16 %v3959
      %v4005 = vunpack.c.l.b16 %v3960
      %v4006 = vunpack.c.h.b16 %v3960
      %v4007 = vunpack.c.l.b16 %v3961
      %v4008 = vunpack.c.h.b16 %v3961
      %v4009 = vunpack.c.l.b16 %v3962
      %v4010 = vunpack.c.h.b16 %v3962
      %v4011 = vpack.c.b16 %v3979, %v3979
      %v4012 = vpack.c.b16 %v3980, %v3980
      %v4013 = vpack.c.b16 %v3981, %v3981
      %v4014 = vpack.c.b16 %v3982, %v3982
      %v4015 = vpack.c.b16 %v3983, %v3983
      %v4016 = vpack.c.b16 %v3984, %v3984
      %v4017 = vpack.c.b16 %v3985, %v3985
      %v4018 = vpack.c.b16 %v3986, %v3986
      %v4019 = vpack.c.b16 %v3987, %v3987
      %v4020 = vpack.c.b16 %v3988, %v3988
      %v4021 = vpack.c.b16 %v3989, %v3989
      %v4022 = vpack.c.b16 %v3990, %v3990
      %v4023 = vpack.c.b16 %v3991, %v3991
      %v4024 = vpack.c.b16 %v3992, %v3992
      %v4025 = vpack.c.b16 %v3993, %v3993
      %v4026 = vpack.c.b16 %v3994, %v3994
      %v4027 = vpack.c.b16 %v3995, %v3995
      %v4028 = vpack.c.b16 %v3996, %v3996
      %v4029 = vpack.c.b16 %v3997, %v3997
      %v4030 = vpack.c.b16 %v3998, %v3998
      %v4031 = vpack.c.b16 %v3999, %v3999
      %v4032 = vpack.c.b16 %v4000, %v4000
      %v4033 = vpack.c.b16 %v4001, %v4001
      %v4034 = vpack.c.b16 %v4002, %v4002
      %v4035 = vpack.c.b16 %v4003, %v4003
      %v4036 = vpack.c.b16 %v4004, %v4004
      %v4037 = vpack.c.b16 %v4005, %v4005
      %v4038 = vpack.c.b16 %v4006, %v4006
      %v4039 = vpack.c.b16 %v4007, %v4007
      %v4040 = vpack.c.b16 %v4008, %v4008
      %v4041 = vpack.c.b16 %v4009, %v4009
      %v4042 = vpack.c.b16 %v4010, %v4010
      %4075 = vst [vmem:[%s177] sm:$0xf] %v4011
      %4076 = vst [vmem:[%s177 + $0x4] sm:$0xf] %v4012
      %4077 = vst [vmem:[%s177 + $0x8] sm:$0xf] %v4013
      %4078 = vst [vmem:[%s177 + $0xc] sm:$0xf] %v4014
      %4079 = vst [vmem:[%s177 + $0x10] sm:$0xf] %v4015
      %4080 = vst [vmem:[%s177 + $0x14] sm:$0xf] %v4016
      %4081 = vst [vmem:[%s177 + $0x18] sm:$0xf] %v4017
      %4082 = vst [vmem:[%s177 + $0x1c] sm:$0xf] %v4018
      %4083 = vst [vmem:[%s177 + $0x20] sm:$0xf] %v4019
      %4084 = vst [vmem:[%s177 + $0x24] sm:$0xf] %v4020
      %4085 = vst [vmem:[%s177 + $0x28] sm:$0xf] %v4021
      %4086 = vst [vmem:[%s177 + $0x2c] sm:$0xf] %v4022
      %4087 = vst [vmem:[%s177 + $0x30] sm:$0xf] %v4023
      %4088 = vst [vmem:[%s177 + $0x34] sm:$0xf] %v4024
      %4089 = vst [vmem:[%s177 + $0x38] sm:$0xf] %v4025
      %4090 = vst [vmem:[%s177 + $0x3c] sm:$0xf] %v4026
      %4091 = vst [vmem:[%s177 + $0x40] sm:$0xf] %v4027
      %4092 = vst [vmem:[%s177 + $0x44] sm:$0xf] %v4028
      %4093 = vst [vmem:[%s177 + $0x48] sm:$0xf] %v4029
      %4094 = vst [vmem:[%s177 + $0x4c] sm:$0xf] %v4030
      %4095 = vst [vmem:[%s177 + $0x50] sm:$0xf] %v4031
      %4096 = vst [vmem:[%s177 + $0x54] sm:$0xf] %v4032
      %4097 = vst [vmem:[%s177 + $0x58] sm:$0xf] %v4033
      %4098 = vst [vmem:[%s177 + $0x5c] sm:$0xf] %v4034
      %4099 = vst [vmem:[%s177 + $0x60] sm:$0xf] %v4035
      %4100 = vst [vmem:[%s177 + $0x64] sm:$0xf] %v4036
      %4101 = vst [vmem:[%s177 + $0x68] sm:$0xf] %v4037
      %4102 = vst [vmem:[%s177 + $0x6c] sm:$0xf] %v4038
      %4103 = vst [vmem:[%s177 + $0x70] sm:$0xf] %v4039
      %4104 = vst [vmem:[%s177 + $0x74] sm:$0xf] %v4040
      %4105 = vst [vmem:[%s177 + $0x78] sm:$0xf] %v4041
      %4106 = vst [vmem:[%s177 + $0x7c] sm:$0xf] %v4042
      %p4107 = scmp.lt.s32.totalorder %s15, 1
      %s4108 = scalar_select %p4107, %s15, 1
      %s4109 = smul.addr %s4108, 32
      %s4110 = smul.addr %s4109, 4
      %s4111 = scalar_lea.vmem %s2, %s4110
      %p4112 = scmp.lt.s32.totalorder %s15, 1
      %s4113 = scalar_select %p4112, %s15, 1
      %s4114 = smul.addr %s4113, 2
      %s4115 = scalar_lea.vmem %s3, %s4114
      // Predicated region
      $region29: #{upblock_forward.2} parent=27 // pred_check
        %p4116 = pneg %p80
      $region30: #{upblock_forward.2} parent=27 // pred_check_branch
        %4118 = sbr.rel (%p4116) target = $region32
      $region31: #{upblock_forward.2} parent=27 // pred_region
        _
      $region32: #{upblock_forward.2} parent=27 // pred_fallthru
        _
      // Predicated region
      $region33: #{upblock_forward.2} parent=27 // pred_check
        %p4119 = pneg %p106
      $region34: #{upblock_forward.2} parent=27 // pred_check_branch
        %4121 = sbr.rel (%p4119) target = $region36
      $region35: #{upblock_forward.2} parent=27 // pred_region
        _
      $region36: #{upblock_forward.2} parent=27 // pred_fallthru
        _
    $region28: #{upblock_forward.2} parent=5 // pred_fallthru
      _
    %p4122 = scmp.le.s32.totalorder 2, %s10
    // Predicated region
    $region37: #{upblock_forward.2} parent=5 // pred_check
      %p4123 = pneg %p4122
    $region38: #{upblock_forward.2} parent=5 // pred_check_branch
      %4125 = sbr.rel (%p4123) target = $region40
    $region39: #{upblock_forward.2} parent=5 // pred_region
      %s4126 = ssub.s32 %s10, 2
      // Predicated region
      $region41: #{upblock_forward.2} parent=39 // pred_check
        %p4127 = pneg %p86
      $region42: #{upblock_forward.2} parent=39 // pred_check_branch
        %4129 = sbr.rel (%p4127) target = $region44
      $region43: #{upblock_forward.2} parent=39 // pred_region
        %p4130 = scmp.lt.s32.totalorder %s16, 1
        %s4131 = scalar_select %p4130, %s16, 1
        %s4132 = smul.addr %s4131, 32
        %s4133 = smul.addr %s4132, 4
        %s4134 = scalar_lea.vmem %s2, %s4133
      $region44: #{upblock_forward.2} parent=39 // pred_fallthru
        _
      // Predicated region
      $region45: #{upblock_forward.2} parent=39 // pred_check
        %p4135 = pneg %p112
      $region46: #{upblock_forward.2} parent=39 // pred_check_branch
        %4137 = sbr.rel (%p4135) target = $region48
      $region47: #{upblock_forward.2} parent=39 // pred_region
        %p4138 = scmp.lt.s32.totalorder %s16, 1
        %s4139 = scalar_select %p4138, %s16, 1
        %s4140 = smul.addr %s4139, 2
        %s4141 = scalar_lea.vmem %s3, %s4140
      $region48: #{upblock_forward.2} parent=39 // pred_fallthru
        _
    $region40: #{upblock_forward.2} parent=5 // pred_fallthru
      _
  $region6: #{upblock_forward.2} parent=0 // loop_footer
    %s14 = sadd.s32 1, %s10
  $region7: #{upblock_forward.2} parent=0 // loop_footer_branch
    %9 = sbr.rel target = $region3
  $region8: #{upblock_forward.2} parent=0 // loop_exit
    _

</llo_original>
